<compile_context>
chip_gen: v6e
topology: v6e:2x2x1
jax: 0.10.0
libtpu: 0.0.40
codegen_flags: <defaults>
</compile_context>

<pallas_src>
import functools
import math

import jax
import jax.numpy as jnp
from jax.experimental import pallas as pl
from jax.experimental.pallas import tpu as pltpu


def pointer_network_kernel(x_ref, dec_in_ref,
                           ew_ih_ref, eb_ref, enc_whh_w1_ref,
                           dw_ih_ref, db_ref, dec_whh_w2_ref,
                           vt_ref,
                           out_ref,
                           xg_ref, blend1_ref,
                           *, seq_len, chunk_t, hidden_size, weight_size,
                           answer_seq_len):
    T, CT, H, W, A = seq_len, chunk_t, hidden_size, weight_size, answer_seq_len
    BB = dec_in_ref.shape[0]              # padded batch block (multiple of 8)
    T_out = out_ref.shape[2]              # lane-padded output sequence length
    mxu_dtype = enc_whh_w1_ref.dtype      # bf16 on v6e/v7x, f32 on v5e / baseline

    # ---------------- encoder ----------------
    ew_ih = ew_ih_ref[...]                # (E, 4H)
    eb = eb_ref[...]                      # (1, 4H), f32
    enc_whh_w1 = enc_whh_w1_ref[...]      # (H, 4H+W) = [W_hh | W1^T]

    n_chunks = T // CT
    enc_unroll = min(CT, 8)

    def enc_chunk(ci, carry):
        # Input projection for CT timesteps as one lane-dense MXU matmul into a small
        # rotating scratch (no (T*B, 4H) slab).
        t0 = pl.multiple_of(ci * CT, CT)
        xc = x_ref[pl.ds(t0, CT)]                                   # (CT, BB, E)
        xg_ref[...] = (jnp.dot(xc.reshape(CT * BB, xc.shape[-1]), ew_ih,
                               preferred_element_type=jnp.float32) + eb)

        def enc_step(tt, carry):
            c, hh_gates, _ = carry
            row = pl.multiple_of(tt * BB, BB)
            gates = xg_ref[pl.ds(row, BB), :] + hh_gates            # (BB, 4H)
            i = jax.nn.sigmoid(gates[:, 0 * H:1 * H])
            f = jax.nn.sigmoid(gates[:, 1 * H:2 * H])
            g = jnp.tanh(gates[:, 2 * H:3 * H])
            o = jax.nn.sigmoid(gates[:, 3 * H:4 * H])
            c = f * c + i * g
            h = o * jnp.tanh(c)
            # ONE fused MXU matmul: gives W_hh·h_t (gates for step t+1) and
            # blend1_t = W1·h_t (lane slices stay 128-aligned: 4H and W are 128-mults).
            fused = jnp.dot(h.astype(mxu_dtype), enc_whh_w1,
                            preferred_element_type=jnp.float32)     # (BB, 4H+W)
            blend1_ref[ci * CT + tt] = fused[:, 4 * H:]
            return c, fused[:, :4 * H], h

        return jax.lax.fori_loop(0, CT, enc_step, carry, unroll=enc_unroll)

    zeros_h = jnp.zeros((BB, H), jnp.float32)
    zeros_g = jnp.zeros((BB, 4 * H), jnp.float32)
    _, _, h_last = jax.lax.fori_loop(0, n_chunks, enc_chunk,
                                     (zeros_h, zeros_g, zeros_h))

    # ---------------- pointer decoder ----------------
    dec_whh_w2 = dec_whh_w2_ref[...]      # (H, 4H+W) = [W_hh | W2^T]
    vt = vt_ref[...]                      # (1, W), f32

    # Decoder input is constant across answer steps -> hoist its projection (+ bias).
    dec_gates_in = (jnp.dot(dec_in_ref[...], dw_ih_ref[...],
                            preferred_element_type=jnp.float32) + db_ref[...])

    def dec_step(s, carry):
        cell, hh_gates = carry
        gates = dec_gates_in + hh_gates                             # (BB, 4H)
        i = jax.nn.sigmoid(gates[:, 0 * H:1 * H])
        f = jax.nn.sigmoid(gates[:, 1 * H:2 * H])
        g = jnp.tanh(gates[:, 2 * H:3 * H])
        o = jax.nn.sigmoid(gates[:, 3 * H:4 * H])
        cell = f * cell + i * g
        hidden = o * jnp.tanh(cell)
        # ONE fused MXU matmul: next step's W_hh gates + blend2_s = W2·hidden_s.
        fused = jnp.dot(hidden.astype(mxu_dtype), dec_whh_w2,
                        preferred_element_type=jnp.float32)         # (BB, 4H+W)
        blend2 = fused[:, 4 * H:]                                   # (BB, W)
        # blend1 streamed from the scratch ref per step (no whole-array hoist).
        blend_sum = jnp.tanh(blend1_ref[...] + blend2[None, :, :])  # (T, BB, W)
        # vt applied as VPU multiply + lane reduce instead of an N=1 matvec.
        scores = jnp.sum(blend_sum * vt, axis=-1)                   # (T, BB)
        logits = jnp.transpose(scores)                              # (BB, T)
        # log_softmax over T, then negate (probs.append(-out) in the module);
        # the "+ 1e-08" of the original is shift-invariant and dropped.
        m = jnp.max(logits, axis=-1, keepdims=True)
        lse = m + jnp.log(jnp.sum(jnp.exp(logits - m), axis=-1, keepdims=True))
        res = -(logits - lse)
        if T_out > T:   # lane-pad so the per-step store is a full, unmasked slab
            res = jnp.concatenate(
                [res, jnp.zeros((BB, T_out - T), res.dtype)], axis=-1)
        out_ref[s] = res
        return cell, fused[:, :4 * H]

    # hidden_0 = 0 (so W_hh·hidden_0 = 0), cell_0 = last encoder hidden state.
    jax.lax.fori_loop(0, A, dec_step, (h_last, zeros_g), unroll=min(A, 4))


def pointer_network_forward(x, encoder_init_from_sentence, params, answer_seq_len,
                            *, mxu_dtype=jnp.float32):
    B, T, E = x.shape
    H = params['enc_w_hh'].shape[1]          # enc_w_hh: (4H, H)
    W = params['W1'].shape[0]                # W1: (W, H)
    A = answer_seq_len
    f32 = jnp.float32

    B_pad = ((B + 7) // 8) * 8               # sublane multiple
    n_blocks = 2 if B_pad % 16 == 0 else 1   # split batch across 2 TCs (v7x megacore)
    BB = B_pad // n_blocks
    CT = next(c for c in (16, 8, 4, 2, 1) if T % c == 0)   # time chunk for x @ W_ih
    T_out = ((T + 127) // 128) * 128         # lane-dense output stores

    # time-major input so per-step reads in-kernel are aligned sublane slices
    x_tm = jnp.transpose(x.astype(f32), (1, 0, 2))                    # (T, B, E)
    x_tm = jnp.pad(x_tm, ((0, 0), (0, B_pad - B), (0, 0))).astype(mxu_dtype)
    dec_in = encoder_init_from_sentence.astype(f32).reshape(B, E)     # .squeeze()
    dec_in = jnp.pad(dec_in, ((0, B_pad - B), (0, 0))).astype(mxu_dtype)

    enc_w_ih = params['enc_w_ih'].T.astype(mxu_dtype)                 # (E, 4H)
    dec_w_ih = params['dec_w_ih'].T.astype(mxu_dtype)                 # (E, 4H)
    # fused [W_hh | W^T]: one MXU push per recurrence step
    enc_whh_w1 = jnp.concatenate([params['enc_w_hh'].T, params['W1'].T],
                                 axis=1).astype(mxu_dtype)            # (H, 4H+W)
    dec_whh_w2 = jnp.concatenate([params['dec_w_hh'].T, params['W2'].T],
                                 axis=1).astype(mxu_dtype)            # (H, 4H+W)
    eb = (params['enc_b_ih'] + params['enc_b_hh']).reshape(1, 4 * H).astype(f32)
    db = (params['dec_b_ih'] + params['dec_b_hh']).reshape(1, 4 * H).astype(f32)
    vt = params['vt'].astype(f32)                                     # (1, W)

    kernel = functools.partial(pointer_network_kernel,
                               seq_len=T, chunk_t=CT, hidden_size=H,
                               weight_size=W, answer_seq_len=A)

    def _full(shape):
        return pl.BlockSpec(shape, lambda b: (0,) * len(shape))

    # explicit VMEM budget sized from the actual per-core footprint (+ headroom)
    wsz = jnp.dtype(mxu_dtype).itemsize
    est = (math.prod((T, BB, E)) * wsz            # x block
           + math.prod((BB, E)) * wsz             # dec_in block
           + 2 * math.prod((E, 4 * H)) * wsz      # W_ih (enc + dec)
           + 2 * math.prod((H, 4 * H + W)) * wsz  # fused [W_hh | W] (enc + dec)
           + (2 * 4 * H + W) * 4                  # biases + vt (f32)
           + math.prod((A, BB, T_out)) * 4        # output block
           + math.prod((CT * BB, 4 * H)) * 4      # chunked gate scratch
           + math.prod((T, BB, W)) * 4)           # blend1 scratch
    vmem_limit = int(min(max(2 * est + (8 << 20), 32 << 20), 100 << 20))

    out = pl.pallas_call(
        kernel,
        out_shape=jax.ShapeDtypeStruct((A, B_pad, T_out), f32),
        grid=(n_blocks,),
        in_specs=[
            pl.BlockSpec((T, BB, E), lambda b: (0, b, 0)),       # x (time-major)
            pl.BlockSpec((BB, E), lambda b: (b, 0)),             # decoder input
            _full((E, 4 * H)),                                   # enc W_ih
            _full((1, 4 * H)),                                   # enc bias (ih+hh)
            _full((H, 4 * H + W)),                               # enc [W_hh | W1]
            _full((E, 4 * H)),                                   # dec W_ih
            _full((1, 4 * H)),                                   # dec bias (ih+hh)
            _full((H, 4 * H + W)),                               # dec [W_hh | W2]
            _full((1, W)),                                       # vt
        ],
        out_specs=pl.BlockSpec((A, BB, T_out), lambda b: (0, b, 0)),
        scratch_shapes=[
            pltpu.VMEM((CT * BB, 4 * H), f32),   # chunked input-projection gates
            pltpu.VMEM((T, BB, W), f32),         # blend1 = W1(encoder states)
        ],
        compiler_params=pltpu.CompilerParams(
            dimension_semantics=("parallel",),
            vmem_limit_bytes=vmem_limit),
    )(x_tm, dec_in, enc_w_ih, eb, enc_whh_w1, dec_w_ih, db, dec_whh_w2, vt)

    # (A, B_pad, T_out) -> (B, A, T): wrapper-side layout plumbing; keeps in-kernel
    # stores lane-dense and avoids an in-kernel 3D transpose.
    return jnp.transpose(out, (1, 0, 2))[:B, :, :T]


def pointer_network_reference(x, encoder_init_from_sentence, params, answer_seq_len):
    """Pure-JAX reference mirroring the PyTorch forward, for correctness check."""
    B, T, E = x.shape
    H = params['enc_w_hh'].shape[1]

    def lstm_step(x_t, h, c, w_ih, w_hh, b_ih, b_hh):
        gates = x_t @ w_ih.T + b_ih + h @ w_hh.T + b_hh
        i, f, g, o = jnp.split(gates, 4, axis=-1)
        c = jax.nn.sigmoid(f) * c + jax.nn.sigmoid(i) * jnp.tanh(g)
        h = jax.nn.sigmoid(o) * jnp.tanh(c)
        return h, c

    h = jnp.zeros((B, H)); c = jnp.zeros((B, H))
    enc = []
    for t in range(T):
        h, c = lstm_step(x[:, t, :], h, c, params['enc_w_ih'], params['enc_w_hh'],
                         params['enc_b_ih'], params['enc_b_hh'])
        enc.append(h)
    enc = jnp.stack(enc, axis=0)                         # (T, B, H) time-major

    dec_in = encoder_init_from_sentence.reshape(B, E)
    hidden = jnp.zeros((B, H)); cell = enc[-1]
    probs = []
    for _ in range(answer_seq_len):
        hidden, cell = lstm_step(dec_in, hidden, cell, params['dec_w_ih'],
                                 params['dec_w_hh'], params['dec_b_ih'],
                                 params['dec_b_hh'])
        blend1 = enc @ params['W1'].T                    # (T, B, W)
        blend2 = hidden @ params['W2'].T                 # (B, W)
        blend_sum = jnp.tanh(blend1 + blend2)
        out = (blend_sum @ params['vt'].T)[..., 0]       # (T, B)
        out = jax.nn.log_softmax(out.T + 1e-08, axis=-1)
        probs.append(-out)
    return jnp.stack(probs, axis=1)                      # (B, A, T)


if __name__ == "__main__":
    # Small shapes consistent with the module's forward. H and weight_size are
    # multiples of 128 so gate slices / fused blend slices are lane-aligned.
    B, T = 2, 8                 # batch, input sequence length
    E = 32                      # emb_size
    H = 128                     # hidden_size (small lane-aligned stand-in for 512)
    Wsz = 128                   # weight_size
    A = 4                       # answer_seq_len

    key = jax.random.PRNGKey(0)
    ks = jax.random.split(key, 13)
    s = 1.0 / float(H) ** 0.5

    def u(k, shape):
        return jax.random.uniform(k, shape, jnp.float32, minval=-s, maxval=s)

    params = {
        'enc_w_ih': u(ks[0], (4 * H, E)), 'enc_w_hh': u(ks[1], (4 * H, H)),
        'enc_b_ih': u(ks[2], (4 * H,)),   'enc_b_hh': u(ks[3], (4 * H,)),
        'dec_w_ih': u(ks[4], (4 * H, E)), 'dec_w_hh': u(ks[5], (4 * H, H)),
        'dec_b_ih': u(ks[6], (4 * H,)),   'dec_b_hh': u(ks[7], (4 * H,)),
        'W1': u(ks[8], (Wsz, H)),
        'W2': u(ks[9], (Wsz, H)),
        'vt': u(ks[10], (1, Wsz)),
    }

    x = jax.random.normal(ks[11], (B, T, E), jnp.float32)
    encoder_init_from_sentence = jax.random.normal(ks[12], (B, 1, E), jnp.float32)

    ref = pointer_network_reference(x, encoder_init_from_sentence, params, A)

    # f32 MXU path (v5e-safe baseline) — strict correctness check.
    probs = pointer_network_forward(x, encoder_init_from_sentence, params, A,
                                    mxu_dtype=jnp.float32)
    probs = jax.block_until_ready(probs)
    assert probs.shape == (B, A, T), probs.shape
    assert jnp.allclose(probs, ref, rtol=1e-3, atol=1e-3), (
        float(jnp.max(jnp.abs(probs - ref))))

    # bf16 MXU path (v6e/v7x fast path: bf16 weights/activations, f32 accumulation,
    # f32 elementwise) — loose tolerance, as bf16 perturbs low-order bits.
    probs_bf16 = pointer_network_forward(x, encoder_init_from_sentence, params, A,
                                         mxu_dtype=jnp.bfloat16)
    probs_bf16 = jax.block_until_ready(probs_bf16)
    assert probs_bf16.shape == (B, A, T), probs_bf16.shape
    assert jnp.allclose(probs_bf16, ref, rtol=1e-1, atol=1e-1), (
        float(jnp.max(jnp.abs(probs_bf16 - ref))))

    print("KERNEL_OK")
</pallas_src>

<mosaic_0001>
module attributes {stable_mosaic.version = 11 : i64} {
  func.func @pointer_network_kernel(%arg0: i32, %arg1: memref<8x8x32xf32, #tpu.memory_space<vmem>>, %arg2: memref<8x32xf32, #tpu.memory_space<vmem>>, %arg3: memref<32x512xf32, #tpu.memory_space<vmem>>, %arg4: memref<1x512xf32, #tpu.memory_space<vmem>>, %arg5: memref<128x640xf32, #tpu.memory_space<vmem>>, %arg6: memref<32x512xf32, #tpu.memory_space<vmem>>, %arg7: memref<1x512xf32, #tpu.memory_space<vmem>>, %arg8: memref<128x640xf32, #tpu.memory_space<vmem>>, %arg9: memref<1x128xf32, #tpu.memory_space<vmem>>, %arg10: memref<4x8x128xf32, #tpu.memory_space<vmem>>, %arg11: memref<64x512xf32, #tpu.memory_space<vmem>>, %arg12: memref<8x8x128xf32, #tpu.memory_space<vmem>>) attributes {dimension_semantics = [#tpu.dimension_semantics<parallel>], iteration_bounds = array<i64: 1>, scalar_prefetch = 0 : i64, scratch_operands = 2 : i64, tpu.core_type = #tpu.core_type<tc>, window_params = [{transform_indices = @transform_0, window_bounds = array<i64: 8, 8, 32>}, {transform_indices = @transform_1, window_bounds = array<i64: 8, 32>}, {pipeline_mode = #tpu.pipeline_mode<synchronous>, transform_indices = @transform_2, window_bounds = array<i64: 32, 512>}, {pipeline_mode = #tpu.pipeline_mode<synchronous>, transform_indices = @transform_3, window_bounds = array<i64: 1, 512>}, {pipeline_mode = #tpu.pipeline_mode<synchronous>, transform_indices = @transform_4, window_bounds = array<i64: 128, 640>}, {pipeline_mode = #tpu.pipeline_mode<synchronous>, transform_indices = @transform_5, window_bounds = array<i64: 32, 512>}, {pipeline_mode = #tpu.pipeline_mode<synchronous>, transform_indices = @transform_6, window_bounds = array<i64: 1, 512>}, {pipeline_mode = #tpu.pipeline_mode<synchronous>, transform_indices = @transform_7, window_bounds = array<i64: 128, 640>}, {pipeline_mode = #tpu.pipeline_mode<synchronous>, transform_indices = @transform_8, window_bounds = array<i64: 1, 128>}, {transform_indices = @transform_9, window_bounds = array<i64: 4, 8, 128>}]} {
    %c0 = arith.constant 0 : index
    %c0_0 = arith.constant 0 : index
    %0 = vector.load %arg3[%c0, %c0_0] : memref<32x512xf32, #tpu.memory_space<vmem>>, vector<32x512xf32>
    %c0_1 = arith.constant 0 : index
    %c0_2 = arith.constant 0 : index
    %1 = vector.load %arg4[%c0_1, %c0_2] : memref<1x512xf32, #tpu.memory_space<vmem>>, vector<1x512xf32>
    %c0_3 = arith.constant 0 : index
    %c0_4 = arith.constant 0 : index
    %2 = vector.load %arg5[%c0_3, %c0_4] : memref<128x640xf32, #tpu.memory_space<vmem>>, vector<128x640xf32>
    %cst = arith.constant 0.000000e+00 : f32
    %3 = vector.broadcast %cst : f32 to vector<8x128xf32>
    %cst_5 = arith.constant 0.000000e+00 : f32
    %4 = vector.broadcast %cst_5 : f32 to vector<8x512xf32>
    %c0_i32 = arith.constant 0 : i32
    %c8_i32 = arith.constant 8 : i32
    %5 = arith.muli %c0_i32, %c8_i32 : i32
    %6 = tpu.assume_multiple %5, 8 : i32
    %7 = arith.index_cast %6 : i32 to index
    %c0_6 = arith.constant 0 : index
    %c0_7 = arith.constant 0 : index
    %8 = vector.load %arg1[%7, %c0_6, %c0_7] : memref<8x8x32xf32, #tpu.memory_space<vmem>>, vector<8x8x32xf32>
    %9 = vector.shape_cast %8 : vector<8x8x32xf32> to vector<64x32xf32>
    %cst_8 = arith.constant dense<0.000000e+00> : vector<64x512xf32>
    %10 = tpu.matmul %9, %0, %cst_8 {dimension_numbers = #tpu.dot_dimension_numbers<[1], [0], [0], [1], [0, 0, 1, 1], [], []>} : vector<64x32xf32>, vector<32x512xf32>, vector<64x512xf32> -> vector<64x512xf32>
    %11 = vector.broadcast %1 : vector<1x512xf32> to vector<64x512xf32>
    %12 = arith.addf %10, %11 : vector<64x512xf32>
    %c0_9 = arith.constant 0 : index
    %c0_10 = arith.constant 0 : index
    %13 = vector.load %arg11[%c0_9, %c0_10] : memref<64x512xf32, #tpu.memory_space<vmem>>, vector<64x512xf32>
    tpu.vector_store %arg11[%c0_9, %c0_10], %12 {strides = array<i32>} : memref<64x512xf32, #tpu.memory_space<vmem>>, vector<64x512xf32>,
    %c0_i32_11 = arith.constant 0 : i32
    %c8_i32_12 = arith.constant 8 : i32
    %14 = arith.muli %c0_i32_11, %c8_i32_12 : i32
    %15 = tpu.assume_multiple %14, 8 : i32
    %16 = arith.index_cast %15 : i32 to index
    %c0_13 = arith.constant 0 : index
    %17 = vector.load %arg11[%16, %c0_13] : memref<64x512xf32, #tpu.memory_space<vmem>>, vector<8x512xf32>
    %18 = arith.addf %17, %4 : vector<8x512xf32>
    %19 = vector.extract_strided_slice %18 {offsets = [0, 0], sizes = [8, 128], strides = [1, 1]} : vector<8x512xf32> to vector<8x128xf32>
    %20 = arith.negf %19 : vector<8x128xf32>
    %21 = math.exp %20 : vector<8x128xf32>
    %cst_14 = arith.constant 1.000000e+00 : f32
    %22 = vector.broadcast %cst_14 : f32 to vector<8x128xf32>
    %23 = arith.addf %22, %21 : vector<8x128xf32>
    %24 = arith.divf %22, %23 : vector<8x128xf32>
    %25 = vector.extract_strided_slice %18 {offsets = [0, 128], sizes = [8, 128], strides = [1, 1]} : vector<8x512xf32> to vector<8x128xf32>
    %26 = arith.negf %25 : vector<8x128xf32>
    %27 = math.exp %26 : vector<8x128xf32>
    %cst_15 = arith.constant 1.000000e+00 : f32
    %28 = vector.broadcast %cst_15 : f32 to vector<8x128xf32>
    %29 = arith.addf %28, %27 : vector<8x128xf32>
    %30 = arith.divf %28, %29 : vector<8x128xf32>
    %31 = vector.extract_strided_slice %18 {offsets = [0, 256], sizes = [8, 128], strides = [1, 1]} : vector<8x512xf32> to vector<8x128xf32>
    %32 = math.tanh %31 : vector<8x128xf32>
    %33 = vector.extract_strided_slice %18 {offsets = [0, 384], sizes = [8, 128], strides = [1, 1]} : vector<8x512xf32> to vector<8x128xf32>
    %34 = arith.negf %33 : vector<8x128xf32>
    %35 = math.exp %34 : vector<8x128xf32>
    %cst_16 = arith.constant 1.000000e+00 : f32
    %36 = vector.broadcast %cst_16 : f32 to vector<8x128xf32>
    %37 = arith.addf %36, %35 : vector<8x128xf32>
    %38 = arith.divf %36, %37 : vector<8x128xf32>
    %39 = arith.mulf %30, %3 : vector<8x128xf32>
    %40 = arith.mulf %24, %32 : vector<8x128xf32>
    %41 = arith.addf %39, %40 : vector<8x128xf32>
    %42 = math.tanh %41 : vector<8x128xf32>
    %43 = arith.mulf %38, %42 : vector<8x128xf32>
    %cst_17 = arith.constant dense<0.000000e+00> : vector<8x640xf32>
    %44 = tpu.matmul %43, %2, %cst_17 {dimension_numbers = #tpu.dot_dimension_numbers<[1], [0], [0], [1], [0, 0, 1, 1], [], []>} : vector<8x128xf32>, vector<128x640xf32>, vector<8x640xf32> -> vector<8x640xf32>
    %45 = vector.extract_strided_slice %44 {offsets = [0, 512], sizes = [8, 128], strides = [1, 1]} : vector<8x640xf32> to vector<8x128xf32>
    %c8_i32_18 = arith.constant 8 : i32
    %46 = arith.muli %c0_i32, %c8_i32_18 : i32
    %47 = arith.addi %46, %c0_i32_11 : i32
    %48 = arith.index_cast %47 : i32 to index
    %c0_19 = arith.constant 0 : index
    %c0_20 = arith.constant 0 : index
    %49 = vector.load %arg12[%48, %c0_19, %c0_20] : memref<8x8x128xf32, #tpu.memory_space<vmem>>, vector<1x8x128xf32>
    %50 = vector.shape_cast %49 : vector<1x8x128xf32> to vector<8x128xf32>
    %51 = vector.shape_cast %45 : vector<8x128xf32> to vector<1x8x128xf32>
    tpu.vector_store %arg12[%48, %c0_19, %c0_20], %51 {strides = array<i32>} : memref<8x8x128xf32, #tpu.memory_space<vmem>>, vector<1x8x128xf32>,
    %52 = vector.extract_strided_slice %44 {offsets = [0, 0], sizes = [8, 512], strides = [1, 1]} : vector<8x640xf32> to vector<8x512xf32>
    %c1_i32 = arith.constant 1 : i32
    %c8_i32_21 = arith.constant 8 : i32
    %53 = arith.muli %c1_i32, %c8_i32_21 : i32
    %54 = tpu.assume_multiple %53, 8 : i32
    %55 = arith.index_cast %54 : i32 to index
    %c0_22 = arith.constant 0 : index
    %56 = vector.load %arg11[%55, %c0_22] : memref<64x512xf32, #tpu.memory_space<vmem>>, vector<8x512xf32>
    %57 = arith.addf %56, %52 : vector<8x512xf32>
    %58 = vector.extract_strided_slice %57 {offsets = [0, 0], sizes = [8, 128], strides = [1, 1]} : vector<8x512xf32> to vector<8x128xf32>
    %59 = arith.negf %58 : vector<8x128xf32>
    %60 = math.exp %59 : vector<8x128xf32>
    %cst_23 = arith.constant 1.000000e+00 : f32
    %61 = vector.broadcast %cst_23 : f32 to vector<8x128xf32>
    %62 = arith.addf %61, %60 : vector<8x128xf32>
    %63 = arith.divf %61, %62 : vector<8x128xf32>
    %64 = vector.extract_strided_slice %57 {offsets = [0, 128], sizes = [8, 128], strides = [1, 1]} : vector<8x512xf32> to vector<8x128xf32>
    %65 = arith.negf %64 : vector<8x128xf32>
    %66 = math.exp %65 : vector<8x128xf32>
    %cst_24 = arith.constant 1.000000e+00 : f32
    %67 = vector.broadcast %cst_24 : f32 to vector<8x128xf32>
    %68 = arith.addf %67, %66 : vector<8x128xf32>
    %69 = arith.divf %67, %68 : vector<8x128xf32>
    %70 = vector.extract_strided_slice %57 {offsets = [0, 256], sizes = [8, 128], strides = [1, 1]} : vector<8x512xf32> to vector<8x128xf32>
    %71 = math.tanh %70 : vector<8x128xf32>
    %72 = vector.extract_strided_slice %57 {offsets = [0, 384], sizes = [8, 128], strides = [1, 1]} : vector<8x512xf32> to vector<8x128xf32>
    %73 = arith.negf %72 : vector<8x128xf32>
    %74 = math.exp %73 : vector<8x128xf32>
    %cst_25 = arith.constant 1.000000e+00 : f32
    %75 = vector.broadcast %cst_25 : f32 to vector<8x128xf32>
    %76 = arith.addf %75, %74 : vector<8x128xf32>
    %77 = arith.divf %75, %76 : vector<8x128xf32>
    %78 = arith.mulf %69, %41 : vector<8x128xf32>
    %79 = arith.mulf %63, %71 : vector<8x128xf32>
    %80 = arith.addf %78, %79 : vector<8x128xf32>
    %81 = math.tanh %80 : vector<8x128xf32>
    %82 = arith.mulf %77, %81 : vector<8x128xf32>
    %cst_26 = arith.constant dense<0.000000e+00> : vector<8x640xf32>
    %83 = tpu.matmul %82, %2, %cst_26 {dimension_numbers = #tpu.dot_dimension_numbers<[1], [0], [0], [1], [0, 0, 1, 1], [], []>} : vector<8x128xf32>, vector<128x640xf32>, vector<8x640xf32> -> vector<8x640xf32>
    %84 = vector.extract_strided_slice %83 {offsets = [0, 512], sizes = [8, 128], strides = [1, 1]} : vector<8x640xf32> to vector<8x128xf32>
    %c8_i32_27 = arith.constant 8 : i32
    %85 = arith.muli %c0_i32, %c8_i32_27 : i32
    %86 = arith.addi %85, %c1_i32 : i32
    %87 = arith.index_cast %86 : i32 to index
    %c0_28 = arith.constant 0 : index
    %c0_29 = arith.constant 0 : index
    %88 = vector.load %arg12[%87, %c0_28, %c0_29] : memref<8x8x128xf32, #tpu.memory_space<vmem>>, vector<1x8x128xf32>
    %89 = vector.shape_cast %88 : vector<1x8x128xf32> to vector<8x128xf32>
    %90 = vector.shape_cast %84 : vector<8x128xf32> to vector<1x8x128xf32>
    tpu.vector_store %arg12[%87, %c0_28, %c0_29], %90 {strides = array<i32>} : memref<8x8x128xf32, #tpu.memory_space<vmem>>, vector<1x8x128xf32>,
    %91 = vector.extract_strided_slice %83 {offsets = [0, 0], sizes = [8, 512], strides = [1, 1]} : vector<8x640xf32> to vector<8x512xf32>
    %c2_i32 = arith.constant 2 : i32
    %c8_i32_30 = arith.constant 8 : i32
    %92 = arith.muli %c2_i32, %c8_i32_30 : i32
    %93 = tpu.assume_multiple %92, 8 : i32
    %94 = arith.index_cast %93 : i32 to index
    %c0_31 = arith.constant 0 : index
    %95 = vector.load %arg11[%94, %c0_31] : memref<64x512xf32, #tpu.memory_space<vmem>>, vector<8x512xf32>
    %96 = arith.addf %95, %91 : vector<8x512xf32>
    %97 = vector.extract_strided_slice %96 {offsets = [0, 0], sizes = [8, 128], strides = [1, 1]} : vector<8x512xf32> to vector<8x128xf32>
    %98 = arith.negf %97 : vector<8x128xf32>
    %99 = math.exp %98 : vector<8x128xf32>
    %cst_32 = arith.constant 1.000000e+00 : f32
    %100 = vector.broadcast %cst_32 : f32 to vector<8x128xf32>
    %101 = arith.addf %100, %99 : vector<8x128xf32>
    %102 = arith.divf %100, %101 : vector<8x128xf32>
    %103 = vector.extract_strided_slice %96 {offsets = [0, 128], sizes = [8, 128], strides = [1, 1]} : vector<8x512xf32> to vector<8x128xf32>
    %104 = arith.negf %103 : vector<8x128xf32>
    %105 = math.exp %104 : vector<8x128xf32>
    %cst_33 = arith.constant 1.000000e+00 : f32
    %106 = vector.broadcast %cst_33 : f32 to vector<8x128xf32>
    %107 = arith.addf %106, %105 : vector<8x128xf32>
    %108 = arith.divf %106, %107 : vector<8x128xf32>
    %109 = vector.extract_strided_slice %96 {offsets = [0, 256], sizes = [8, 128], strides = [1, 1]} : vector<8x512xf32> to vector<8x128xf32>
    %110 = math.tanh %109 : vector<8x128xf32>
    %111 = vector.extract_strided_slice %96 {offsets = [0, 384], sizes = [8, 128], strides = [1, 1]} : vector<8x512xf32> to vector<8x128xf32>
    %112 = arith.negf %111 : vector<8x128xf32>
    %113 = math.exp %112 : vector<8x128xf32>
    %cst_34 = arith.constant 1.000000e+00 : f32
    %114 = vector.broadcast %cst_34 : f32 to vector<8x128xf32>
    %115 = arith.addf %114, %113 : vector<8x128xf32>
    %116 = arith.divf %114, %115 : vector<8x128xf32>
    %117 = arith.mulf %108, %80 : vector<8x128xf32>
    %118 = arith.mulf %102, %110 : vector<8x128xf32>
    %119 = arith.addf %117, %118 : vector<8x128xf32>
    %120 = math.tanh %119 : vector<8x128xf32>
    %121 = arith.mulf %116, %120 : vector<8x128xf32>
    %cst_35 = arith.constant dense<0.000000e+00> : vector<8x640xf32>
    %122 = tpu.matmul %121, %2, %cst_35 {dimension_numbers = #tpu.dot_dimension_numbers<[1], [0], [0], [1], [0, 0, 1, 1], [], []>} : vector<8x128xf32>, vector<128x640xf32>, vector<8x640xf32> -> vector<8x640xf32>
    %123 = vector.extract_strided_slice %122 {offsets = [0, 512], sizes = [8, 128], strides = [1, 1]} : vector<8x640xf32> to vector<8x128xf32>
    %c8_i32_36 = arith.constant 8 : i32
    %124 = arith.muli %c0_i32, %c8_i32_36 : i32
    %125 = arith.addi %124, %c2_i32 : i32
    %126 = arith.index_cast %125 : i32 to index
    %c0_37 = arith.constant 0 : index
    %c0_38 = arith.constant 0 : index
    %127 = vector.load %arg12[%126, %c0_37, %c0_38] : memref<8x8x128xf32, #tpu.memory_space<vmem>>, vector<1x8x128xf32>
    %128 = vector.shape_cast %127 : vector<1x8x128xf32> to vector<8x128xf32>
    %129 = vector.shape_cast %123 : vector<8x128xf32> to vector<1x8x128xf32>
    tpu.vector_store %arg12[%126, %c0_37, %c0_38], %129 {strides = array<i32>} : memref<8x8x128xf32, #tpu.memory_space<vmem>>, vector<1x8x128xf32>,
    %130 = vector.extract_strided_slice %122 {offsets = [0, 0], sizes = [8, 512], strides = [1, 1]} : vector<8x640xf32> to vector<8x512xf32>
    %c3_i32 = arith.constant 3 : i32
    %c8_i32_39 = arith.constant 8 : i32
    %131 = arith.muli %c3_i32, %c8_i32_39 : i32
    %132 = tpu.assume_multiple %131, 8 : i32
    %133 = arith.index_cast %132 : i32 to index
    %c0_40 = arith.constant 0 : index
    %134 = vector.load %arg11[%133, %c0_40] : memref<64x512xf32, #tpu.memory_space<vmem>>, vector<8x512xf32>
    %135 = arith.addf %134, %130 : vector<8x512xf32>
    %136 = vector.extract_strided_slice %135 {offsets = [0, 0], sizes = [8, 128], strides = [1, 1]} : vector<8x512xf32> to vector<8x128xf32>
    %137 = arith.negf %136 : vector<8x128xf32>
    %138 = math.exp %137 : vector<8x128xf32>
    %cst_41 = arith.constant 1.000000e+00 : f32
    %139 = vector.broadcast %cst_41 : f32 to vector<8x128xf32>
    %140 = arith.addf %139, %138 : vector<8x128xf32>
    %141 = arith.divf %139, %140 : vector<8x128xf32>
    %142 = vector.extract_strided_slice %135 {offsets = [0, 128], sizes = [8, 128], strides = [1, 1]} : vector<8x512xf32> to vector<8x128xf32>
    %143 = arith.negf %142 : vector<8x128xf32>
    %144 = math.exp %143 : vector<8x128xf32>
    %cst_42 = arith.constant 1.000000e+00 : f32
    %145 = vector.broadcast %cst_42 : f32 to vector<8x128xf32>
    %146 = arith.addf %145, %144 : vector<8x128xf32>
    %147 = arith.divf %145, %146 : vector<8x128xf32>
    %148 = vector.extract_strided_slice %135 {offsets = [0, 256], sizes = [8, 128], strides = [1, 1]} : vector<8x512xf32> to vector<8x128xf32>
    %149 = math.tanh %148 : vector<8x128xf32>
    %150 = vector.extract_strided_slice %135 {offsets = [0, 384], sizes = [8, 128], strides = [1, 1]} : vector<8x512xf32> to vector<8x128xf32>
    %151 = arith.negf %150 : vector<8x128xf32>
    %152 = math.exp %151 : vector<8x128xf32>
    %cst_43 = arith.constant 1.000000e+00 : f32
    %153 = vector.broadcast %cst_43 : f32 to vector<8x128xf32>
    %154 = arith.addf %153, %152 : vector<8x128xf32>
    %155 = arith.divf %153, %154 : vector<8x128xf32>
    %156 = arith.mulf %147, %119 : vector<8x128xf32>
    %157 = arith.mulf %141, %149 : vector<8x128xf32>
    %158 = arith.addf %156, %157 : vector<8x128xf32>
    %159 = math.tanh %158 : vector<8x128xf32>
    %160 = arith.mulf %155, %159 : vector<8x128xf32>
    %cst_44 = arith.constant dense<0.000000e+00> : vector<8x640xf32>
    %161 = tpu.matmul %160, %2, %cst_44 {dimension_numbers = #tpu.dot_dimension_numbers<[1], [0], [0], [1], [0, 0, 1, 1], [], []>} : vector<8x128xf32>, vector<128x640xf32>, vector<8x640xf32> -> vector<8x640xf32>
    %162 = vector.extract_strided_slice %161 {offsets = [0, 512], sizes = [8, 128], strides = [1, 1]} : vector<8x640xf32> to vector<8x128xf32>
    %c8_i32_45 = arith.constant 8 : i32
    %163 = arith.muli %c0_i32, %c8_i32_45 : i32
    %164 = arith.addi %163, %c3_i32 : i32
    %165 = arith.index_cast %164 : i32 to index
    %c0_46 = arith.constant 0 : index
    %c0_47 = arith.constant 0 : index
    %166 = vector.load %arg12[%165, %c0_46, %c0_47] : memref<8x8x128xf32, #tpu.memory_space<vmem>>, vector<1x8x128xf32>
    %167 = vector.shape_cast %166 : vector<1x8x128xf32> to vector<8x128xf32>
    %168 = vector.shape_cast %162 : vector<8x128xf32> to vector<1x8x128xf32>
    tpu.vector_store %arg12[%165, %c0_46, %c0_47], %168 {strides = array<i32>} : memref<8x8x128xf32, #tpu.memory_space<vmem>>, vector<1x8x128xf32>,
    %169 = vector.extract_strided_slice %161 {offsets = [0, 0], sizes = [8, 512], strides = [1, 1]} : vector<8x640xf32> to vector<8x512xf32>
    %c4_i32 = arith.constant 4 : i32
    %c8_i32_48 = arith.constant 8 : i32
    %170 = arith.muli %c4_i32, %c8_i32_48 : i32
    %171 = tpu.assume_multiple %170, 8 : i32
    %172 = arith.index_cast %171 : i32 to index
    %c0_49 = arith.constant 0 : index
    %173 = vector.load %arg11[%172, %c0_49] : memref<64x512xf32, #tpu.memory_space<vmem>>, vector<8x512xf32>
    %174 = arith.addf %173, %169 : vector<8x512xf32>
    %175 = vector.extract_strided_slice %174 {offsets = [0, 0], sizes = [8, 128], strides = [1, 1]} : vector<8x512xf32> to vector<8x128xf32>
    %176 = arith.negf %175 : vector<8x128xf32>
    %177 = math.exp %176 : vector<8x128xf32>
    %cst_50 = arith.constant 1.000000e+00 : f32
    %178 = vector.broadcast %cst_50 : f32 to vector<8x128xf32>
    %179 = arith.addf %178, %177 : vector<8x128xf32>
    %180 = arith.divf %178, %179 : vector<8x128xf32>
    %181 = vector.extract_strided_slice %174 {offsets = [0, 128], sizes = [8, 128], strides = [1, 1]} : vector<8x512xf32> to vector<8x128xf32>
    %182 = arith.negf %181 : vector<8x128xf32>
    %183 = math.exp %182 : vector<8x128xf32>
    %cst_51 = arith.constant 1.000000e+00 : f32
    %184 = vector.broadcast %cst_51 : f32 to vector<8x128xf32>
    %185 = arith.addf %184, %183 : vector<8x128xf32>
    %186 = arith.divf %184, %185 : vector<8x128xf32>
    %187 = vector.extract_strided_slice %174 {offsets = [0, 256], sizes = [8, 128], strides = [1, 1]} : vector<8x512xf32> to vector<8x128xf32>
    %188 = math.tanh %187 : vector<8x128xf32>
    %189 = vector.extract_strided_slice %174 {offsets = [0, 384], sizes = [8, 128], strides = [1, 1]} : vector<8x512xf32> to vector<8x128xf32>
    %190 = arith.negf %189 : vector<8x128xf32>
    %191 = math.exp %190 : vector<8x128xf32>
    %cst_52 = arith.constant 1.000000e+00 : f32
    %192 = vector.broadcast %cst_52 : f32 to vector<8x128xf32>
    %193 = arith.addf %192, %191 : vector<8x128xf32>
    %194 = arith.divf %192, %193 : vector<8x128xf32>
    %195 = arith.mulf %186, %158 : vector<8x128xf32>
    %196 = arith.mulf %180, %188 : vector<8x128xf32>
    %197 = arith.addf %195, %196 : vector<8x128xf32>
    %198 = math.tanh %197 : vector<8x128xf32>
    %199 = arith.mulf %194, %198 : vector<8x128xf32>
    %cst_53 = arith.constant dense<0.000000e+00> : vector<8x640xf32>
    %200 = tpu.matmul %199, %2, %cst_53 {dimension_numbers = #tpu.dot_dimension_numbers<[1], [0], [0], [1], [0, 0, 1, 1], [], []>} : vector<8x128xf32>, vector<128x640xf32>, vector<8x640xf32> -> vector<8x640xf32>
    %201 = vector.extract_strided_slice %200 {offsets = [0, 512], sizes = [8, 128], strides = [1, 1]} : vector<8x640xf32> to vector<8x128xf32>
    %c8_i32_54 = arith.constant 8 : i32
    %202 = arith.muli %c0_i32, %c8_i32_54 : i32
    %203 = arith.addi %202, %c4_i32 : i32
    %204 = arith.index_cast %203 : i32 to index
    %c0_55 = arith.constant 0 : index
    %c0_56 = arith.constant 0 : index
    %205 = vector.load %arg12[%204, %c0_55, %c0_56] : memref<8x8x128xf32, #tpu.memory_space<vmem>>, vector<1x8x128xf32>
    %206 = vector.shape_cast %205 : vector<1x8x128xf32> to vector<8x128xf32>
    %207 = vector.shape_cast %201 : vector<8x128xf32> to vector<1x8x128xf32>
    tpu.vector_store %arg12[%204, %c0_55, %c0_56], %207 {strides = array<i32>} : memref<8x8x128xf32, #tpu.memory_space<vmem>>, vector<1x8x128xf32>,
    %208 = vector.extract_strided_slice %200 {offsets = [0, 0], sizes = [8, 512], strides = [1, 1]} : vector<8x640xf32> to vector<8x512xf32>
    %c5_i32 = arith.constant 5 : i32
    %c8_i32_57 = arith.constant 8 : i32
    %209 = arith.muli %c5_i32, %c8_i32_57 : i32
    %210 = tpu.assume_multiple %209, 8 : i32
    %211 = arith.index_cast %210 : i32 to index
    %c0_58 = arith.constant 0 : index
    %212 = vector.load %arg11[%211, %c0_58] : memref<64x512xf32, #tpu.memory_space<vmem>>, vector<8x512xf32>
    %213 = arith.addf %212, %208 : vector<8x512xf32>
    %214 = vector.extract_strided_slice %213 {offsets = [0, 0], sizes = [8, 128], strides = [1, 1]} : vector<8x512xf32> to vector<8x128xf32>
    %215 = arith.negf %214 : vector<8x128xf32>
    %216 = math.exp %215 : vector<8x128xf32>
    %cst_59 = arith.constant 1.000000e+00 : f32
    %217 = vector.broadcast %cst_59 : f32 to vector<8x128xf32>
    %218 = arith.addf %217, %216 : vector<8x128xf32>
    %219 = arith.divf %217, %218 : vector<8x128xf32>
    %220 = vector.extract_strided_slice %213 {offsets = [0, 128], sizes = [8, 128], strides = [1, 1]} : vector<8x512xf32> to vector<8x128xf32>
    %221 = arith.negf %220 : vector<8x128xf32>
    %222 = math.exp %221 : vector<8x128xf32>
    %cst_60 = arith.constant 1.000000e+00 : f32
    %223 = vector.broadcast %cst_60 : f32 to vector<8x128xf32>
    %224 = arith.addf %223, %222 : vector<8x128xf32>
    %225 = arith.divf %223, %224 : vector<8x128xf32>
    %226 = vector.extract_strided_slice %213 {offsets = [0, 256], sizes = [8, 128], strides = [1, 1]} : vector<8x512xf32> to vector<8x128xf32>
    %227 = math.tanh %226 : vector<8x128xf32>
    %228 = vector.extract_strided_slice %213 {offsets = [0, 384], sizes = [8, 128], strides = [1, 1]} : vector<8x512xf32> to vector<8x128xf32>
    %229 = arith.negf %228 : vector<8x128xf32>
    %230 = math.exp %229 : vector<8x128xf32>
    %cst_61 = arith.constant 1.000000e+00 : f32
    %231 = vector.broadcast %cst_61 : f32 to vector<8x128xf32>
    %232 = arith.addf %231, %230 : vector<8x128xf32>
    %233 = arith.divf %231, %232 : vector<8x128xf32>
    %234 = arith.mulf %225, %197 : vector<8x128xf32>
    %235 = arith.mulf %219, %227 : vector<8x128xf32>
    %236 = arith.addf %234, %235 : vector<8x128xf32>
    %237 = math.tanh %236 : vector<8x128xf32>
    %238 = arith.mulf %233, %237 : vector<8x128xf32>
    %cst_62 = arith.constant dense<0.000000e+00> : vector<8x640xf32>
    %239 = tpu.matmul %238, %2, %cst_62 {dimension_numbers = #tpu.dot_dimension_numbers<[1], [0], [0], [1], [0, 0, 1, 1], [], []>} : vector<8x128xf32>, vector<128x640xf32>, vector<8x640xf32> -> vector<8x640xf32>
    %240 = vector.extract_strided_slice %239 {offsets = [0, 512], sizes = [8, 128], strides = [1, 1]} : vector<8x640xf32> to vector<8x128xf32>
    %c8_i32_63 = arith.constant 8 : i32
    %241 = arith.muli %c0_i32, %c8_i32_63 : i32
    %242 = arith.addi %241, %c5_i32 : i32
    %243 = arith.index_cast %242 : i32 to index
    %c0_64 = arith.constant 0 : index
    %c0_65 = arith.constant 0 : index
    %244 = vector.load %arg12[%243, %c0_64, %c0_65] : memref<8x8x128xf32, #tpu.memory_space<vmem>>, vector<1x8x128xf32>
    %245 = vector.shape_cast %244 : vector<1x8x128xf32> to vector<8x128xf32>
    %246 = vector.shape_cast %240 : vector<8x128xf32> to vector<1x8x128xf32>
    tpu.vector_store %arg12[%243, %c0_64, %c0_65], %246 {strides = array<i32>} : memref<8x8x128xf32, #tpu.memory_space<vmem>>, vector<1x8x128xf32>,
    %247 = vector.extract_strided_slice %239 {offsets = [0, 0], sizes = [8, 512], strides = [1, 1]} : vector<8x640xf32> to vector<8x512xf32>
    %c6_i32 = arith.constant 6 : i32
    %c8_i32_66 = arith.constant 8 : i32
    %248 = arith.muli %c6_i32, %c8_i32_66 : i32
    %249 = tpu.assume_multiple %248, 8 : i32
    %250 = arith.index_cast %249 : i32 to index
    %c0_67 = arith.constant 0 : index
    %251 = vector.load %arg11[%250, %c0_67] : memref<64x512xf32, #tpu.memory_space<vmem>>, vector<8x512xf32>
    %252 = arith.addf %251, %247 : vector<8x512xf32>
    %253 = vector.extract_strided_slice %252 {offsets = [0, 0], sizes = [8, 128], strides = [1, 1]} : vector<8x512xf32> to vector<8x128xf32>
    %254 = arith.negf %253 : vector<8x128xf32>
    %255 = math.exp %254 : vector<8x128xf32>
    %cst_68 = arith.constant 1.000000e+00 : f32
    %256 = vector.broadcast %cst_68 : f32 to vector<8x128xf32>
    %257 = arith.addf %256, %255 : vector<8x128xf32>
    %258 = arith.divf %256, %257 : vector<8x128xf32>
    %259 = vector.extract_strided_slice %252 {offsets = [0, 128], sizes = [8, 128], strides = [1, 1]} : vector<8x512xf32> to vector<8x128xf32>
    %260 = arith.negf %259 : vector<8x128xf32>
    %261 = math.exp %260 : vector<8x128xf32>
    %cst_69 = arith.constant 1.000000e+00 : f32
    %262 = vector.broadcast %cst_69 : f32 to vector<8x128xf32>
    %263 = arith.addf %262, %261 : vector<8x128xf32>
    %264 = arith.divf %262, %263 : vector<8x128xf32>
    %265 = vector.extract_strided_slice %252 {offsets = [0, 256], sizes = [8, 128], strides = [1, 1]} : vector<8x512xf32> to vector<8x128xf32>
    %266 = math.tanh %265 : vector<8x128xf32>
    %267 = vector.extract_strided_slice %252 {offsets = [0, 384], sizes = [8, 128], strides = [1, 1]} : vector<8x512xf32> to vector<8x128xf32>
    %268 = arith.negf %267 : vector<8x128xf32>
    %269 = math.exp %268 : vector<8x128xf32>
    %cst_70 = arith.constant 1.000000e+00 : f32
    %270 = vector.broadcast %cst_70 : f32 to vector<8x128xf32>
    %271 = arith.addf %270, %269 : vector<8x128xf32>
    %272 = arith.divf %270, %271 : vector<8x128xf32>
    %273 = arith.mulf %264, %236 : vector<8x128xf32>
    %274 = arith.mulf %258, %266 : vector<8x128xf32>
    %275 = arith.addf %273, %274 : vector<8x128xf32>
    %276 = math.tanh %275 : vector<8x128xf32>
    %277 = arith.mulf %272, %276 : vector<8x128xf32>
    %cst_71 = arith.constant dense<0.000000e+00> : vector<8x640xf32>
    %278 = tpu.matmul %277, %2, %cst_71 {dimension_numbers = #tpu.dot_dimension_numbers<[1], [0], [0], [1], [0, 0, 1, 1], [], []>} : vector<8x128xf32>, vector<128x640xf32>, vector<8x640xf32> -> vector<8x640xf32>
    %279 = vector.extract_strided_slice %278 {offsets = [0, 512], sizes = [8, 128], strides = [1, 1]} : vector<8x640xf32> to vector<8x128xf32>
    %c8_i32_72 = arith.constant 8 : i32
    %280 = arith.muli %c0_i32, %c8_i32_72 : i32
    %281 = arith.addi %280, %c6_i32 : i32
    %282 = arith.index_cast %281 : i32 to index
    %c0_73 = arith.constant 0 : index
    %c0_74 = arith.constant 0 : index
    %283 = vector.load %arg12[%282, %c0_73, %c0_74] : memref<8x8x128xf32, #tpu.memory_space<vmem>>, vector<1x8x128xf32>
    %284 = vector.shape_cast %283 : vector<1x8x128xf32> to vector<8x128xf32>
    %285 = vector.shape_cast %279 : vector<8x128xf32> to vector<1x8x128xf32>
    tpu.vector_store %arg12[%282, %c0_73, %c0_74], %285 {strides = array<i32>} : memref<8x8x128xf32, #tpu.memory_space<vmem>>, vector<1x8x128xf32>,
    %286 = vector.extract_strided_slice %278 {offsets = [0, 0], sizes = [8, 512], strides = [1, 1]} : vector<8x640xf32> to vector<8x512xf32>
    %c7_i32 = arith.constant 7 : i32
    %c8_i32_75 = arith.constant 8 : i32
    %287 = arith.muli %c7_i32, %c8_i32_75 : i32
    %288 = tpu.assume_multiple %287, 8 : i32
    %289 = arith.index_cast %288 : i32 to index
    %c0_76 = arith.constant 0 : index
    %290 = vector.load %arg11[%289, %c0_76] : memref<64x512xf32, #tpu.memory_space<vmem>>, vector<8x512xf32>
    %291 = arith.addf %290, %286 : vector<8x512xf32>
    %292 = vector.extract_strided_slice %291 {offsets = [0, 0], sizes = [8, 128], strides = [1, 1]} : vector<8x512xf32> to vector<8x128xf32>
    %293 = arith.negf %292 : vector<8x128xf32>
    %294 = math.exp %293 : vector<8x128xf32>
    %cst_77 = arith.constant 1.000000e+00 : f32
    %295 = vector.broadcast %cst_77 : f32 to vector<8x128xf32>
    %296 = arith.addf %295, %294 : vector<8x128xf32>
    %297 = arith.divf %295, %296 : vector<8x128xf32>
    %298 = vector.extract_strided_slice %291 {offsets = [0, 128], sizes = [8, 128], strides = [1, 1]} : vector<8x512xf32> to vector<8x128xf32>
    %299 = arith.negf %298 : vector<8x128xf32>
    %300 = math.exp %299 : vector<8x128xf32>
    %cst_78 = arith.constant 1.000000e+00 : f32
    %301 = vector.broadcast %cst_78 : f32 to vector<8x128xf32>
    %302 = arith.addf %301, %300 : vector<8x128xf32>
    %303 = arith.divf %301, %302 : vector<8x128xf32>
    %304 = vector.extract_strided_slice %291 {offsets = [0, 256], sizes = [8, 128], strides = [1, 1]} : vector<8x512xf32> to vector<8x128xf32>
    %305 = math.tanh %304 : vector<8x128xf32>
    %306 = vector.extract_strided_slice %291 {offsets = [0, 384], sizes = [8, 128], strides = [1, 1]} : vector<8x512xf32> to vector<8x128xf32>
    %307 = arith.negf %306 : vector<8x128xf32>
    %308 = math.exp %307 : vector<8x128xf32>
    %cst_79 = arith.constant 1.000000e+00 : f32
    %309 = vector.broadcast %cst_79 : f32 to vector<8x128xf32>
    %310 = arith.addf %309, %308 : vector<8x128xf32>
    %311 = arith.divf %309, %310 : vector<8x128xf32>
    %312 = arith.mulf %303, %275 : vector<8x128xf32>
    %313 = arith.mulf %297, %305 : vector<8x128xf32>
    %314 = arith.addf %312, %313 : vector<8x128xf32>
    %315 = math.tanh %314 : vector<8x128xf32>
    %316 = arith.mulf %311, %315 : vector<8x128xf32>
    %cst_80 = arith.constant dense<0.000000e+00> : vector<8x640xf32>
    %317 = tpu.matmul %316, %2, %cst_80 {dimension_numbers = #tpu.dot_dimension_numbers<[1], [0], [0], [1], [0, 0, 1, 1], [], []>} : vector<8x128xf32>, vector<128x640xf32>, vector<8x640xf32> -> vector<8x640xf32>
    %318 = vector.extract_strided_slice %317 {offsets = [0, 512], sizes = [8, 128], strides = [1, 1]} : vector<8x640xf32> to vector<8x128xf32>
    %c8_i32_81 = arith.constant 8 : i32
    %319 = arith.muli %c0_i32, %c8_i32_81 : i32
    %320 = arith.addi %319, %c7_i32 : i32
    %321 = arith.index_cast %320 : i32 to index
    %c0_82 = arith.constant 0 : index
    %c0_83 = arith.constant 0 : index
    %322 = vector.load %arg12[%321, %c0_82, %c0_83] : memref<8x8x128xf32, #tpu.memory_space<vmem>>, vector<1x8x128xf32>
    %323 = vector.shape_cast %322 : vector<1x8x128xf32> to vector<8x128xf32>
    %324 = vector.shape_cast %318 : vector<8x128xf32> to vector<1x8x128xf32>
    tpu.vector_store %arg12[%321, %c0_82, %c0_83], %324 {strides = array<i32>} : memref<8x8x128xf32, #tpu.memory_space<vmem>>, vector<1x8x128xf32>,
    %325 = vector.extract_strided_slice %317 {offsets = [0, 0], sizes = [8, 512], strides = [1, 1]} : vector<8x640xf32> to vector<8x512xf32>
    %c8_i32_84 = arith.constant 8 : i32
    %c1_i32_85 = arith.constant 1 : i32
    %c0_86 = arith.constant 0 : index
    %c0_87 = arith.constant 0 : index
    %326 = vector.load %arg8[%c0_86, %c0_87] : memref<128x640xf32, #tpu.memory_space<vmem>>, vector<128x640xf32>
    %c0_88 = arith.constant 0 : index
    %c0_89 = arith.constant 0 : index
    %327 = vector.load %arg9[%c0_88, %c0_89] : memref<1x128xf32, #tpu.memory_space<vmem>>, vector<1x128xf32>
    %c0_90 = arith.constant 0 : index
    %c0_91 = arith.constant 0 : index
    %328 = vector.load %arg2[%c0_90, %c0_91] : memref<8x32xf32, #tpu.memory_space<vmem>>, vector<8x32xf32>
    %c0_92 = arith.constant 0 : index
    %c0_93 = arith.constant 0 : index
    %329 = vector.load %arg6[%c0_92, %c0_93] : memref<32x512xf32, #tpu.memory_space<vmem>>, vector<32x512xf32>
    %cst_94 = arith.constant dense<0.000000e+00> : vector<8x512xf32>
    %330 = tpu.matmul %328, %329, %cst_94 {dimension_numbers = #tpu.dot_dimension_numbers<[1], [0], [0], [1], [0, 0, 1, 1], [], []>} : vector<8x32xf32>, vector<32x512xf32>, vector<8x512xf32> -> vector<8x512xf32>
    %c0_95 = arith.constant 0 : index
    %c0_96 = arith.constant 0 : index
    %331 = vector.load %arg7[%c0_95, %c0_96] : memref<1x512xf32, #tpu.memory_space<vmem>>, vector<1x512xf32>
    %332 = vector.broadcast %331 : vector<1x512xf32> to vector<8x512xf32>
    %333 = arith.addf %330, %332 : vector<8x512xf32>
    %c0_i32_97 = arith.constant 0 : i32
    %334 = arith.addf %333, %4 : vector<8x512xf32>
    %335 = vector.extract_strided_slice %334 {offsets = [0, 0], sizes = [8, 128], strides = [1, 1]} : vector<8x512xf32> to vector<8x128xf32>
    %336 = arith.negf %335 : vector<8x128xf32>
    %337 = math.exp %336 : vector<8x128xf32>
    %cst_98 = arith.constant 1.000000e+00 : f32
    %338 = vector.broadcast %cst_98 : f32 to vector<8x128xf32>
    %339 = arith.addf %338, %337 : vector<8x128xf32>
    %340 = arith.divf %338, %339 : vector<8x128xf32>
    %341 = vector.extract_strided_slice %334 {offsets = [0, 128], sizes = [8, 128], strides = [1, 1]} : vector<8x512xf32> to vector<8x128xf32>
    %342 = arith.negf %341 : vector<8x128xf32>
    %343 = math.exp %342 : vector<8x128xf32>
    %cst_99 = arith.constant 1.000000e+00 : f32
    %344 = vector.broadcast %cst_99 : f32 to vector<8x128xf32>
    %345 = arith.addf %344, %343 : vector<8x128xf32>
    %346 = arith.divf %344, %345 : vector<8x128xf32>
    %347 = vector.extract_strided_slice %334 {offsets = [0, 256], sizes = [8, 128], strides = [1, 1]} : vector<8x512xf32> to vector<8x128xf32>
    %348 = math.tanh %347 : vector<8x128xf32>
    %349 = vector.extract_strided_slice %334 {offsets = [0, 384], sizes = [8, 128], strides = [1, 1]} : vector<8x512xf32> to vector<8x128xf32>
    %350 = arith.negf %349 : vector<8x128xf32>
    %351 = math.exp %350 : vector<8x128xf32>
    %cst_100 = arith.constant 1.000000e+00 : f32
    %352 = vector.broadcast %cst_100 : f32 to vector<8x128xf32>
    %353 = arith.addf %352, %351 : vector<8x128xf32>
    %354 = arith.divf %352, %353 : vector<8x128xf32>
    %355 = arith.mulf %346, %316 : vector<8x128xf32>
    %356 = arith.mulf %340, %348 : vector<8x128xf32>
    %357 = arith.addf %355, %356 : vector<8x128xf32>
    %358 = math.tanh %357 : vector<8x128xf32>
    %359 = arith.mulf %354, %358 : vector<8x128xf32>
    %cst_101 = arith.constant dense<0.000000e+00> : vector<8x640xf32>
    %360 = tpu.matmul %359, %326, %cst_101 {dimension_numbers = #tpu.dot_dimension_numbers<[1], [0], [0], [1], [0, 0, 1, 1], [], []>} : vector<8x128xf32>, vector<128x640xf32>, vector<8x640xf32> -> vector<8x640xf32>
    %361 = vector.extract_strided_slice %360 {offsets = [0, 512], sizes = [8, 128], strides = [1, 1]} : vector<8x640xf32> to vector<8x128xf32>
    %c0_102 = arith.constant 0 : index
    %c0_103 = arith.constant 0 : index
    %c0_104 = arith.constant 0 : index
    %362 = vector.load %arg12[%c0_102, %c0_103, %c0_104] : memref<8x8x128xf32, #tpu.memory_space<vmem>>, vector<8x8x128xf32>
    %363 = vector.shape_cast %361 : vector<8x128xf32> to vector<1x8x128xf32>
    %364 = vector.broadcast %363 : vector<1x8x128xf32> to vector<8x8x128xf32>
    %365 = arith.addf %362, %364 : vector<8x8x128xf32>
    %366 = math.tanh %365 : vector<8x8x128xf32>
    %367 = vector.shape_cast %327 : vector<1x128xf32> to vector<1x1x128xf32>
    %368 = vector.broadcast %367 : vector<1x1x128xf32> to vector<8x8x128xf32>
    %369 = arith.mulf %366, %368 : vector<8x8x128xf32>
    %cst_105 = arith.constant dense<0.000000e+00> : vector<8x8xf32>
    %370 = vector.multi_reduction <add>, %369, %cst_105 [2] : vector<8x8x128xf32> to vector<8x8xf32>
    %371 = tpu.transpose %370, [1, 0] : vector<8x8xf32> -> vector<8x8xf32>
    %cst_106 = arith.constant dense<0xFF800000> : vector<8xf32>
    %372 = vector.multi_reduction <maximumf>, %371, %cst_106 [1] : vector<8x8xf32> to vector<8xf32>
    %373 = vector.shape_cast %372 : vector<8xf32> to vector<8x1xf32>
    %374 = vector.broadcast %373 : vector<8x1xf32> to vector<8x8xf32>
    %375 = arith.subf %371, %374 : vector<8x8xf32>
    %376 = math.exp %375 : vector<8x8xf32>
    %cst_107 = arith.constant dense<0.000000e+00> : vector<8xf32>
    %377 = vector.multi_reduction <add>, %376, %cst_107 [1] : vector<8x8xf32> to vector<8xf32>
    %378 = vector.shape_cast %377 : vector<8xf32> to vector<8x1xf32>
    %379 = math.log %378 : vector<8x1xf32>
    %380 = arith.addf %373, %379 : vector<8x1xf32>
    %381 = vector.broadcast %380 : vector<8x1xf32> to vector<8x8xf32>
    %382 = arith.subf %371, %381 : vector<8x8xf32>
    %cst_108 = arith.constant 0.000000e+00 : f32
    %383 = vector.broadcast %cst_108 : f32 to vector<8x8xf32>
    %384 = arith.subf %383, %382 : vector<8x8xf32>
    %cst_109 = arith.constant 0.000000e+00 : f32
    %385 = vector.broadcast %cst_109 : f32 to vector<8x120xf32>
    %386 = tpu.concatenate %384, %385 in 1 : vector<8x8xf32>, vector<8x120xf32> -> vector<8x128xf32>
    %387 = arith.index_cast %c0_i32_97 : i32 to index
    %c0_110 = arith.constant 0 : index
    %c0_111 = arith.constant 0 : index
    %388 = vector.load %arg10[%387, %c0_110, %c0_111] : memref<4x8x128xf32, #tpu.memory_space<vmem>>, vector<1x8x128xf32>
    %389 = vector.shape_cast %388 : vector<1x8x128xf32> to vector<8x128xf32>
    %390 = vector.shape_cast %386 : vector<8x128xf32> to vector<1x8x128xf32>
    tpu.vector_store %arg10[%387, %c0_110, %c0_111], %390 {strides = array<i32>} : memref<4x8x128xf32, #tpu.memory_space<vmem>>, vector<1x8x128xf32>,
    %391 = vector.extract_strided_slice %360 {offsets = [0, 0], sizes = [8, 512], strides = [1, 1]} : vector<8x640xf32> to vector<8x512xf32>
    %c1_i32_112 = arith.constant 1 : i32
    %392 = arith.addf %333, %391 : vector<8x512xf32>
    %393 = vector.extract_strided_slice %392 {offsets = [0, 0], sizes = [8, 128], strides = [1, 1]} : vector<8x512xf32> to vector<8x128xf32>
    %394 = arith.negf %393 : vector<8x128xf32>
    %395 = math.exp %394 : vector<8x128xf32>
    %cst_113 = arith.constant 1.000000e+00 : f32
    %396 = vector.broadcast %cst_113 : f32 to vector<8x128xf32>
    %397 = arith.addf %396, %395 : vector<8x128xf32>
    %398 = arith.divf %396, %397 : vector<8x128xf32>
    %399 = vector.extract_strided_slice %392 {offsets = [0, 128], sizes = [8, 128], strides = [1, 1]} : vector<8x512xf32> to vector<8x128xf32>
    %400 = arith.negf %399 : vector<8x128xf32>
    %401 = math.exp %400 : vector<8x128xf32>
    %cst_114 = arith.constant 1.000000e+00 : f32
    %402 = vector.broadcast %cst_114 : f32 to vector<8x128xf32>
    %403 = arith.addf %402, %401 : vector<8x128xf32>
    %404 = arith.divf %402, %403 : vector<8x128xf32>
    %405 = vector.extract_strided_slice %392 {offsets = [0, 256], sizes = [8, 128], strides = [1, 1]} : vector<8x512xf32> to vector<8x128xf32>
    %406 = math.tanh %405 : vector<8x128xf32>
    %407 = vector.extract_strided_slice %392 {offsets = [0, 384], sizes = [8, 128], strides = [1, 1]} : vector<8x512xf32> to vector<8x128xf32>
    %408 = arith.negf %407 : vector<8x128xf32>
    %409 = math.exp %408 : vector<8x128xf32>
    %cst_115 = arith.constant 1.000000e+00 : f32
    %410 = vector.broadcast %cst_115 : f32 to vector<8x128xf32>
    %411 = arith.addf %410, %409 : vector<8x128xf32>
    %412 = arith.divf %410, %411 : vector<8x128xf32>
    %413 = arith.mulf %404, %357 : vector<8x128xf32>
    %414 = arith.mulf %398, %406 : vector<8x128xf32>
    %415 = arith.addf %413, %414 : vector<8x128xf32>
    %416 = math.tanh %415 : vector<8x128xf32>
    %417 = arith.mulf %412, %416 : vector<8x128xf32>
    %cst_116 = arith.constant dense<0.000000e+00> : vector<8x640xf32>
    %418 = tpu.matmul %417, %326, %cst_116 {dimension_numbers = #tpu.dot_dimension_numbers<[1], [0], [0], [1], [0, 0, 1, 1], [], []>} : vector<8x128xf32>, vector<128x640xf32>, vector<8x640xf32> -> vector<8x640xf32>
    %419 = vector.extract_strided_slice %418 {offsets = [0, 512], sizes = [8, 128], strides = [1, 1]} : vector<8x640xf32> to vector<8x128xf32>
    %c0_117 = arith.constant 0 : index
    %c0_118 = arith.constant 0 : index
    %c0_119 = arith.constant 0 : index
    %420 = vector.load %arg12[%c0_117, %c0_118, %c0_119] : memref<8x8x128xf32, #tpu.memory_space<vmem>>, vector<8x8x128xf32>
    %421 = vector.shape_cast %419 : vector<8x128xf32> to vector<1x8x128xf32>
    %422 = vector.broadcast %421 : vector<1x8x128xf32> to vector<8x8x128xf32>
    %423 = arith.addf %420, %422 : vector<8x8x128xf32>
    %424 = math.tanh %423 : vector<8x8x128xf32>
    %425 = vector.shape_cast %327 : vector<1x128xf32> to vector<1x1x128xf32>
    %426 = vector.broadcast %425 : vector<1x1x128xf32> to vector<8x8x128xf32>
    %427 = arith.mulf %424, %426 : vector<8x8x128xf32>
    %cst_120 = arith.constant dense<0.000000e+00> : vector<8x8xf32>
    %428 = vector.multi_reduction <add>, %427, %cst_120 [2] : vector<8x8x128xf32> to vector<8x8xf32>
    %429 = tpu.transpose %428, [1, 0] : vector<8x8xf32> -> vector<8x8xf32>
    %cst_121 = arith.constant dense<0xFF800000> : vector<8xf32>
    %430 = vector.multi_reduction <maximumf>, %429, %cst_121 [1] : vector<8x8xf32> to vector<8xf32>
    %431 = vector.shape_cast %430 : vector<8xf32> to vector<8x1xf32>
    %432 = vector.broadcast %431 : vector<8x1xf32> to vector<8x8xf32>
    %433 = arith.subf %429, %432 : vector<8x8xf32>
    %434 = math.exp %433 : vector<8x8xf32>
    %cst_122 = arith.constant dense<0.000000e+00> : vector<8xf32>
    %435 = vector.multi_reduction <add>, %434, %cst_122 [1] : vector<8x8xf32> to vector<8xf32>
    %436 = vector.shape_cast %435 : vector<8xf32> to vector<8x1xf32>
    %437 = math.log %436 : vector<8x1xf32>
    %438 = arith.addf %431, %437 : vector<8x1xf32>
    %439 = vector.broadcast %438 : vector<8x1xf32> to vector<8x8xf32>
    %440 = arith.subf %429, %439 : vector<8x8xf32>
    %cst_123 = arith.constant 0.000000e+00 : f32
    %441 = vector.broadcast %cst_123 : f32 to vector<8x8xf32>
    %442 = arith.subf %441, %440 : vector<8x8xf32>
    %cst_124 = arith.constant 0.000000e+00 : f32
    %443 = vector.broadcast %cst_124 : f32 to vector<8x120xf32>
    %444 = tpu.concatenate %442, %443 in 1 : vector<8x8xf32>, vector<8x120xf32> -> vector<8x128xf32>
    %445 = arith.index_cast %c1_i32_112 : i32 to index
    %c0_125 = arith.constant 0 : index
    %c0_126 = arith.constant 0 : index
    %446 = vector.load %arg10[%445, %c0_125, %c0_126] : memref<4x8x128xf32, #tpu.memory_space<vmem>>, vector<1x8x128xf32>
    %447 = vector.shape_cast %446 : vector<1x8x128xf32> to vector<8x128xf32>
    %448 = vector.shape_cast %444 : vector<8x128xf32> to vector<1x8x128xf32>
    tpu.vector_store %arg10[%445, %c0_125, %c0_126], %448 {strides = array<i32>} : memref<4x8x128xf32, #tpu.memory_space<vmem>>, vector<1x8x128xf32>,
    %449 = vector.extract_strided_slice %418 {offsets = [0, 0], sizes = [8, 512], strides = [1, 1]} : vector<8x640xf32> to vector<8x512xf32>
    %c2_i32_127 = arith.constant 2 : i32
    %450 = arith.addf %333, %449 : vector<8x512xf32>
    %451 = vector.extract_strided_slice %450 {offsets = [0, 0], sizes = [8, 128], strides = [1, 1]} : vector<8x512xf32> to vector<8x128xf32>
    %452 = arith.negf %451 : vector<8x128xf32>
    %453 = math.exp %452 : vector<8x128xf32>
    %cst_128 = arith.constant 1.000000e+00 : f32
    %454 = vector.broadcast %cst_128 : f32 to vector<8x128xf32>
    %455 = arith.addf %454, %453 : vector<8x128xf32>
    %456 = arith.divf %454, %455 : vector<8x128xf32>
    %457 = vector.extract_strided_slice %450 {offsets = [0, 128], sizes = [8, 128], strides = [1, 1]} : vector<8x512xf32> to vector<8x128xf32>
    %458 = arith.negf %457 : vector<8x128xf32>
    %459 = math.exp %458 : vector<8x128xf32>
    %cst_129 = arith.constant 1.000000e+00 : f32
    %460 = vector.broadcast %cst_129 : f32 to vector<8x128xf32>
    %461 = arith.addf %460, %459 : vector<8x128xf32>
    %462 = arith.divf %460, %461 : vector<8x128xf32>
    %463 = vector.extract_strided_slice %450 {offsets = [0, 256], sizes = [8, 128], strides = [1, 1]} : vector<8x512xf32> to vector<8x128xf32>
    %464 = math.tanh %463 : vector<8x128xf32>
    %465 = vector.extract_strided_slice %450 {offsets = [0, 384], sizes = [8, 128], strides = [1, 1]} : vector<8x512xf32> to vector<8x128xf32>
    %466 = arith.negf %465 : vector<8x128xf32>
    %467 = math.exp %466 : vector<8x128xf32>
    %cst_130 = arith.constant 1.000000e+00 : f32
    %468 = vector.broadcast %cst_130 : f32 to vector<8x128xf32>
    %469 = arith.addf %468, %467 : vector<8x128xf32>
    %470 = arith.divf %468, %469 : vector<8x128xf32>
    %471 = arith.mulf %462, %415 : vector<8x128xf32>
    %472 = arith.mulf %456, %464 : vector<8x128xf32>
    %473 = arith.addf %471, %472 : vector<8x128xf32>
    %474 = math.tanh %473 : vector<8x128xf32>
    %475 = arith.mulf %470, %474 : vector<8x128xf32>
    %cst_131 = arith.constant dense<0.000000e+00> : vector<8x640xf32>
    %476 = tpu.matmul %475, %326, %cst_131 {dimension_numbers = #tpu.dot_dimension_numbers<[1], [0], [0], [1], [0, 0, 1, 1], [], []>} : vector<8x128xf32>, vector<128x640xf32>, vector<8x640xf32> -> vector<8x640xf32>
    %477 = vector.extract_strided_slice %476 {offsets = [0, 512], sizes = [8, 128], strides = [1, 1]} : vector<8x640xf32> to vector<8x128xf32>
    %c0_132 = arith.constant 0 : index
    %c0_133 = arith.constant 0 : index
    %c0_134 = arith.constant 0 : index
    %478 = vector.load %arg12[%c0_132, %c0_133, %c0_134] : memref<8x8x128xf32, #tpu.memory_space<vmem>>, vector<8x8x128xf32>
    %479 = vector.shape_cast %477 : vector<8x128xf32> to vector<1x8x128xf32>
    %480 = vector.broadcast %479 : vector<1x8x128xf32> to vector<8x8x128xf32>
    %481 = arith.addf %478, %480 : vector<8x8x128xf32>
    %482 = math.tanh %481 : vector<8x8x128xf32>
    %483 = vector.shape_cast %327 : vector<1x128xf32> to vector<1x1x128xf32>
    %484 = vector.broadcast %483 : vector<1x1x128xf32> to vector<8x8x128xf32>
    %485 = arith.mulf %482, %484 : vector<8x8x128xf32>
    %cst_135 = arith.constant dense<0.000000e+00> : vector<8x8xf32>
    %486 = vector.multi_reduction <add>, %485, %cst_135 [2] : vector<8x8x128xf32> to vector<8x8xf32>
    %487 = tpu.transpose %486, [1, 0] : vector<8x8xf32> -> vector<8x8xf32>
    %cst_136 = arith.constant dense<0xFF800000> : vector<8xf32>
    %488 = vector.multi_reduction <maximumf>, %487, %cst_136 [1] : vector<8x8xf32> to vector<8xf32>
    %489 = vector.shape_cast %488 : vector<8xf32> to vector<8x1xf32>
    %490 = vector.broadcast %489 : vector<8x1xf32> to vector<8x8xf32>
    %491 = arith.subf %487, %490 : vector<8x8xf32>
    %492 = math.exp %491 : vector<8x8xf32>
    %cst_137 = arith.constant dense<0.000000e+00> : vector<8xf32>
    %493 = vector.multi_reduction <add>, %492, %cst_137 [1] : vector<8x8xf32> to vector<8xf32>
    %494 = vector.shape_cast %493 : vector<8xf32> to vector<8x1xf32>
    %495 = math.log %494 : vector<8x1xf32>
    %496 = arith.addf %489, %495 : vector<8x1xf32>
    %497 = vector.broadcast %496 : vector<8x1xf32> to vector<8x8xf32>
    %498 = arith.subf %487, %497 : vector<8x8xf32>
    %cst_138 = arith.constant 0.000000e+00 : f32
    %499 = vector.broadcast %cst_138 : f32 to vector<8x8xf32>
    %500 = arith.subf %499, %498 : vector<8x8xf32>
    %cst_139 = arith.constant 0.000000e+00 : f32
    %501 = vector.broadcast %cst_139 : f32 to vector<8x120xf32>
    %502 = tpu.concatenate %500, %501 in 1 : vector<8x8xf32>, vector<8x120xf32> -> vector<8x128xf32>
    %503 = arith.index_cast %c2_i32_127 : i32 to index
    %c0_140 = arith.constant 0 : index
    %c0_141 = arith.constant 0 : index
    %504 = vector.load %arg10[%503, %c0_140, %c0_141] : memref<4x8x128xf32, #tpu.memory_space<vmem>>, vector<1x8x128xf32>
    %505 = vector.shape_cast %504 : vector<1x8x128xf32> to vector<8x128xf32>
    %506 = vector.shape_cast %502 : vector<8x128xf32> to vector<1x8x128xf32>
    tpu.vector_store %arg10[%503, %c0_140, %c0_141], %506 {strides = array<i32>} : memref<4x8x128xf32, #tpu.memory_space<vmem>>, vector<1x8x128xf32>,
    %507 = vector.extract_strided_slice %476 {offsets = [0, 0], sizes = [8, 512], strides = [1, 1]} : vector<8x640xf32> to vector<8x512xf32>
    %c3_i32_142 = arith.constant 3 : i32
    %508 = arith.addf %333, %507 : vector<8x512xf32>
    %509 = vector.extract_strided_slice %508 {offsets = [0, 0], sizes = [8, 128], strides = [1, 1]} : vector<8x512xf32> to vector<8x128xf32>
    %510 = arith.negf %509 : vector<8x128xf32>
    %511 = math.exp %510 : vector<8x128xf32>
    %cst_143 = arith.constant 1.000000e+00 : f32
    %512 = vector.broadcast %cst_143 : f32 to vector<8x128xf32>
    %513 = arith.addf %512, %511 : vector<8x128xf32>
    %514 = arith.divf %512, %513 : vector<8x128xf32>
    %515 = vector.extract_strided_slice %508 {offsets = [0, 128], sizes = [8, 128], strides = [1, 1]} : vector<8x512xf32> to vector<8x128xf32>
    %516 = arith.negf %515 : vector<8x128xf32>
    %517 = math.exp %516 : vector<8x128xf32>
    %cst_144 = arith.constant 1.000000e+00 : f32
    %518 = vector.broadcast %cst_144 : f32 to vector<8x128xf32>
    %519 = arith.addf %518, %517 : vector<8x128xf32>
    %520 = arith.divf %518, %519 : vector<8x128xf32>
    %521 = vector.extract_strided_slice %508 {offsets = [0, 256], sizes = [8, 128], strides = [1, 1]} : vector<8x512xf32> to vector<8x128xf32>
    %522 = math.tanh %521 : vector<8x128xf32>
    %523 = vector.extract_strided_slice %508 {offsets = [0, 384], sizes = [8, 128], strides = [1, 1]} : vector<8x512xf32> to vector<8x128xf32>
    %524 = arith.negf %523 : vector<8x128xf32>
    %525 = math.exp %524 : vector<8x128xf32>
    %cst_145 = arith.constant 1.000000e+00 : f32
    %526 = vector.broadcast %cst_145 : f32 to vector<8x128xf32>
    %527 = arith.addf %526, %525 : vector<8x128xf32>
    %528 = arith.divf %526, %527 : vector<8x128xf32>
    %529 = arith.mulf %520, %473 : vector<8x128xf32>
    %530 = arith.mulf %514, %522 : vector<8x128xf32>
    %531 = arith.addf %529, %530 : vector<8x128xf32>
    %532 = math.tanh %531 : vector<8x128xf32>
    %533 = arith.mulf %528, %532 : vector<8x128xf32>
    %cst_146 = arith.constant dense<0.000000e+00> : vector<8x640xf32>
    %534 = tpu.matmul %533, %326, %cst_146 {dimension_numbers = #tpu.dot_dimension_numbers<[1], [0], [0], [1], [0, 0, 1, 1], [], []>} : vector<8x128xf32>, vector<128x640xf32>, vector<8x640xf32> -> vector<8x640xf32>
    %535 = vector.extract_strided_slice %534 {offsets = [0, 512], sizes = [8, 128], strides = [1, 1]} : vector<8x640xf32> to vector<8x128xf32>
    %c0_147 = arith.constant 0 : index
    %c0_148 = arith.constant 0 : index
    %c0_149 = arith.constant 0 : index
    %536 = vector.load %arg12[%c0_147, %c0_148, %c0_149] : memref<8x8x128xf32, #tpu.memory_space<vmem>>, vector<8x8x128xf32>
    %537 = vector.shape_cast %535 : vector<8x128xf32> to vector<1x8x128xf32>
    %538 = vector.broadcast %537 : vector<1x8x128xf32> to vector<8x8x128xf32>
    %539 = arith.addf %536, %538 : vector<8x8x128xf32>
    %540 = math.tanh %539 : vector<8x8x128xf32>
    %541 = vector.shape_cast %327 : vector<1x128xf32> to vector<1x1x128xf32>
    %542 = vector.broadcast %541 : vector<1x1x128xf32> to vector<8x8x128xf32>
    %543 = arith.mulf %540, %542 : vector<8x8x128xf32>
    %cst_150 = arith.constant dense<0.000000e+00> : vector<8x8xf32>
    %544 = vector.multi_reduction <add>, %543, %cst_150 [2] : vector<8x8x128xf32> to vector<8x8xf32>
    %545 = tpu.transpose %544, [1, 0] : vector<8x8xf32> -> vector<8x8xf32>
    %cst_151 = arith.constant dense<0xFF800000> : vector<8xf32>
    %546 = vector.multi_reduction <maximumf>, %545, %cst_151 [1] : vector<8x8xf32> to vector<8xf32>
    %547 = vector.shape_cast %546 : vector<8xf32> to vector<8x1xf32>
    %548 = vector.broadcast %547 : vector<8x1xf32> to vector<8x8xf32>
    %549 = arith.subf %545, %548 : vector<8x8xf32>
    %550 = math.exp %549 : vector<8x8xf32>
    %cst_152 = arith.constant dense<0.000000e+00> : vector<8xf32>
    %551 = vector.multi_reduction <add>, %550, %cst_152 [1] : vector<8x8xf32> to vector<8xf32>
    %552 = vector.shape_cast %551 : vector<8xf32> to vector<8x1xf32>
    %553 = math.log %552 : vector<8x1xf32>
    %554 = arith.addf %547, %553 : vector<8x1xf32>
    %555 = vector.broadcast %554 : vector<8x1xf32> to vector<8x8xf32>
    %556 = arith.subf %545, %555 : vector<8x8xf32>
    %cst_153 = arith.constant 0.000000e+00 : f32
    %557 = vector.broadcast %cst_153 : f32 to vector<8x8xf32>
    %558 = arith.subf %557, %556 : vector<8x8xf32>
    %cst_154 = arith.constant 0.000000e+00 : f32
    %559 = vector.broadcast %cst_154 : f32 to vector<8x120xf32>
    %560 = tpu.concatenate %558, %559 in 1 : vector<8x8xf32>, vector<8x120xf32> -> vector<8x128xf32>
    %561 = arith.index_cast %c3_i32_142 : i32 to index
    %c0_155 = arith.constant 0 : index
    %c0_156 = arith.constant 0 : index
    %562 = vector.load %arg10[%561, %c0_155, %c0_156] : memref<4x8x128xf32, #tpu.memory_space<vmem>>, vector<1x8x128xf32>
    %563 = vector.shape_cast %562 : vector<1x8x128xf32> to vector<8x128xf32>
    %564 = vector.shape_cast %560 : vector<8x128xf32> to vector<1x8x128xf32>
    tpu.vector_store %arg10[%561, %c0_155, %c0_156], %564 {strides = array<i32>} : memref<4x8x128xf32, #tpu.memory_space<vmem>>, vector<1x8x128xf32>,
    %565 = vector.extract_strided_slice %534 {offsets = [0, 0], sizes = [8, 512], strides = [1, 1]} : vector<8x640xf32> to vector<8x512xf32>
    %c4_i32_157 = arith.constant 4 : i32
    return
  }
  func.func @transform_0(%arg0: i32) -> (i32, i32, i32) {
    %c0_i32 = arith.constant 0 : i32
    %c0_i32_0 = arith.constant 0 : i32
    %c0_i32_1 = arith.constant 0 : i32
    return %c0_i32, %arg0, %c0_i32_0 : i32, i32, i32
  }
  func.func @transform_1(%arg0: i32) -> (i32, i32) {
    %c0_i32 = arith.constant 0 : i32
    %c0_i32_0 = arith.constant 0 : i32
    return %arg0, %c0_i32 : i32, i32
  }
  func.func @transform_2(%arg0: i32) -> (i32, i32) {
    %c0_i32 = arith.constant 0 : i32
    %c0_i32_0 = arith.constant 0 : i32
    %c0_i32_1 = arith.constant 0 : i32
    return %c0_i32, %c0_i32_0 : i32, i32
  }
  func.func @transform_3(%arg0: i32) -> (i32, i32) {
    %c0_i32 = arith.constant 0 : i32
    %c0_i32_0 = arith.constant 0 : i32
    %c0_i32_1 = arith.constant 0 : i32
    return %c0_i32, %c0_i32_0 : i32, i32
  }
  func.func @transform_4(%arg0: i32) -> (i32, i32) {
    %c0_i32 = arith.constant 0 : i32
    %c0_i32_0 = arith.constant 0 : i32
    %c0_i32_1 = arith.constant 0 : i32
    return %c0_i32, %c0_i32_0 : i32, i32
  }
  func.func @transform_5(%arg0: i32) -> (i32, i32) {
    %c0_i32 = arith.constant 0 : i32
    %c0_i32_0 = arith.constant 0 : i32
    %c0_i32_1 = arith.constant 0 : i32
    return %c0_i32, %c0_i32_0 : i32, i32
  }
  func.func @transform_6(%arg0: i32) -> (i32, i32) {
    %c0_i32 = arith.constant 0 : i32
    %c0_i32_0 = arith.constant 0 : i32
    %c0_i32_1 = arith.constant 0 : i32
    return %c0_i32, %c0_i32_0 : i32, i32
  }
  func.func @transform_7(%arg0: i32) -> (i32, i32) {
    %c0_i32 = arith.constant 0 : i32
    %c0_i32_0 = arith.constant 0 : i32
    %c0_i32_1 = arith.constant 0 : i32
    return %c0_i32, %c0_i32_0 : i32, i32
  }
  func.func @transform_8(%arg0: i32) -> (i32, i32) {
    %c0_i32 = arith.constant 0 : i32
    %c0_i32_0 = arith.constant 0 : i32
    %c0_i32_1 = arith.constant 0 : i32
    return %c0_i32, %c0_i32_0 : i32, i32
  }
  func.func @transform_9(%arg0: i32) -> (i32, i32, i32) {
    %c0_i32 = arith.constant 0 : i32
    %c0_i32_0 = arith.constant 0 : i32
    %c0_i32_1 = arith.constant 0 : i32
    return %c0_i32, %arg0, %c0_i32_0 : i32, i32, i32
  }
}

</mosaic_0001>

<llo_original>
// kernel: tpu_custom_call.1
$region0: #{tpu_custom_call.1}
  #allocation0 [shape = 'u32[]', space=smem, size = 0x4, offset = 0x4, fixed_abs, tag = 'smem constant byte address 0x4 - core index']
  #allocation1 [shape = 'u32[144,128]{1,0:T(1,128)}', space=vmem, size = 0x12000, scoped, tag = 'internal scratch']
  #allocation2 [shape = 'f32[64,512]{1,0:T(8,128)}', space=vmem, size = 0x20000, scoped, tag = 'scratch operand']
  #allocation3 [shape = 'f32[8,8,128]{2,1,0:T(8,128)}', space=vmem, size = 0x8000, scoped, tag = 'scratch operand']
  %s0 = inlined_call_operand.hbm [shape: f32[8,8,32], index: 0, kind: input, shape index: {}]
  %s1 = inlined_call_operand.hbm [shape: f32[8,32], index: 1, kind: input, shape index: {}]
  %s2 = inlined_call_operand.hbm [shape: f32[32,512], index: 2, kind: input, shape index: {}]
  %s3 = inlined_call_operand.vmem [shape: f32[1,512], index: 3, kind: input, shape index: {}]
  %s4 = inlined_call_operand.hbm [shape: f32[128,640], index: 4, kind: input, shape index: {}]
  %s5 = inlined_call_operand.hbm [shape: f32[32,512], index: 5, kind: input, shape index: {}]
  %s6 = inlined_call_operand.vmem [shape: f32[1,512], index: 6, kind: input, shape index: {}]
  %s7 = inlined_call_operand.hbm [shape: f32[128,640], index: 7, kind: input, shape index: {}]
  %s8 = inlined_call_operand.vmem [shape: f32[1,128], index: 8, kind: input, shape index: {}]
  %s9 = inlined_call_operand.hbm [shape: f32[4,8,128], index: 9, kind: output, shape index: {}]
  %s10 = sld [smem:[#allocation0]]
  $region70: #{tpu_custom_call.1} parent=0
    _
  %s12 = ssub.s32 1, %s10
  %s13 = scalar_select 0, %s12, %s10
  $region1: #{tpu_custom_call.1} parent=0
    #allocation4 [shape = 'u8[32768]{0}', space=vmem, size = 0x8000, scoped, tag = 'input window, operand 0, single buffered']
    #allocation5 [shape = 's32[1]{0}', space=sflag, size = 0x4, scoped, tag = 'scoped memory for tpu_custom_call.1']
    #allocation6 [shape = 's32[1]{0}', space=sflag, size = 0x4, scoped, tag = 'scoped memory for tpu_custom_call.1']
    #allocation7 [shape = 'u8[4096]{0}', space=vmem, size = 0x1000, scoped, tag = 'input window, operand 1, single buffered']
    #allocation8 [shape = 's32[1]{0}', space=sflag, size = 0x4, scoped, tag = 'scoped memory for tpu_custom_call.1']
    #allocation9 [shape = 'u8[65536]{0}', space=vmem, size = 0x10000, scoped, tag = 'input window, operand 2, single buffered']
    #allocation10 [shape = 'u8[327680]{0}', space=vmem, size = 0x50000, scoped, tag = 'input window, operand 4, single buffered']
    #allocation11 [shape = 's32[1]{0}', space=sflag, size = 0x4, scoped, tag = 'scoped memory for tpu_custom_call.1']
    #allocation12 [shape = 'u8[65536]{0}', space=vmem, size = 0x10000, scoped, tag = 'input window, operand 5, single buffered']
    #allocation13 [shape = 'u8[327680]{0}', space=vmem, size = 0x50000, scoped, tag = 'input window, operand 7, single buffered']
    #allocation14 [shape = 's32[1]{0}', space=sflag, size = 0x4, scoped, tag = 'scoped memory for tpu_custom_call.1']
    #allocation15 [shape = 'u8[16384]{0}', space=vmem, size = 0x4000, scoped, tag = 'output window, operand 0, single buffered']
    %14 = vsyncpa [#allocation5], 0
    %15 = vsyncpa [#allocation8], 0
    %16 = vsyncpa [#allocation11], 0
    %17 = vsyncpa [#allocation14], 0
    %18 = vsyncpa [#allocation6], 0
    // Predicated region
    $region2: #{tpu_custom_call.1} parent=1 // pred_check
      _
    $region3: #{tpu_custom_call.1} parent=1 // pred_check_branch
      %20 = sbr.rel (0) target = $region5
    $region4: #{tpu_custom_call.1} parent=1 // pred_region
      %s22 = ssub.s32 1024, 1024
      %23 = vsyncadd [#allocation5], %s22
      %s24 = sshll.u32 [#allocation4], 4
      %s25 = int_to_ptr.vmem [resolvable:$true] %s24
      %30 = dma.hbm_to_vmem [thread:$0]  %s0, 1024, %s25, [#allocation5], 128, 128, 8
    $region5: #{tpu_custom_call.1} parent=1 // pred_fallthru
      _
    // Predicated region
    $region6: #{tpu_custom_call.1} parent=1 // pred_check
      _
    $region7: #{tpu_custom_call.1} parent=1 // pred_check_branch
      %32 = sbr.rel (0) target = $region9
    $region8: #{tpu_custom_call.1} parent=1 // pred_region
      %s34 = ssub.s32 128, 128
      %35 = vsyncadd [#allocation8], %s34
      %s37 = sshll.u32 [#allocation7], 4
      %s38 = int_to_ptr.vmem [resolvable:$true] %s37
      %40 = dma.hbm_to_vmem [thread:$0]  %s1, 128, %s38, [#allocation8]
    $region9: #{tpu_custom_call.1} parent=1 // pred_fallthru
      _
    // Predicated region
    $region10: #{tpu_custom_call.1} parent=1 // pred_check
      _
    $region11: #{tpu_custom_call.1} parent=1 // pred_check_branch
      %42 = sbr.rel (0) target = $region13
    $region12: #{tpu_custom_call.1} parent=1 // pred_region
      %s44 = ssub.s32 2048, 2048
      %45 = vsyncadd [#allocation8], %s44
      %s46 = sshll.u32 [#allocation9], 4
      %s47 = int_to_ptr.vmem [resolvable:$true] %s46
      %52 = dma.hbm_to_vmem [thread:$0]  %s2, 2048, %s47, [#allocation8], 512, 512, 32
    $region13: #{tpu_custom_call.1} parent=1 // pred_fallthru
      _
    // Predicated region
    $region14: #{tpu_custom_call.1} parent=1 // pred_check
      _
    $region15: #{tpu_custom_call.1} parent=1 // pred_check_branch
      %54 = sbr.rel (0) target = $region17
    $region16: #{tpu_custom_call.1} parent=1 // pred_region
      _
    $region17: #{tpu_custom_call.1} parent=1 // pred_fallthru
      _
    // Predicated region
    $region18: #{tpu_custom_call.1} parent=1 // pred_check
      _
    $region19: #{tpu_custom_call.1} parent=1 // pred_check_branch
      %56 = sbr.rel (0) target = $region21
    $region20: #{tpu_custom_call.1} parent=1 // pred_region
      %s58 = ssub.s32 10240, 10240
      %59 = vsyncadd [#allocation11], %s58
      %s60 = sshll.u32 [#allocation10], 4
      %s61 = int_to_ptr.vmem [resolvable:$true] %s60
      %66 = dma.hbm_to_vmem [thread:$0]  %s4, 10240, %s61, [#allocation11], 640, 640, 40
    $region21: #{tpu_custom_call.1} parent=1 // pred_fallthru
      _
    // Predicated region
    $region22: #{tpu_custom_call.1} parent=1 // pred_check
      _
    $region23: #{tpu_custom_call.1} parent=1 // pred_check_branch
      %68 = sbr.rel (0) target = $region25
    $region24: #{tpu_custom_call.1} parent=1 // pred_region
      %s70 = ssub.s32 2048, 2048
      %71 = vsyncadd [#allocation11], %s70
      %s72 = sshll.u32 [#allocation12], 4
      %s73 = int_to_ptr.vmem [resolvable:$true] %s72
      %78 = dma.hbm_to_vmem [thread:$0]  %s5, 2048, %s73, [#allocation11], 512, 512, 32
    $region25: #{tpu_custom_call.1} parent=1 // pred_fallthru
      _
    // Predicated region
    $region26: #{tpu_custom_call.1} parent=1 // pred_check
      _
    $region27: #{tpu_custom_call.1} parent=1 // pred_check_branch
      %80 = sbr.rel (0) target = $region29
    $region28: #{tpu_custom_call.1} parent=1 // pred_region
      _
    $region29: #{tpu_custom_call.1} parent=1 // pred_fallthru
      _
    // Predicated region
    $region30: #{tpu_custom_call.1} parent=1 // pred_check
      _
    $region31: #{tpu_custom_call.1} parent=1 // pred_check_branch
      %82 = sbr.rel (0) target = $region33
    $region32: #{tpu_custom_call.1} parent=1 // pred_region
      %s84 = ssub.s32 10240, 10240
      %85 = vsyncadd [#allocation14], %s84
      %s86 = sshll.u32 [#allocation13], 4
      %s87 = int_to_ptr.vmem [resolvable:$true] %s86
      %92 = dma.hbm_to_vmem [thread:$0]  %s7, 10240, %s87, [#allocation14], 640, 640, 40
    $region33: #{tpu_custom_call.1} parent=1 // pred_fallthru
      _
    // Predicated region
    $region34: #{tpu_custom_call.1} parent=1 // pred_check
      _
    $region35: #{tpu_custom_call.1} parent=1 // pred_check_branch
      %94 = sbr.rel (0) target = $region37
    $region36: #{tpu_custom_call.1} parent=1 // pred_region
      _
    $region37: #{tpu_custom_call.1} parent=1 // pred_fallthru
      _
    // Predicated region
    $region38: #{tpu_custom_call.1} parent=1 // pred_check
      _
    $region39: #{tpu_custom_call.1} parent=1 // pred_check_branch
      %96 = sbr.rel (0) target = $region41
    $region40: #{tpu_custom_call.1} parent=1 // pred_region
      %97 = dma.done [#allocation5], 1024
    $region41: #{tpu_custom_call.1} parent=1 // pred_fallthru
      _
    // Predicated region
    $region42: #{tpu_custom_call.1} parent=1 // pred_check
      _
    $region43: #{tpu_custom_call.1} parent=1 // pred_check_branch
      %99 = sbr.rel (0) target = $region45
    $region44: #{tpu_custom_call.1} parent=1 // pred_region
      %100 = dma.done [#allocation8], 128
    $region45: #{tpu_custom_call.1} parent=1 // pred_fallthru
      _
    // Predicated region
    $region46: #{tpu_custom_call.1} parent=1 // pred_check
      _
    $region47: #{tpu_custom_call.1} parent=1 // pred_check_branch
      %102 = sbr.rel (0) target = $region49
    $region48: #{tpu_custom_call.1} parent=1 // pred_region
      %103 = dma.done [#allocation8], 2048
    $region49: #{tpu_custom_call.1} parent=1 // pred_fallthru
      _
    // Predicated region
    $region50: #{tpu_custom_call.1} parent=1 // pred_check
      _
    $region51: #{tpu_custom_call.1} parent=1 // pred_check_branch
      %105 = sbr.rel (0) target = $region53
    $region52: #{tpu_custom_call.1} parent=1 // pred_region
      %106 = dma.done [#allocation11], 10240
    $region53: #{tpu_custom_call.1} parent=1 // pred_fallthru
      _
    // Predicated region
    $region54: #{tpu_custom_call.1} parent=1 // pred_check
      _
    $region55: #{tpu_custom_call.1} parent=1 // pred_check_branch
      %108 = sbr.rel (0) target = $region57
    $region56: #{tpu_custom_call.1} parent=1 // pred_region
      %109 = dma.done [#allocation11], 2048
    $region57: #{tpu_custom_call.1} parent=1 // pred_fallthru
      _
    // Predicated region
    $region58: #{tpu_custom_call.1} parent=1 // pred_check
      _
    $region59: #{tpu_custom_call.1} parent=1 // pred_check_branch
      %111 = sbr.rel (0) target = $region61
    $region60: #{tpu_custom_call.1} parent=1 // pred_region
      %112 = dma.done [#allocation14], 10240
    $region61: #{tpu_custom_call.1} parent=1 // pred_fallthru
      _
    %v113 = vld [vmem:[#allocation9] sm:$0xff]
    %v114 = vld [vmem:[#allocation9 + $0x8] sm:$0xff]
    %v115 = vld [vmem:[#allocation9 + $0x10] sm:$0xff]
    %v116 = vld [vmem:[#allocation9 + $0x18] sm:$0xff]
    %v117 = vld [vmem:[#allocation9 + $0x20] sm:$0xff]
    %v118 = vld [vmem:[#allocation9 + $0x28] sm:$0xff]
    %v119 = vld [vmem:[#allocation9 + $0x30] sm:$0xff]
    %v120 = vld [vmem:[#allocation9 + $0x38] sm:$0xff]
    %v121 = vld [vmem:[#allocation9 + $0x40] sm:$0xff]
    %v122 = vld [vmem:[#allocation9 + $0x48] sm:$0xff]
    %v123 = vld [vmem:[#allocation9 + $0x50] sm:$0xff]
    %v124 = vld [vmem:[#allocation9 + $0x58] sm:$0xff]
    %v125 = vld [vmem:[#allocation9 + $0x60] sm:$0xff]
    %v126 = vld [vmem:[#allocation9 + $0x68] sm:$0xff]
    %v127 = vld [vmem:[#allocation9 + $0x70] sm:$0xff]
    %v128 = vld [vmem:[#allocation9 + $0x78] sm:$0xff]
    %v129 = vld [vmem:[%s3] sm:$0xf]
    %v130 = vld [vmem:[#allocation10] sm:$0xff]
    %v131 = vld [vmem:[#allocation10 + $0x8] sm:$0xff]
    %v132 = vld [vmem:[#allocation10 + $0x10] sm:$0xff]
    %v133 = vld [vmem:[#allocation10 + $0x18] sm:$0xff]
    %v134 = vld [vmem:[#allocation10 + $0x20] sm:$0xff]
    %v135 = vld [vmem:[#allocation10 + $0x28] sm:$0xff]
    %v136 = vld [vmem:[#allocation10 + $0x30] sm:$0xff]
    %v137 = vld [vmem:[#allocation10 + $0x38] sm:$0xff]
    %v138 = vld [vmem:[#allocation10 + $0x40] sm:$0xff]
    %v139 = vld [vmem:[#allocation10 + $0x48] sm:$0xff]
    %v140 = vld [vmem:[#allocation10 + $0x50] sm:$0xff]
    %v141 = vld [vmem:[#allocation10 + $0x58] sm:$0xff]
    %v142 = vld [vmem:[#allocation10 + $0x60] sm:$0xff]
    %v143 = vld [vmem:[#allocation10 + $0x68] sm:$0xff]
    %v144 = vld [vmem:[#allocation10 + $0x70] sm:$0xff]
    %v145 = vld [vmem:[#allocation10 + $0x78] sm:$0xff]
    %v146 = vld [vmem:[#allocation10 + $0x80] sm:$0xff]
    %v147 = vld [vmem:[#allocation10 + $0x88] sm:$0xff]
    %v148 = vld [vmem:[#allocation10 + $0x90] sm:$0xff]
    %v149 = vld [vmem:[#allocation10 + $0x98] sm:$0xff]
    %v150 = vld [vmem:[#allocation10 + $0xa0] sm:$0xff]
    %v151 = vld [vmem:[#allocation10 + $0xa8] sm:$0xff]
    %v152 = vld [vmem:[#allocation10 + $0xb0] sm:$0xff]
    %v153 = vld [vmem:[#allocation10 + $0xb8] sm:$0xff]
    %v154 = vld [vmem:[#allocation10 + $0xc0] sm:$0xff]
    %v155 = vld [vmem:[#allocation10 + $0xc8] sm:$0xff]
    %v156 = vld [vmem:[#allocation10 + $0xd0] sm:$0xff]
    %v157 = vld [vmem:[#allocation10 + $0xd8] sm:$0xff]
    %v158 = vld [vmem:[#allocation10 + $0xe0] sm:$0xff]
    %v159 = vld [vmem:[#allocation10 + $0xe8] sm:$0xff]
    %v160 = vld [vmem:[#allocation10 + $0xf0] sm:$0xff]
    %v161 = vld [vmem:[#allocation10 + $0xf8] sm:$0xff]
    %v162 = vld [vmem:[#allocation10 + $0x100] sm:$0xff]
    %v163 = vld [vmem:[#allocation10 + $0x108] sm:$0xff]
    %v164 = vld [vmem:[#allocation10 + $0x110] sm:$0xff]
    %v165 = vld [vmem:[#allocation10 + $0x118] sm:$0xff]
    %v166 = vld [vmem:[#allocation10 + $0x120] sm:$0xff]
    %v167 = vld [vmem:[#allocation10 + $0x128] sm:$0xff]
    %v168 = vld [vmem:[#allocation10 + $0x130] sm:$0xff]
    %v169 = vld [vmem:[#allocation10 + $0x138] sm:$0xff]
    %v170 = vld [vmem:[#allocation10 + $0x140] sm:$0xff]
    %v171 = vld [vmem:[#allocation10 + $0x148] sm:$0xff]
    %v172 = vld [vmem:[#allocation10 + $0x150] sm:$0xff]
    %v173 = vld [vmem:[#allocation10 + $0x158] sm:$0xff]
    %v174 = vld [vmem:[#allocation10 + $0x160] sm:$0xff]
    %v175 = vld [vmem:[#allocation10 + $0x168] sm:$0xff]
    %v176 = vld [vmem:[#allocation10 + $0x170] sm:$0xff]
    %v177 = vld [vmem:[#allocation10 + $0x178] sm:$0xff]
    %v178 = vld [vmem:[#allocation10 + $0x180] sm:$0xff]
    %v179 = vld [vmem:[#allocation10 + $0x188] sm:$0xff]
    %v180 = vld [vmem:[#allocation10 + $0x190] sm:$0xff]
    %v181 = vld [vmem:[#allocation10 + $0x198] sm:$0xff]
    %v182 = vld [vmem:[#allocation10 + $0x1a0] sm:$0xff]
    %v183 = vld [vmem:[#allocation10 + $0x1a8] sm:$0xff]
    %v184 = vld [vmem:[#allocation10 + $0x1b0] sm:$0xff]
    %v185 = vld [vmem:[#allocation10 + $0x1b8] sm:$0xff]
    %v186 = vld [vmem:[#allocation10 + $0x1c0] sm:$0xff]
    %v187 = vld [vmem:[#allocation10 + $0x1c8] sm:$0xff]
    %v188 = vld [vmem:[#allocation10 + $0x1d0] sm:$0xff]
    %v189 = vld [vmem:[#allocation10 + $0x1d8] sm:$0xff]
    %v190 = vld [vmem:[#allocation10 + $0x1e0] sm:$0xff]
    %v191 = vld [vmem:[#allocation10 + $0x1e8] sm:$0xff]
    %v192 = vld [vmem:[#allocation10 + $0x1f0] sm:$0xff]
    %v193 = vld [vmem:[#allocation10 + $0x1f8] sm:$0xff]
    %v194 = vld [vmem:[#allocation10 + $0x200] sm:$0xff]
    %v195 = vld [vmem:[#allocation10 + $0x208] sm:$0xff]
    %v196 = vld [vmem:[#allocation10 + $0x210] sm:$0xff]
    %v197 = vld [vmem:[#allocation10 + $0x218] sm:$0xff]
    %v198 = vld [vmem:[#allocation10 + $0x220] sm:$0xff]
    %v199 = vld [vmem:[#allocation10 + $0x228] sm:$0xff]
    %v200 = vld [vmem:[#allocation10 + $0x230] sm:$0xff]
    %v201 = vld [vmem:[#allocation10 + $0x238] sm:$0xff]
    %v202 = vld [vmem:[#allocation10 + $0x240] sm:$0xff]
    %v203 = vld [vmem:[#allocation10 + $0x248] sm:$0xff]
    %v204 = vld [vmem:[#allocation10 + $0x250] sm:$0xff]
    %v205 = vld [vmem:[#allocation10 + $0x258] sm:$0xff]
    %v206 = vld [vmem:[#allocation10 + $0x260] sm:$0xff]
    %v207 = vld [vmem:[#allocation10 + $0x268] sm:$0xff]
    %v208 = vld [vmem:[#allocation10 + $0x270] sm:$0xff]
    %v209 = vld [vmem:[#allocation10 + $0x278] sm:$0xff]
    %s210 = smul.u32 0, 8
    %s211 = scalar_lea.vmem [#allocation4], %s210
    %v212 = vld [vmem:[%s211] sm:$0xff]
    %v213 = vld [vmem:[%s211 + $0x8] sm:$0xff]
    %v214 = vld [vmem:[%s211 + $0x10] sm:$0xff]
    %v215 = vld [vmem:[%s211 + $0x18] sm:$0xff]
    %v216 = vld [vmem:[%s211 + $0x20] sm:$0xff]
    %v217 = vld [vmem:[%s211 + $0x28] sm:$0xff]
    %v218 = vld [vmem:[%s211 + $0x30] sm:$0xff]
    %v219 = vld [vmem:[%s211 + $0x38] sm:$0xff]
    %v221 = vlaneseq
    %v222 = vshrl.u32 %v221, 7
    %v223 = vsub.s32 0, %v222
    %v224 = vrot.slane %v129, %v223
    %v225 = vlaneseq
    %v226 = vshrl.u32 %v225, 7
    %v227 = vsub.s32 1, %v226
    %v228 = vrot.slane %v129, %v227
    %v229 = vlaneseq
    %v230 = vshrl.u32 %v229, 7
    %v231 = vsub.s32 2, %v230
    %v232 = vrot.slane %v129, %v231
    %v233 = vlaneseq
    %v234 = vshrl.u32 %v233, 7
    %v235 = vsub.s32 3, %v234
    %v236 = vrot.slane %v129, %v235
    %vm241 = vcmask 261120
    %v243 = vsel %vm241, %v212, 0
    %v246 = vsel %vm241, %v213, 0
    %v249 = vsel %vm241, %v214, 0
    %v252 = vsel %vm241, %v215, 0
    %v255 = vsel %vm241, %v216, 0
    %v258 = vsel %vm241, %v217, 0
    %v261 = vsel %vm241, %v218, 0
    %v264 = vsel %vm241, %v219, 0
    %266 = vmatprep.subr.mxu0 0.0
    %267 = vmatpush1.msra.mxu0 0.0
    %268 = vmatprep.subr.mxu0 0.0
    %269 = vmatpush1.msra.mxu0 0.0
    %270 = vmatprep.subr.mxu0 0.0
    %271 = vmatpush1.msra.mxu0 0.0
    %272 = vmatprep.subr.mxu0 0.0
    %273 = vmatpush1.msra.mxu0 0.0
    %274 = vmatprep.subr.mxu0 0.0
    %275 = vmatpush1.msra.mxu0 0.0
    %276 = vmatprep.subr.mxu0 0.0
    %277 = vmatpush1.msra.mxu0 0.0
    %278 = vmatprep.subr.mxu0 0.0
    %279 = vmatpush1.msra.mxu0 0.0
    %280 = vmatprep.subr.mxu0 0.0
    %281 = vmatpush1.msra.mxu0 0.0
    %282 = vmatprep.subr.mxu0 0.0
    %283 = vmatpush1.msra.mxu0 0.0
    %284 = vmatprep.subr.mxu0 0.0
    %285 = vmatpush1.msra.mxu0 0.0
    %286 = vmatprep.subr.mxu0 0.0
    %287 = vmatpush1.msra.mxu0 0.0
    %288 = vmatprep.subr.mxu0 0.0
    %289 = vmatpush1.msra.mxu0 0.0
    %290 = vmatprep.subr.mxu0 %v126
    %291 = vmatpush1.msra.mxu0 %v125
    %292 = vmatprep.subr.mxu0 %v122
    %293 = vmatpush1.msra.mxu0 %v121
    %294 = vmatprep.subr.mxu0 %v118
    %295 = vmatpush1.msra.mxu0 %v117
    %296 = vmatprep.subr.mxu0 %v114
    %297 = vmatpush1.msra.mxu0 %v113
    %298 = vmatprep.subr.mxu0 0.0
    %299 = vmatpush2.msra.mxu0 0.0
    %300 = vmatprep.subr.mxu0 0.0
    %301 = vmatpush2.msra.mxu0 0.0
    %302 = vmatprep.subr.mxu0 0.0
    %303 = vmatpush2.msra.mxu0 0.0
    %304 = vmatprep.subr.mxu0 0.0
    %305 = vmatpush2.msra.mxu0 0.0
    %306 = vmatprep.subr.mxu0 0.0
    %307 = vmatpush2.msra.mxu0 0.0
    %308 = vmatprep.subr.mxu0 0.0
    %309 = vmatpush2.msra.mxu0 0.0
    %310 = vmatprep.subr.mxu0 0.0
    %311 = vmatpush2.msra.mxu0 0.0
    %312 = vmatprep.subr.mxu0 0.0
    %313 = vmatpush2.msra.mxu0 0.0
    %314 = vmatprep.subr.mxu0 0.0
    %315 = vmatpush2.msra.mxu0 0.0
    %316 = vmatprep.subr.mxu0 0.0
    %317 = vmatpush2.msra.mxu0 0.0
    %318 = vmatprep.subr.mxu0 0.0
    %319 = vmatpush2.msra.mxu0 0.0
    %320 = vmatprep.subr.mxu0 0.0
    %321 = vmatpush2.msra.mxu0 0.0
    %322 = vmatprep.subr.mxu0 0.0
    %323 = vmatpush2.msra.mxu0 0.0
    %324 = vmatprep.subr.mxu0 0.0
    %325 = vmatpush2.msra.mxu0 0.0
    %326 = vmatprep.subr.mxu0 0.0
    %327 = vmatpush2.msra.mxu0 0.0
    %328 = vmatprep.subr.mxu0 0.0
    %329 = vmatpush2.msra.mxu0 0.0
    %330 = vmatprep.mubr.f32.mxu0 0.0
    %331 = vmatmul.mubr.f32.gmra.mxu0 %v243
    %v332 = vpop.f32.mrf.mxu0
    %v333 = vadd.f32 %v224, %v332
    %v334 = vpop.f32.mrf.mxu0
    %v335 = vadd.f32 %v228, %v334
    %336 = vmatprep.mubr.f32.mxu0 0.0
    %337 = vmatmul.mubr.f32.gmra.mxu0 %v246
    %v338 = vpop.f32.mrf.mxu0
    %v339 = vadd.f32 %v224, %v338
    %v340 = vpop.f32.mrf.mxu0
    %v341 = vadd.f32 %v228, %v340
    %342 = vmatprep.mubr.f32.mxu0 0.0
    %343 = vmatmul.mubr.f32.gmra.mxu0 %v249
    %v344 = vpop.f32.mrf.mxu0
    %v345 = vadd.f32 %v224, %v344
    %v346 = vpop.f32.mrf.mxu0
    %v347 = vadd.f32 %v228, %v346
    %348 = vmatprep.mubr.f32.mxu0 0.0
    %349 = vmatmul.mubr.f32.gmra.mxu0 %v252
    %v350 = vpop.f32.mrf.mxu0
    %v351 = vadd.f32 %v224, %v350
    %v352 = vpop.f32.mrf.mxu0
    %v353 = vadd.f32 %v228, %v352
    %354 = vmatprep.mubr.f32.mxu0 0.0
    %355 = vmatmul.mubr.f32.gmra.mxu0 %v255
    %v356 = vpop.f32.mrf.mxu0
    %v357 = vadd.f32 %v224, %v356
    %v358 = vpop.f32.mrf.mxu0
    %v359 = vadd.f32 %v228, %v358
    %360 = vmatprep.mubr.f32.mxu0 0.0
    %361 = vmatmul.mubr.f32.gmra.mxu0 %v258
    %v362 = vpop.f32.mrf.mxu0
    %v363 = vadd.f32 %v224, %v362
    %v364 = vpop.f32.mrf.mxu0
    %v365 = vadd.f32 %v228, %v364
    %366 = vmatprep.mubr.f32.mxu0 0.0
    %367 = vmatmul.mubr.f32.gmra.mxu0 %v261
    %v368 = vpop.f32.mrf.mxu0
    %v369 = vadd.f32 %v224, %v368
    %v370 = vpop.f32.mrf.mxu0
    %v371 = vadd.f32 %v228, %v370
    %372 = vmatprep.mubr.f32.mxu0 0.0
    %373 = vmatmul.mubr.f32.gmra.mxu0 %v264
    %v374 = vpop.f32.mrf.mxu0
    %v375 = vadd.f32 %v224, %v374
    %v376 = vpop.f32.mrf.mxu0
    %v377 = vadd.f32 %v228, %v376
    %378 = vdwg.mxu0
    %379 = vmatprep.subr.mxu0 0.0
    %380 = vmatpush1.msra.mxu0 0.0
    %381 = vmatprep.subr.mxu0 0.0
    %382 = vmatpush1.msra.mxu0 0.0
    %383 = vmatprep.subr.mxu0 0.0
    %384 = vmatpush1.msra.mxu0 0.0
    %385 = vmatprep.subr.mxu0 0.0
    %386 = vmatpush1.msra.mxu0 0.0
    %387 = vmatprep.subr.mxu0 0.0
    %388 = vmatpush1.msra.mxu0 0.0
    %389 = vmatprep.subr.mxu0 0.0
    %390 = vmatpush1.msra.mxu0 0.0
    %391 = vmatprep.subr.mxu0 0.0
    %392 = vmatpush1.msra.mxu0 0.0
    %393 = vmatprep.subr.mxu0 0.0
    %394 = vmatpush1.msra.mxu0 0.0
    %395 = vmatprep.subr.mxu0 0.0
    %396 = vmatpush1.msra.mxu0 0.0
    %397 = vmatprep.subr.mxu0 0.0
    %398 = vmatpush1.msra.mxu0 0.0
    %399 = vmatprep.subr.mxu0 0.0
    %400 = vmatpush1.msra.mxu0 0.0
    %401 = vmatprep.subr.mxu0 0.0
    %402 = vmatpush1.msra.mxu0 0.0
    %403 = vmatprep.subr.mxu0 %v128
    %404 = vmatpush1.msra.mxu0 %v127
    %405 = vmatprep.subr.mxu0 %v124
    %406 = vmatpush1.msra.mxu0 %v123
    %407 = vmatprep.subr.mxu0 %v120
    %408 = vmatpush1.msra.mxu0 %v119
    %409 = vmatprep.subr.mxu0 %v116
    %410 = vmatpush1.msra.mxu0 %v115
    %411 = vmatprep.subr.mxu0 0.0
    %412 = vmatpush2.msra.mxu0 0.0
    %413 = vmatprep.subr.mxu0 0.0
    %414 = vmatpush2.msra.mxu0 0.0
    %415 = vmatprep.subr.mxu0 0.0
    %416 = vmatpush2.msra.mxu0 0.0
    %417 = vmatprep.subr.mxu0 0.0
    %418 = vmatpush2.msra.mxu0 0.0
    %419 = vmatprep.subr.mxu0 0.0
    %420 = vmatpush2.msra.mxu0 0.0
    %421 = vmatprep.subr.mxu0 0.0
    %422 = vmatpush2.msra.mxu0 0.0
    %423 = vmatprep.subr.mxu0 0.0
    %424 = vmatpush2.msra.mxu0 0.0
    %425 = vmatprep.subr.mxu0 0.0
    %426 = vmatpush2.msra.mxu0 0.0
    %427 = vmatprep.subr.mxu0 0.0
    %428 = vmatpush2.msra.mxu0 0.0
    %429 = vmatprep.subr.mxu0 0.0
    %430 = vmatpush2.msra.mxu0 0.0
    %431 = vmatprep.subr.mxu0 0.0
    %432 = vmatpush2.msra.mxu0 0.0
    %433 = vmatprep.subr.mxu0 0.0
    %434 = vmatpush2.msra.mxu0 0.0
    %435 = vmatprep.subr.mxu0 0.0
    %436 = vmatpush2.msra.mxu0 0.0
    %437 = vmatprep.subr.mxu0 0.0
    %438 = vmatpush2.msra.mxu0 0.0
    %439 = vmatprep.subr.mxu0 0.0
    %440 = vmatpush2.msra.mxu0 0.0
    %441 = vmatprep.subr.mxu0 0.0
    %442 = vmatpush2.msra.mxu0 0.0
    %443 = vmatprep.mubr.f32.mxu0 0.0
    %444 = vmatmul.mubr.f32.gmra.mxu0 %v243
    %v445 = vpop.f32.mrf.mxu0
    %v446 = vadd.f32 %v232, %v445
    %v447 = vpop.f32.mrf.mxu0
    %v448 = vadd.f32 %v236, %v447
    %449 = vmatprep.mubr.f32.mxu0 0.0
    %450 = vmatmul.mubr.f32.gmra.mxu0 %v246
    %v451 = vpop.f32.mrf.mxu0
    %v452 = vadd.f32 %v232, %v451
    %v453 = vpop.f32.mrf.mxu0
    %v454 = vadd.f32 %v236, %v453
    %455 = vmatprep.mubr.f32.mxu0 0.0
    %456 = vmatmul.mubr.f32.gmra.mxu0 %v249
    %v457 = vpop.f32.mrf.mxu0
    %v458 = vadd.f32 %v232, %v457
    %v459 = vpop.f32.mrf.mxu0
    %v460 = vadd.f32 %v236, %v459
    %461 = vmatprep.mubr.f32.mxu0 0.0
    %462 = vmatmul.mubr.f32.gmra.mxu0 %v252
    %v463 = vpop.f32.mrf.mxu0
    %v464 = vadd.f32 %v232, %v463
    %v465 = vpop.f32.mrf.mxu0
    %v466 = vadd.f32 %v236, %v465
    %467 = vmatprep.mubr.f32.mxu0 0.0
    %468 = vmatmul.mubr.f32.gmra.mxu0 %v255
    %v469 = vpop.f32.mrf.mxu0
    %v470 = vadd.f32 %v232, %v469
    %v471 = vpop.f32.mrf.mxu0
    %v472 = vadd.f32 %v236, %v471
    %473 = vmatprep.mubr.f32.mxu0 0.0
    %474 = vmatmul.mubr.f32.gmra.mxu0 %v258
    %v475 = vpop.f32.mrf.mxu0
    %v476 = vadd.f32 %v232, %v475
    %v477 = vpop.f32.mrf.mxu0
    %v478 = vadd.f32 %v236, %v477
    %479 = vmatprep.mubr.f32.mxu0 0.0
    %480 = vmatmul.mubr.f32.gmra.mxu0 %v261
    %v481 = vpop.f32.mrf.mxu0
    %v482 = vadd.f32 %v232, %v481
    %v483 = vpop.f32.mrf.mxu0
    %v484 = vadd.f32 %v236, %v483
    %485 = vmatprep.mubr.f32.mxu0 0.0
    %486 = vmatmul.mubr.f32.gmra.mxu0 %v264
    %v487 = vpop.f32.mrf.mxu0
    %v488 = vadd.f32 %v232, %v487
    %v489 = vpop.f32.mrf.mxu0
    %v490 = vadd.f32 %v236, %v489
    %491 = vdwg.mxu0
    %492 = vst [vmem:[#allocation2] sm:$0xff] %v333
    %493 = vst [vmem:[#allocation2 + $0x8] sm:$0xff] %v335
    %494 = vst [vmem:[#allocation2 + $0x10] sm:$0xff] %v446
    %495 = vst [vmem:[#allocation2 + $0x18] sm:$0xff] %v448
    %496 = vst [vmem:[#allocation2 + $0x20] sm:$0xff] %v339
    %497 = vst [vmem:[#allocation2 + $0x28] sm:$0xff] %v341
    %498 = vst [vmem:[#allocation2 + $0x30] sm:$0xff] %v452
    %499 = vst [vmem:[#allocation2 + $0x38] sm:$0xff] %v454
    %500 = vst [vmem:[#allocation2 + $0x40] sm:$0xff] %v345
    %501 = vst [vmem:[#allocation2 + $0x48] sm:$0xff] %v347
    %502 = vst [vmem:[#allocation2 + $0x50] sm:$0xff] %v458
    %503 = vst [vmem:[#allocation2 + $0x58] sm:$0xff] %v460
    %504 = vst [vmem:[#allocation2 + $0x60] sm:$0xff] %v351
    %505 = vst [vmem:[#allocation2 + $0x68] sm:$0xff] %v353
    %506 = vst [vmem:[#allocation2 + $0x70] sm:$0xff] %v464
    %507 = vst [vmem:[#allocation2 + $0x78] sm:$0xff] %v466
    %508 = vst [vmem:[#allocation2 + $0x80] sm:$0xff] %v357
    %509 = vst [vmem:[#allocation2 + $0x88] sm:$0xff] %v359
    %510 = vst [vmem:[#allocation2 + $0x90] sm:$0xff] %v470
    %511 = vst [vmem:[#allocation2 + $0x98] sm:$0xff] %v472
    %512 = vst [vmem:[#allocation2 + $0xa0] sm:$0xff] %v363
    %513 = vst [vmem:[#allocation2 + $0xa8] sm:$0xff] %v365
    %514 = vst [vmem:[#allocation2 + $0xb0] sm:$0xff] %v476
    %515 = vst [vmem:[#allocation2 + $0xb8] sm:$0xff] %v478
    %516 = vst [vmem:[#allocation2 + $0xc0] sm:$0xff] %v369
    %517 = vst [vmem:[#allocation2 + $0xc8] sm:$0xff] %v371
    %518 = vst [vmem:[#allocation2 + $0xd0] sm:$0xff] %v482
    %519 = vst [vmem:[#allocation2 + $0xd8] sm:$0xff] %v484
    %520 = vst [vmem:[#allocation2 + $0xe0] sm:$0xff] %v375
    %521 = vst [vmem:[#allocation2 + $0xe8] sm:$0xff] %v377
    %522 = vst [vmem:[#allocation2 + $0xf0] sm:$0xff] %v488
    %523 = vst [vmem:[#allocation2 + $0xf8] sm:$0xff] %v490
    %s524 = smul.u32 0, 4
    %s525 = smul.addr %s524, 8
    %s526 = scalar_lea.vmem [#allocation2], %s525
    %v527 = vld [vmem:[%s526] sm:$0xff]
    %v528 = vld [vmem:[%s526 + $0x8] sm:$0xff]
    %v529 = vld [vmem:[%s526 + $0x10] sm:$0xff]
    %v530 = vld [vmem:[%s526 + $0x18] sm:$0xff]
    %v531 = vadd.f32 %v527, 0.0
    %v532 = vadd.f32 %v528, 0.0
    %v533 = vadd.f32 %v529, 0.0
    %v534 = vadd.f32 %v530, 0.0
    %v535 = vxor.u32 %v531, 2147483648
    %v536 = vmul.f32 %v535, 1.442695
    %v537 = vpow.pop %v536
    %v538 = vadd.f32 %v537, 1.0
    %v539 = vrcp.pop %v538
    %v540 = vmul.f32 1.0, %v539
    %v541 = vxor.u32 %v532, 2147483648
    %v542 = vmul.f32 %v541, 1.442695
    %v543 = vpow.pop %v542
    %v544 = vadd.f32 %v543, 1.0
    %v545 = vrcp.pop %v544
    %v546 = vmul.f32 1.0, %v545
    %v547 = vtanh.pop %v533
    %v548 = vxor.u32 %v534, 2147483648
    %v549 = vmul.f32 %v548, 1.442695
    %v550 = vpow.pop %v549
    %v551 = vadd.f32 %v550, 1.0
    %v552 = vrcp.pop %v551
    %v553 = vmul.f32 1.0, %v552
    %v554 = vmul.f32 %v546, 0.0
    %v555 = vmul.f32 %v540, %v547
    %v556 = vadd.f32 %v554, %v555
    %v557 = vtanh.pop %v556
    %v558 = vmul.f32 %v553, %v557
    %559 = vmatprep.subr.mxu0 %v206
    %560 = vmatpush1.msra.mxu0 %v205
    %561 = vmatprep.subr.mxu0 %v201
    %562 = vmatpush1.msra.mxu0 %v200
    %563 = vmatprep.subr.mxu0 %v196
    %564 = vmatpush1.msra.mxu0 %v195
    %565 = vmatprep.subr.mxu0 %v191
    %566 = vmatpush1.msra.mxu0 %v190
    %567 = vmatprep.subr.mxu0 %v186
    %568 = vmatpush1.msra.mxu0 %v185
    %569 = vmatprep.subr.mxu0 %v181
    %570 = vmatpush1.msra.mxu0 %v180
    %571 = vmatprep.subr.mxu0 %v176
    %572 = vmatpush1.msra.mxu0 %v175
    %573 = vmatprep.subr.mxu0 %v171
    %574 = vmatpush1.msra.mxu0 %v170
    %575 = vmatprep.subr.mxu0 %v166
    %576 = vmatpush1.msra.mxu0 %v165
    %577 = vmatprep.subr.mxu0 %v161
    %578 = vmatpush1.msra.mxu0 %v160
    %579 = vmatprep.subr.mxu0 %v156
    %580 = vmatpush1.msra.mxu0 %v155
    %581 = vmatprep.subr.mxu0 %v151
    %582 = vmatpush1.msra.mxu0 %v150
    %583 = vmatprep.subr.mxu0 %v146
    %584 = vmatpush1.msra.mxu0 %v145
    %585 = vmatprep.subr.mxu0 %v141
    %586 = vmatpush1.msra.mxu0 %v140
    %587 = vmatprep.subr.mxu0 %v136
    %588 = vmatpush1.msra.mxu0 %v135
    %589 = vmatprep.subr.mxu0 %v131
    %590 = vmatpush1.msra.mxu0 %v130
    %591 = vmatprep.subr.mxu0 0.0
    %592 = vmatpush2.msra.mxu0 0.0
    %593 = vmatprep.subr.mxu0 0.0
    %594 = vmatpush2.msra.mxu0 0.0
    %595 = vmatprep.subr.mxu0 0.0
    %596 = vmatpush2.msra.mxu0 0.0
    %597 = vmatprep.subr.mxu0 0.0
    %598 = vmatpush2.msra.mxu0 0.0
    %599 = vmatprep.subr.mxu0 0.0
    %600 = vmatpush2.msra.mxu0 0.0
    %601 = vmatprep.subr.mxu0 0.0
    %602 = vmatpush2.msra.mxu0 0.0
    %603 = vmatprep.subr.mxu0 0.0
    %604 = vmatpush2.msra.mxu0 0.0
    %605 = vmatprep.subr.mxu0 0.0
    %606 = vmatpush2.msra.mxu0 0.0
    %607 = vmatprep.subr.mxu0 0.0
    %608 = vmatpush2.msra.mxu0 0.0
    %609 = vmatprep.subr.mxu0 0.0
    %610 = vmatpush2.msra.mxu0 0.0
    %611 = vmatprep.subr.mxu0 0.0
    %612 = vmatpush2.msra.mxu0 0.0
    %613 = vmatprep.subr.mxu0 0.0
    %614 = vmatpush2.msra.mxu0 0.0
    %615 = vmatprep.subr.mxu0 0.0
    %616 = vmatpush2.msra.mxu0 0.0
    %617 = vmatprep.subr.mxu0 0.0
    %618 = vmatpush2.msra.mxu0 0.0
    %619 = vmatprep.subr.mxu0 0.0
    %620 = vmatpush2.msra.mxu0 0.0
    %621 = vmatprep.subr.mxu0 0.0
    %622 = vmatpush2.msra.mxu0 0.0
    %623 = vmatprep.mubr.f32.mxu0 0.0
    %624 = vmatmul.mubr.f32.gmra.mxu0 %v558
    %v625 = vpop.f32.mrf.mxu0
    %v626 = vadd.f32 0.0, %v625
    %v627 = vpop.f32.mrf.mxu0
    %v628 = vadd.f32 0.0, %v627
    %629 = vdwg.mxu0
    %630 = vmatprep.subr.mxu0 %v208
    %631 = vmatpush1.msra.mxu0 %v207
    %632 = vmatprep.subr.mxu0 %v203
    %633 = vmatpush1.msra.mxu0 %v202
    %634 = vmatprep.subr.mxu0 %v198
    %635 = vmatpush1.msra.mxu0 %v197
    %636 = vmatprep.subr.mxu0 %v193
    %637 = vmatpush1.msra.mxu0 %v192
    %638 = vmatprep.subr.mxu0 %v188
    %639 = vmatpush1.msra.mxu0 %v187
    %640 = vmatprep.subr.mxu0 %v183
    %641 = vmatpush1.msra.mxu0 %v182
    %642 = vmatprep.subr.mxu0 %v178
    %643 = vmatpush1.msra.mxu0 %v177
    %644 = vmatprep.subr.mxu0 %v173
    %645 = vmatpush1.msra.mxu0 %v172
    %646 = vmatprep.subr.mxu0 %v168
    %647 = vmatpush1.msra.mxu0 %v167
    %648 = vmatprep.subr.mxu0 %v163
    %649 = vmatpush1.msra.mxu0 %v162
    %650 = vmatprep.subr.mxu0 %v158
    %651 = vmatpush1.msra.mxu0 %v157
    %652 = vmatprep.subr.mxu0 %v153
    %653 = vmatpush1.msra.mxu0 %v152
    %654 = vmatprep.subr.mxu0 %v148
    %655 = vmatpush1.msra.mxu0 %v147
    %656 = vmatprep.subr.mxu0 %v143
    %657 = vmatpush1.msra.mxu0 %v142
    %658 = vmatprep.subr.mxu0 %v138
    %659 = vmatpush1.msra.mxu0 %v137
    %660 = vmatprep.subr.mxu0 %v133
    %661 = vmatpush1.msra.mxu0 %v132
    %662 = vmatprep.subr.mxu0 0.0
    %663 = vmatpush2.msra.mxu0 0.0
    %664 = vmatprep.subr.mxu0 0.0
    %665 = vmatpush2.msra.mxu0 0.0
    %666 = vmatprep.subr.mxu0 0.0
    %667 = vmatpush2.msra.mxu0 0.0
    %668 = vmatprep.subr.mxu0 0.0
    %669 = vmatpush2.msra.mxu0 0.0
    %670 = vmatprep.subr.mxu0 0.0
    %671 = vmatpush2.msra.mxu0 0.0
    %672 = vmatprep.subr.mxu0 0.0
    %673 = vmatpush2.msra.mxu0 0.0
    %674 = vmatprep.subr.mxu0 0.0
    %675 = vmatpush2.msra.mxu0 0.0
    %676 = vmatprep.subr.mxu0 0.0
    %677 = vmatpush2.msra.mxu0 0.0
    %678 = vmatprep.subr.mxu0 0.0
    %679 = vmatpush2.msra.mxu0 0.0
    %680 = vmatprep.subr.mxu0 0.0
    %681 = vmatpush2.msra.mxu0 0.0
    %682 = vmatprep.subr.mxu0 0.0
    %683 = vmatpush2.msra.mxu0 0.0
    %684 = vmatprep.subr.mxu0 0.0
    %685 = vmatpush2.msra.mxu0 0.0
    %686 = vmatprep.subr.mxu0 0.0
    %687 = vmatpush2.msra.mxu0 0.0
    %688 = vmatprep.subr.mxu0 0.0
    %689 = vmatpush2.msra.mxu0 0.0
    %690 = vmatprep.subr.mxu0 0.0
    %691 = vmatpush2.msra.mxu0 0.0
    %692 = vmatprep.subr.mxu0 0.0
    %693 = vmatpush2.msra.mxu0 0.0
    %694 = vmatprep.mubr.f32.mxu0 0.0
    %695 = vmatmul.mubr.f32.gmra.mxu0 %v558
    %v696 = vpop.f32.mrf.mxu0
    %v697 = vadd.f32 0.0, %v696
    %v698 = vpop.f32.mrf.mxu0
    %v699 = vadd.f32 0.0, %v698
    %700 = vdwg.mxu0
    %701 = vmatprep.subr.mxu0 0.0
    %702 = vmatpush1.msra.mxu0 %v209
    %703 = vmatprep.subr.mxu0 0.0
    %704 = vmatpush1.msra.mxu0 %v204
    %705 = vmatprep.subr.mxu0 0.0
    %706 = vmatpush1.msra.mxu0 %v199
    %707 = vmatprep.subr.mxu0 0.0
    %708 = vmatpush1.msra.mxu0 %v194
    %709 = vmatprep.subr.mxu0 0.0
    %710 = vmatpush1.msra.mxu0 %v189
    %711 = vmatprep.subr.mxu0 0.0
    %712 = vmatpush1.msra.mxu0 %v184
    %713 = vmatprep.subr.mxu0 0.0
    %714 = vmatpush1.msra.mxu0 %v179
    %715 = vmatprep.subr.mxu0 0.0
    %716 = vmatpush1.msra.mxu0 %v174
    %717 = vmatprep.subr.mxu0 0.0
    %718 = vmatpush1.msra.mxu0 %v169
    %719 = vmatprep.subr.mxu0 0.0
    %720 = vmatpush1.msra.mxu0 %v164
    %721 = vmatprep.subr.mxu0 0.0
    %722 = vmatpush1.msra.mxu0 %v159
    %723 = vmatprep.subr.mxu0 0.0
    %724 = vmatpush1.msra.mxu0 %v154
    %725 = vmatprep.subr.mxu0 0.0
    %726 = vmatpush1.msra.mxu0 %v149
    %727 = vmatprep.subr.mxu0 0.0
    %728 = vmatpush1.msra.mxu0 %v144
    %729 = vmatprep.subr.mxu0 0.0
    %730 = vmatpush1.msra.mxu0 %v139
    %731 = vmatprep.subr.mxu0 0.0
    %732 = vmatpush1.msra.mxu0 %v134
    %733 = vmatprep.subr.mxu0 0.0
    %734 = vmatpush2.msra.mxu0 0.0
    %735 = vmatprep.subr.mxu0 0.0
    %736 = vmatpush2.msra.mxu0 0.0
    %737 = vmatprep.subr.mxu0 0.0
    %738 = vmatpush2.msra.mxu0 0.0
    %739 = vmatprep.subr.mxu0 0.0
    %740 = vmatpush2.msra.mxu0 0.0
    %741 = vmatprep.subr.mxu0 0.0
    %742 = vmatpush2.msra.mxu0 0.0
    %743 = vmatprep.subr.mxu0 0.0
    %744 = vmatpush2.msra.mxu0 0.0
    %745 = vmatprep.subr.mxu0 0.0
    %746 = vmatpush2.msra.mxu0 0.0
    %747 = vmatprep.subr.mxu0 0.0
    %748 = vmatpush2.msra.mxu0 0.0
    %749 = vmatprep.subr.mxu0 0.0
    %750 = vmatpush2.msra.mxu0 0.0
    %751 = vmatprep.subr.mxu0 0.0
    %752 = vmatpush2.msra.mxu0 0.0
    %753 = vmatprep.subr.mxu0 0.0
    %754 = vmatpush2.msra.mxu0 0.0
    %755 = vmatprep.subr.mxu0 0.0
    %756 = vmatpush2.msra.mxu0 0.0
    %757 = vmatprep.subr.mxu0 0.0
    %758 = vmatpush2.msra.mxu0 0.0
    %759 = vmatprep.subr.mxu0 0.0
    %760 = vmatpush2.msra.mxu0 0.0
    %761 = vmatprep.subr.mxu0 0.0
    %762 = vmatpush2.msra.mxu0 0.0
    %763 = vmatprep.subr.mxu0 0.0
    %764 = vmatpush2.msra.mxu0 0.0
    %765 = vmatprep.mubr.f32.mxu0 0.0
    %766 = vmatmul.mubr.f32.gmra.mxu0 %v558
    %v767 = vpop.f32.mrf.mxu0
    %v768 = vadd.f32 0.0, %v767
    %v769 = vpop.f32.mrf.mxu0
    %770 = vdwg.mxu0
    %771 = vst [vmem:[#allocation3] sm:$0xff] %v768
    %s772 = smul.u32 1, 4
    %s773 = smul.addr %s772, 8
    %s774 = scalar_lea.vmem [#allocation2], %s773
    %v775 = vld [vmem:[%s774] sm:$0xff]
    %v776 = vld [vmem:[%s774 + $0x8] sm:$0xff]
    %v777 = vld [vmem:[%s774 + $0x10] sm:$0xff]
    %v778 = vld [vmem:[%s774 + $0x18] sm:$0xff]
    %v779 = vadd.f32 %v775, %v626
    %v780 = vadd.f32 %v776, %v628
    %v781 = vadd.f32 %v777, %v697
    %v782 = vadd.f32 %v778, %v699
    %v783 = vxor.u32 %v779, 2147483648
    %v784 = vmul.f32 %v783, 1.442695
    %v785 = vpow.pop %v784
    %v786 = vadd.f32 %v785, 1.0
    %v787 = vrcp.pop %v786
    %v788 = vmul.f32 1.0, %v787
    %v789 = vxor.u32 %v780, 2147483648
    %v790 = vmul.f32 %v789, 1.442695
    %v791 = vpow.pop %v790
    %v792 = vadd.f32 %v791, 1.0
    %v793 = vrcp.pop %v792
    %v794 = vmul.f32 1.0, %v793
    %v795 = vtanh.pop %v781
    %v796 = vxor.u32 %v782, 2147483648
    %v797 = vmul.f32 %v796, 1.442695
    %v798 = vpow.pop %v797
    %v799 = vadd.f32 %v798, 1.0
    %v800 = vrcp.pop %v799
    %v801 = vmul.f32 1.0, %v800
    %v802 = vmul.f32 %v794, %v556
    %v803 = vmul.f32 %v788, %v795
    %v804 = vadd.f32 %v802, %v803
    %v805 = vtanh.pop %v804
    %v806 = vmul.f32 %v801, %v805
    %807 = vmatprep.subr.mxu0 %v206
    %808 = vmatpush1.msra.mxu0 %v205
    %809 = vmatprep.subr.mxu0 %v201
    %810 = vmatpush1.msra.mxu0 %v200
    %811 = vmatprep.subr.mxu0 %v196
    %812 = vmatpush1.msra.mxu0 %v195
    %813 = vmatprep.subr.mxu0 %v191
    %814 = vmatpush1.msra.mxu0 %v190
    %815 = vmatprep.subr.mxu0 %v186
    %816 = vmatpush1.msra.mxu0 %v185
    %817 = vmatprep.subr.mxu0 %v181
    %818 = vmatpush1.msra.mxu0 %v180
    %819 = vmatprep.subr.mxu0 %v176
    %820 = vmatpush1.msra.mxu0 %v175
    %821 = vmatprep.subr.mxu0 %v171
    %822 = vmatpush1.msra.mxu0 %v170
    %823 = vmatprep.subr.mxu0 %v166
    %824 = vmatpush1.msra.mxu0 %v165
    %825 = vmatprep.subr.mxu0 %v161
    %826 = vmatpush1.msra.mxu0 %v160
    %827 = vmatprep.subr.mxu0 %v156
    %828 = vmatpush1.msra.mxu0 %v155
    %829 = vmatprep.subr.mxu0 %v151
    %830 = vmatpush1.msra.mxu0 %v150
    %831 = vmatprep.subr.mxu0 %v146
    %832 = vmatpush1.msra.mxu0 %v145
    %833 = vmatprep.subr.mxu0 %v141
    %834 = vmatpush1.msra.mxu0 %v140
    %835 = vmatprep.subr.mxu0 %v136
    %836 = vmatpush1.msra.mxu0 %v135
    %837 = vmatprep.subr.mxu0 %v131
    %838 = vmatpush1.msra.mxu0 %v130
    %839 = vmatprep.subr.mxu0 0.0
    %840 = vmatpush2.msra.mxu0 0.0
    %841 = vmatprep.subr.mxu0 0.0
    %842 = vmatpush2.msra.mxu0 0.0
    %843 = vmatprep.subr.mxu0 0.0
    %844 = vmatpush2.msra.mxu0 0.0
    %845 = vmatprep.subr.mxu0 0.0
    %846 = vmatpush2.msra.mxu0 0.0
    %847 = vmatprep.subr.mxu0 0.0
    %848 = vmatpush2.msra.mxu0 0.0
    %849 = vmatprep.subr.mxu0 0.0
    %850 = vmatpush2.msra.mxu0 0.0
    %851 = vmatprep.subr.mxu0 0.0
    %852 = vmatpush2.msra.mxu0 0.0
    %853 = vmatprep.subr.mxu0 0.0
    %854 = vmatpush2.msra.mxu0 0.0
    %855 = vmatprep.subr.mxu0 0.0
    %856 = vmatpush2.msra.mxu0 0.0
    %857 = vmatprep.subr.mxu0 0.0
    %858 = vmatpush2.msra.mxu0 0.0
    %859 = vmatprep.subr.mxu0 0.0
    %860 = vmatpush2.msra.mxu0 0.0
    %861 = vmatprep.subr.mxu0 0.0
    %862 = vmatpush2.msra.mxu0 0.0
    %863 = vmatprep.subr.mxu0 0.0
    %864 = vmatpush2.msra.mxu0 0.0
    %865 = vmatprep.subr.mxu0 0.0
    %866 = vmatpush2.msra.mxu0 0.0
    %867 = vmatprep.subr.mxu0 0.0
    %868 = vmatpush2.msra.mxu0 0.0
    %869 = vmatprep.subr.mxu0 0.0
    %870 = vmatpush2.msra.mxu0 0.0
    %871 = vmatprep.mubr.f32.mxu0 0.0
    %872 = vmatmul.mubr.f32.gmra.mxu0 %v806
    %v873 = vpop.f32.mrf.mxu0
    %v874 = vadd.f32 0.0, %v873
    %v875 = vpop.f32.mrf.mxu0
    %v876 = vadd.f32 0.0, %v875
    %877 = vdwg.mxu0
    %878 = vmatprep.subr.mxu0 %v208
    %879 = vmatpush1.msra.mxu0 %v207
    %880 = vmatprep.subr.mxu0 %v203
    %881 = vmatpush1.msra.mxu0 %v202
    %882 = vmatprep.subr.mxu0 %v198
    %883 = vmatpush1.msra.mxu0 %v197
    %884 = vmatprep.subr.mxu0 %v193
    %885 = vmatpush1.msra.mxu0 %v192
    %886 = vmatprep.subr.mxu0 %v188
    %887 = vmatpush1.msra.mxu0 %v187
    %888 = vmatprep.subr.mxu0 %v183
    %889 = vmatpush1.msra.mxu0 %v182
    %890 = vmatprep.subr.mxu0 %v178
    %891 = vmatpush1.msra.mxu0 %v177
    %892 = vmatprep.subr.mxu0 %v173
    %893 = vmatpush1.msra.mxu0 %v172
    %894 = vmatprep.subr.mxu0 %v168
    %895 = vmatpush1.msra.mxu0 %v167
    %896 = vmatprep.subr.mxu0 %v163
    %897 = vmatpush1.msra.mxu0 %v162
    %898 = vmatprep.subr.mxu0 %v158
    %899 = vmatpush1.msra.mxu0 %v157
    %900 = vmatprep.subr.mxu0 %v153
    %901 = vmatpush1.msra.mxu0 %v152
    %902 = vmatprep.subr.mxu0 %v148
    %903 = vmatpush1.msra.mxu0 %v147
    %904 = vmatprep.subr.mxu0 %v143
    %905 = vmatpush1.msra.mxu0 %v142
    %906 = vmatprep.subr.mxu0 %v138
    %907 = vmatpush1.msra.mxu0 %v137
    %908 = vmatprep.subr.mxu0 %v133
    %909 = vmatpush1.msra.mxu0 %v132
    %910 = vmatprep.subr.mxu0 0.0
    %911 = vmatpush2.msra.mxu0 0.0
    %912 = vmatprep.subr.mxu0 0.0
    %913 = vmatpush2.msra.mxu0 0.0
    %914 = vmatprep.subr.mxu0 0.0
    %915 = vmatpush2.msra.mxu0 0.0
    %916 = vmatprep.subr.mxu0 0.0
    %917 = vmatpush2.msra.mxu0 0.0
    %918 = vmatprep.subr.mxu0 0.0
    %919 = vmatpush2.msra.mxu0 0.0
    %920 = vmatprep.subr.mxu0 0.0
    %921 = vmatpush2.msra.mxu0 0.0
    %922 = vmatprep.subr.mxu0 0.0
    %923 = vmatpush2.msra.mxu0 0.0
    %924 = vmatprep.subr.mxu0 0.0
    %925 = vmatpush2.msra.mxu0 0.0
    %926 = vmatprep.subr.mxu0 0.0
    %927 = vmatpush2.msra.mxu0 0.0
    %928 = vmatprep.subr.mxu0 0.0
    %929 = vmatpush2.msra.mxu0 0.0
    %930 = vmatprep.subr.mxu0 0.0
    %931 = vmatpush2.msra.mxu0 0.0
    %932 = vmatprep.subr.mxu0 0.0
    %933 = vmatpush2.msra.mxu0 0.0
    %934 = vmatprep.subr.mxu0 0.0
    %935 = vmatpush2.msra.mxu0 0.0
    %936 = vmatprep.subr.mxu0 0.0
    %937 = vmatpush2.msra.mxu0 0.0
    %938 = vmatprep.subr.mxu0 0.0
    %939 = vmatpush2.msra.mxu0 0.0
    %940 = vmatprep.subr.mxu0 0.0
    %941 = vmatpush2.msra.mxu0 0.0
    %942 = vmatprep.mubr.f32.mxu0 0.0
    %943 = vmatmul.mubr.f32.gmra.mxu0 %v806
    %v944 = vpop.f32.mrf.mxu0
    %v945 = vadd.f32 0.0, %v944
    %v946 = vpop.f32.mrf.mxu0
    %v947 = vadd.f32 0.0, %v946
    %948 = vdwg.mxu0
    %949 = vmatprep.subr.mxu0 0.0
    %950 = vmatpush1.msra.mxu0 %v209
    %951 = vmatprep.subr.mxu0 0.0
    %952 = vmatpush1.msra.mxu0 %v204
    %953 = vmatprep.subr.mxu0 0.0
    %954 = vmatpush1.msra.mxu0 %v199
    %955 = vmatprep.subr.mxu0 0.0
    %956 = vmatpush1.msra.mxu0 %v194
    %957 = vmatprep.subr.mxu0 0.0
    %958 = vmatpush1.msra.mxu0 %v189
    %959 = vmatprep.subr.mxu0 0.0
    %960 = vmatpush1.msra.mxu0 %v184
    %961 = vmatprep.subr.mxu0 0.0
    %962 = vmatpush1.msra.mxu0 %v179
    %963 = vmatprep.subr.mxu0 0.0
    %964 = vmatpush1.msra.mxu0 %v174
    %965 = vmatprep.subr.mxu0 0.0
    %966 = vmatpush1.msra.mxu0 %v169
    %967 = vmatprep.subr.mxu0 0.0
    %968 = vmatpush1.msra.mxu0 %v164
    %969 = vmatprep.subr.mxu0 0.0
    %970 = vmatpush1.msra.mxu0 %v159
    %971 = vmatprep.subr.mxu0 0.0
    %972 = vmatpush1.msra.mxu0 %v154
    %973 = vmatprep.subr.mxu0 0.0
    %974 = vmatpush1.msra.mxu0 %v149
    %975 = vmatprep.subr.mxu0 0.0
    %976 = vmatpush1.msra.mxu0 %v144
    %977 = vmatprep.subr.mxu0 0.0
    %978 = vmatpush1.msra.mxu0 %v139
    %979 = vmatprep.subr.mxu0 0.0
    %980 = vmatpush1.msra.mxu0 %v134
    %981 = vmatprep.subr.mxu0 0.0
    %982 = vmatpush2.msra.mxu0 0.0
    %983 = vmatprep.subr.mxu0 0.0
    %984 = vmatpush2.msra.mxu0 0.0
    %985 = vmatprep.subr.mxu0 0.0
    %986 = vmatpush2.msra.mxu0 0.0
    %987 = vmatprep.subr.mxu0 0.0
    %988 = vmatpush2.msra.mxu0 0.0
    %989 = vmatprep.subr.mxu0 0.0
    %990 = vmatpush2.msra.mxu0 0.0
    %991 = vmatprep.subr.mxu0 0.0
    %992 = vmatpush2.msra.mxu0 0.0
    %993 = vmatprep.subr.mxu0 0.0
    %994 = vmatpush2.msra.mxu0 0.0
    %995 = vmatprep.subr.mxu0 0.0
    %996 = vmatpush2.msra.mxu0 0.0
    %997 = vmatprep.subr.mxu0 0.0
    %998 = vmatpush2.msra.mxu0 0.0
    %999 = vmatprep.subr.mxu0 0.0
    %1000 = vmatpush2.msra.mxu0 0.0
    %1001 = vmatprep.subr.mxu0 0.0
    %1002 = vmatpush2.msra.mxu0 0.0
    %1003 = vmatprep.subr.mxu0 0.0
    %1004 = vmatpush2.msra.mxu0 0.0
    %1005 = vmatprep.subr.mxu0 0.0
    %1006 = vmatpush2.msra.mxu0 0.0
    %1007 = vmatprep.subr.mxu0 0.0
    %1008 = vmatpush2.msra.mxu0 0.0
    %1009 = vmatprep.subr.mxu0 0.0
    %1010 = vmatpush2.msra.mxu0 0.0
    %1011 = vmatprep.subr.mxu0 0.0
    %1012 = vmatpush2.msra.mxu0 0.0
    %1013 = vmatprep.mubr.f32.mxu0 0.0
    %1014 = vmatmul.mubr.f32.gmra.mxu0 %v806
    %v1015 = vpop.f32.mrf.mxu0
    %v1016 = vadd.f32 0.0, %v1015
    %v1017 = vpop.f32.mrf.mxu0
    %1018 = vdwg.mxu0
    %s1019 = scalar_lea.vmem [#allocation3], 8
    %1020 = vst [vmem:[%s1019] sm:$0xff] %v1016
    %s1021 = smul.u32 2, 4
    %s1022 = smul.addr %s1021, 8
    %s1023 = scalar_lea.vmem [#allocation2], %s1022
    %v1024 = vld [vmem:[%s1023] sm:$0xff]
    %v1025 = vld [vmem:[%s1023 + $0x8] sm:$0xff]
    %v1026 = vld [vmem:[%s1023 + $0x10] sm:$0xff]
    %v1027 = vld [vmem:[%s1023 + $0x18] sm:$0xff]
    %v1028 = vadd.f32 %v1024, %v874
    %v1029 = vadd.f32 %v1025, %v876
    %v1030 = vadd.f32 %v1026, %v945
    %v1031 = vadd.f32 %v1027, %v947
    %v1032 = vxor.u32 %v1028, 2147483648
    %v1033 = vmul.f32 %v1032, 1.442695
    %v1034 = vpow.pop %v1033
    %v1035 = vadd.f32 %v1034, 1.0
    %v1036 = vrcp.pop %v1035
    %v1037 = vmul.f32 1.0, %v1036
    %v1038 = vxor.u32 %v1029, 2147483648
    %v1039 = vmul.f32 %v1038, 1.442695
    %v1040 = vpow.pop %v1039
    %v1041 = vadd.f32 %v1040, 1.0
    %v1042 = vrcp.pop %v1041
    %v1043 = vmul.f32 1.0, %v1042
    %v1044 = vtanh.pop %v1030
    %v1045 = vxor.u32 %v1031, 2147483648
    %v1046 = vmul.f32 %v1045, 1.442695
    %v1047 = vpow.pop %v1046
    %v1048 = vadd.f32 %v1047, 1.0
    %v1049 = vrcp.pop %v1048
    %v1050 = vmul.f32 1.0, %v1049
    %v1051 = vmul.f32 %v1043, %v804
    %v1052 = vmul.f32 %v1037, %v1044
    %v1053 = vadd.f32 %v1051, %v1052
    %v1054 = vtanh.pop %v1053
    %v1055 = vmul.f32 %v1050, %v1054
    %1056 = vmatprep.subr.mxu0 %v206
    %1057 = vmatpush1.msra.mxu0 %v205
    %1058 = vmatprep.subr.mxu0 %v201
    %1059 = vmatpush1.msra.mxu0 %v200
    %1060 = vmatprep.subr.mxu0 %v196
    %1061 = vmatpush1.msra.mxu0 %v195
    %1062 = vmatprep.subr.mxu0 %v191
    %1063 = vmatpush1.msra.mxu0 %v190
    %1064 = vmatprep.subr.mxu0 %v186
    %1065 = vmatpush1.msra.mxu0 %v185
    %1066 = vmatprep.subr.mxu0 %v181
    %1067 = vmatpush1.msra.mxu0 %v180
    %1068 = vmatprep.subr.mxu0 %v176
    %1069 = vmatpush1.msra.mxu0 %v175
    %1070 = vmatprep.subr.mxu0 %v171
    %1071 = vmatpush1.msra.mxu0 %v170
    %1072 = vmatprep.subr.mxu0 %v166
    %1073 = vmatpush1.msra.mxu0 %v165
    %1074 = vmatprep.subr.mxu0 %v161
    %1075 = vmatpush1.msra.mxu0 %v160
    %1076 = vmatprep.subr.mxu0 %v156
    %1077 = vmatpush1.msra.mxu0 %v155
    %1078 = vmatprep.subr.mxu0 %v151
    %1079 = vmatpush1.msra.mxu0 %v150
    %1080 = vmatprep.subr.mxu0 %v146
    %1081 = vmatpush1.msra.mxu0 %v145
    %1082 = vmatprep.subr.mxu0 %v141
    %1083 = vmatpush1.msra.mxu0 %v140
    %1084 = vmatprep.subr.mxu0 %v136
    %1085 = vmatpush1.msra.mxu0 %v135
    %1086 = vmatprep.subr.mxu0 %v131
    %1087 = vmatpush1.msra.mxu0 %v130
    %1088 = vmatprep.subr.mxu0 0.0
    %1089 = vmatpush2.msra.mxu0 0.0
    %1090 = vmatprep.subr.mxu0 0.0
    %1091 = vmatpush2.msra.mxu0 0.0
    %1092 = vmatprep.subr.mxu0 0.0
    %1093 = vmatpush2.msra.mxu0 0.0
    %1094 = vmatprep.subr.mxu0 0.0
    %1095 = vmatpush2.msra.mxu0 0.0
    %1096 = vmatprep.subr.mxu0 0.0
    %1097 = vmatpush2.msra.mxu0 0.0
    %1098 = vmatprep.subr.mxu0 0.0
    %1099 = vmatpush2.msra.mxu0 0.0
    %1100 = vmatprep.subr.mxu0 0.0
    %1101 = vmatpush2.msra.mxu0 0.0
    %1102 = vmatprep.subr.mxu0 0.0
    %1103 = vmatpush2.msra.mxu0 0.0
    %1104 = vmatprep.subr.mxu0 0.0
    %1105 = vmatpush2.msra.mxu0 0.0
    %1106 = vmatprep.subr.mxu0 0.0
    %1107 = vmatpush2.msra.mxu0 0.0
    %1108 = vmatprep.subr.mxu0 0.0
    %1109 = vmatpush2.msra.mxu0 0.0
    %1110 = vmatprep.subr.mxu0 0.0
    %1111 = vmatpush2.msra.mxu0 0.0
    %1112 = vmatprep.subr.mxu0 0.0
    %1113 = vmatpush2.msra.mxu0 0.0
    %1114 = vmatprep.subr.mxu0 0.0
    %1115 = vmatpush2.msra.mxu0 0.0
    %1116 = vmatprep.subr.mxu0 0.0
    %1117 = vmatpush2.msra.mxu0 0.0
    %1118 = vmatprep.subr.mxu0 0.0
    %1119 = vmatpush2.msra.mxu0 0.0
    %1120 = vmatprep.mubr.f32.mxu0 0.0
    %1121 = vmatmul.mubr.f32.gmra.mxu0 %v1055
    %v1122 = vpop.f32.mrf.mxu0
    %v1123 = vadd.f32 0.0, %v1122
    %v1124 = vpop.f32.mrf.mxu0
    %v1125 = vadd.f32 0.0, %v1124
    %1126 = vdwg.mxu0
    %1127 = vmatprep.subr.mxu0 %v208
    %1128 = vmatpush1.msra.mxu0 %v207
    %1129 = vmatprep.subr.mxu0 %v203
    %1130 = vmatpush1.msra.mxu0 %v202
    %1131 = vmatprep.subr.mxu0 %v198
    %1132 = vmatpush1.msra.mxu0 %v197
    %1133 = vmatprep.subr.mxu0 %v193
    %1134 = vmatpush1.msra.mxu0 %v192
    %1135 = vmatprep.subr.mxu0 %v188
    %1136 = vmatpush1.msra.mxu0 %v187
    %1137 = vmatprep.subr.mxu0 %v183
    %1138 = vmatpush1.msra.mxu0 %v182
    %1139 = vmatprep.subr.mxu0 %v178
    %1140 = vmatpush1.msra.mxu0 %v177
    %1141 = vmatprep.subr.mxu0 %v173
    %1142 = vmatpush1.msra.mxu0 %v172
    %1143 = vmatprep.subr.mxu0 %v168
    %1144 = vmatpush1.msra.mxu0 %v167
    %1145 = vmatprep.subr.mxu0 %v163
    %1146 = vmatpush1.msra.mxu0 %v162
    %1147 = vmatprep.subr.mxu0 %v158
    %1148 = vmatpush1.msra.mxu0 %v157
    %1149 = vmatprep.subr.mxu0 %v153
    %1150 = vmatpush1.msra.mxu0 %v152
    %1151 = vmatprep.subr.mxu0 %v148
    %1152 = vmatpush1.msra.mxu0 %v147
    %1153 = vmatprep.subr.mxu0 %v143
    %1154 = vmatpush1.msra.mxu0 %v142
    %1155 = vmatprep.subr.mxu0 %v138
    %1156 = vmatpush1.msra.mxu0 %v137
    %1157 = vmatprep.subr.mxu0 %v133
    %1158 = vmatpush1.msra.mxu0 %v132
    %1159 = vmatprep.subr.mxu0 0.0
    %1160 = vmatpush2.msra.mxu0 0.0
    %1161 = vmatprep.subr.mxu0 0.0
    %1162 = vmatpush2.msra.mxu0 0.0
    %1163 = vmatprep.subr.mxu0 0.0
    %1164 = vmatpush2.msra.mxu0 0.0
    %1165 = vmatprep.subr.mxu0 0.0
    %1166 = vmatpush2.msra.mxu0 0.0
    %1167 = vmatprep.subr.mxu0 0.0
    %1168 = vmatpush2.msra.mxu0 0.0
    %1169 = vmatprep.subr.mxu0 0.0
    %1170 = vmatpush2.msra.mxu0 0.0
    %1171 = vmatprep.subr.mxu0 0.0
    %1172 = vmatpush2.msra.mxu0 0.0
    %1173 = vmatprep.subr.mxu0 0.0
    %1174 = vmatpush2.msra.mxu0 0.0
    %1175 = vmatprep.subr.mxu0 0.0
    %1176 = vmatpush2.msra.mxu0 0.0
    %1177 = vmatprep.subr.mxu0 0.0
    %1178 = vmatpush2.msra.mxu0 0.0
    %1179 = vmatprep.subr.mxu0 0.0
    %1180 = vmatpush2.msra.mxu0 0.0
    %1181 = vmatprep.subr.mxu0 0.0
    %1182 = vmatpush2.msra.mxu0 0.0
    %1183 = vmatprep.subr.mxu0 0.0
    %1184 = vmatpush2.msra.mxu0 0.0
    %1185 = vmatprep.subr.mxu0 0.0
    %1186 = vmatpush2.msra.mxu0 0.0
    %1187 = vmatprep.subr.mxu0 0.0
    %1188 = vmatpush2.msra.mxu0 0.0
    %1189 = vmatprep.subr.mxu0 0.0
    %1190 = vmatpush2.msra.mxu0 0.0
    %1191 = vmatprep.mubr.f32.mxu0 0.0
    %1192 = vmatmul.mubr.f32.gmra.mxu0 %v1055
    %v1193 = vpop.f32.mrf.mxu0
    %v1194 = vadd.f32 0.0, %v1193
    %v1195 = vpop.f32.mrf.mxu0
    %v1196 = vadd.f32 0.0, %v1195
    %1197 = vdwg.mxu0
    %1198 = vmatprep.subr.mxu0 0.0
    %1199 = vmatpush1.msra.mxu0 %v209
    %1200 = vmatprep.subr.mxu0 0.0
    %1201 = vmatpush1.msra.mxu0 %v204
    %1202 = vmatprep.subr.mxu0 0.0
    %1203 = vmatpush1.msra.mxu0 %v199
    %1204 = vmatprep.subr.mxu0 0.0
    %1205 = vmatpush1.msra.mxu0 %v194
    %1206 = vmatprep.subr.mxu0 0.0
    %1207 = vmatpush1.msra.mxu0 %v189
    %1208 = vmatprep.subr.mxu0 0.0
    %1209 = vmatpush1.msra.mxu0 %v184
    %1210 = vmatprep.subr.mxu0 0.0
    %1211 = vmatpush1.msra.mxu0 %v179
    %1212 = vmatprep.subr.mxu0 0.0
    %1213 = vmatpush1.msra.mxu0 %v174
    %1214 = vmatprep.subr.mxu0 0.0
    %1215 = vmatpush1.msra.mxu0 %v169
    %1216 = vmatprep.subr.mxu0 0.0
    %1217 = vmatpush1.msra.mxu0 %v164
    %1218 = vmatprep.subr.mxu0 0.0
    %1219 = vmatpush1.msra.mxu0 %v159
    %1220 = vmatprep.subr.mxu0 0.0
    %1221 = vmatpush1.msra.mxu0 %v154
    %1222 = vmatprep.subr.mxu0 0.0
    %1223 = vmatpush1.msra.mxu0 %v149
    %1224 = vmatprep.subr.mxu0 0.0
    %1225 = vmatpush1.msra.mxu0 %v144
    %1226 = vmatprep.subr.mxu0 0.0
    %1227 = vmatpush1.msra.mxu0 %v139
    %1228 = vmatprep.subr.mxu0 0.0
    %1229 = vmatpush1.msra.mxu0 %v134
    %1230 = vmatprep.subr.mxu0 0.0
    %1231 = vmatpush2.msra.mxu0 0.0
    %1232 = vmatprep.subr.mxu0 0.0
    %1233 = vmatpush2.msra.mxu0 0.0
    %1234 = vmatprep.subr.mxu0 0.0
    %1235 = vmatpush2.msra.mxu0 0.0
    %1236 = vmatprep.subr.mxu0 0.0
    %1237 = vmatpush2.msra.mxu0 0.0
    %1238 = vmatprep.subr.mxu0 0.0
    %1239 = vmatpush2.msra.mxu0 0.0
    %1240 = vmatprep.subr.mxu0 0.0
    %1241 = vmatpush2.msra.mxu0 0.0
    %1242 = vmatprep.subr.mxu0 0.0
    %1243 = vmatpush2.msra.mxu0 0.0
    %1244 = vmatprep.subr.mxu0 0.0
    %1245 = vmatpush2.msra.mxu0 0.0
    %1246 = vmatprep.subr.mxu0 0.0
    %1247 = vmatpush2.msra.mxu0 0.0
    %1248 = vmatprep.subr.mxu0 0.0
    %1249 = vmatpush2.msra.mxu0 0.0
    %1250 = vmatprep.subr.mxu0 0.0
    %1251 = vmatpush2.msra.mxu0 0.0
    %1252 = vmatprep.subr.mxu0 0.0
    %1253 = vmatpush2.msra.mxu0 0.0
    %1254 = vmatprep.subr.mxu0 0.0
    %1255 = vmatpush2.msra.mxu0 0.0
    %1256 = vmatprep.subr.mxu0 0.0
    %1257 = vmatpush2.msra.mxu0 0.0
    %1258 = vmatprep.subr.mxu0 0.0
    %1259 = vmatpush2.msra.mxu0 0.0
    %1260 = vmatprep.subr.mxu0 0.0
    %1261 = vmatpush2.msra.mxu0 0.0
    %1262 = vmatprep.mubr.f32.mxu0 0.0
    %1263 = vmatmul.mubr.f32.gmra.mxu0 %v1055
    %v1264 = vpop.f32.mrf.mxu0
    %v1265 = vadd.f32 0.0, %v1264
    %v1266 = vpop.f32.mrf.mxu0
    %1267 = vdwg.mxu0
    %s1268 = scalar_lea.vmem [#allocation3], 16
    %1269 = vst [vmem:[%s1268] sm:$0xff] %v1265
    %s1270 = smul.u32 3, 4
    %s1271 = smul.addr %s1270, 8
    %s1272 = scalar_lea.vmem [#allocation2], %s1271
    %v1273 = vld [vmem:[%s1272] sm:$0xff]
    %v1274 = vld [vmem:[%s1272 + $0x8] sm:$0xff]
    %v1275 = vld [vmem:[%s1272 + $0x10] sm:$0xff]
    %v1276 = vld [vmem:[%s1272 + $0x18] sm:$0xff]
    %v1277 = vadd.f32 %v1273, %v1123
    %v1278 = vadd.f32 %v1274, %v1125
    %v1279 = vadd.f32 %v1275, %v1194
    %v1280 = vadd.f32 %v1276, %v1196
    %v1281 = vxor.u32 %v1277, 2147483648
    %v1282 = vmul.f32 %v1281, 1.442695
    %v1283 = vpow.pop %v1282
    %v1284 = vadd.f32 %v1283, 1.0
    %v1285 = vrcp.pop %v1284
    %v1286 = vmul.f32 1.0, %v1285
    %v1287 = vxor.u32 %v1278, 2147483648
    %v1288 = vmul.f32 %v1287, 1.442695
    %v1289 = vpow.pop %v1288
    %v1290 = vadd.f32 %v1289, 1.0
    %v1291 = vrcp.pop %v1290
    %v1292 = vmul.f32 1.0, %v1291
    %v1293 = vtanh.pop %v1279
    %v1294 = vxor.u32 %v1280, 2147483648
    %v1295 = vmul.f32 %v1294, 1.442695
    %v1296 = vpow.pop %v1295
    %v1297 = vadd.f32 %v1296, 1.0
    %v1298 = vrcp.pop %v1297
    %v1299 = vmul.f32 1.0, %v1298
    %v1300 = vmul.f32 %v1292, %v1053
    %v1301 = vmul.f32 %v1286, %v1293
    %v1302 = vadd.f32 %v1300, %v1301
    %v1303 = vtanh.pop %v1302
    %v1304 = vmul.f32 %v1299, %v1303
    %1305 = vmatprep.subr.mxu0 %v206
    %1306 = vmatpush1.msra.mxu0 %v205
    %1307 = vmatprep.subr.mxu0 %v201
    %1308 = vmatpush1.msra.mxu0 %v200
    %1309 = vmatprep.subr.mxu0 %v196
    %1310 = vmatpush1.msra.mxu0 %v195
    %1311 = vmatprep.subr.mxu0 %v191
    %1312 = vmatpush1.msra.mxu0 %v190
    %1313 = vmatprep.subr.mxu0 %v186
    %1314 = vmatpush1.msra.mxu0 %v185
    %1315 = vmatprep.subr.mxu0 %v181
    %1316 = vmatpush1.msra.mxu0 %v180
    %1317 = vmatprep.subr.mxu0 %v176
    %1318 = vmatpush1.msra.mxu0 %v175
    %1319 = vmatprep.subr.mxu0 %v171
    %1320 = vmatpush1.msra.mxu0 %v170
    %1321 = vmatprep.subr.mxu0 %v166
    %1322 = vmatpush1.msra.mxu0 %v165
    %1323 = vmatprep.subr.mxu0 %v161
    %1324 = vmatpush1.msra.mxu0 %v160
    %1325 = vmatprep.subr.mxu0 %v156
    %1326 = vmatpush1.msra.mxu0 %v155
    %1327 = vmatprep.subr.mxu0 %v151
    %1328 = vmatpush1.msra.mxu0 %v150
    %1329 = vmatprep.subr.mxu0 %v146
    %1330 = vmatpush1.msra.mxu0 %v145
    %1331 = vmatprep.subr.mxu0 %v141
    %1332 = vmatpush1.msra.mxu0 %v140
    %1333 = vmatprep.subr.mxu0 %v136
    %1334 = vmatpush1.msra.mxu0 %v135
    %1335 = vmatprep.subr.mxu0 %v131
    %1336 = vmatpush1.msra.mxu0 %v130
    %1337 = vmatprep.subr.mxu0 0.0
    %1338 = vmatpush2.msra.mxu0 0.0
    %1339 = vmatprep.subr.mxu0 0.0
    %1340 = vmatpush2.msra.mxu0 0.0
    %1341 = vmatprep.subr.mxu0 0.0
    %1342 = vmatpush2.msra.mxu0 0.0
    %1343 = vmatprep.subr.mxu0 0.0
    %1344 = vmatpush2.msra.mxu0 0.0
    %1345 = vmatprep.subr.mxu0 0.0
    %1346 = vmatpush2.msra.mxu0 0.0
    %1347 = vmatprep.subr.mxu0 0.0
    %1348 = vmatpush2.msra.mxu0 0.0
    %1349 = vmatprep.subr.mxu0 0.0
    %1350 = vmatpush2.msra.mxu0 0.0
    %1351 = vmatprep.subr.mxu0 0.0
    %1352 = vmatpush2.msra.mxu0 0.0
    %1353 = vmatprep.subr.mxu0 0.0
    %1354 = vmatpush2.msra.mxu0 0.0
    %1355 = vmatprep.subr.mxu0 0.0
    %1356 = vmatpush2.msra.mxu0 0.0
    %1357 = vmatprep.subr.mxu0 0.0
    %1358 = vmatpush2.msra.mxu0 0.0
    %1359 = vmatprep.subr.mxu0 0.0
    %1360 = vmatpush2.msra.mxu0 0.0
    %1361 = vmatprep.subr.mxu0 0.0
    %1362 = vmatpush2.msra.mxu0 0.0
    %1363 = vmatprep.subr.mxu0 0.0
    %1364 = vmatpush2.msra.mxu0 0.0
    %1365 = vmatprep.subr.mxu0 0.0
    %1366 = vmatpush2.msra.mxu0 0.0
    %1367 = vmatprep.subr.mxu0 0.0
    %1368 = vmatpush2.msra.mxu0 0.0
    %1369 = vmatprep.mubr.f32.mxu0 0.0
    %1370 = vmatmul.mubr.f32.gmra.mxu0 %v1304
    %v1371 = vpop.f32.mrf.mxu0
    %v1372 = vadd.f32 0.0, %v1371
    %v1373 = vpop.f32.mrf.mxu0
    %v1374 = vadd.f32 0.0, %v1373
    %1375 = vdwg.mxu0
    %1376 = vmatprep.subr.mxu0 %v208
    %1377 = vmatpush1.msra.mxu0 %v207
    %1378 = vmatprep.subr.mxu0 %v203
    %1379 = vmatpush1.msra.mxu0 %v202
    %1380 = vmatprep.subr.mxu0 %v198
    %1381 = vmatpush1.msra.mxu0 %v197
    %1382 = vmatprep.subr.mxu0 %v193
    %1383 = vmatpush1.msra.mxu0 %v192
    %1384 = vmatprep.subr.mxu0 %v188
    %1385 = vmatpush1.msra.mxu0 %v187
    %1386 = vmatprep.subr.mxu0 %v183
    %1387 = vmatpush1.msra.mxu0 %v182
    %1388 = vmatprep.subr.mxu0 %v178
    %1389 = vmatpush1.msra.mxu0 %v177
    %1390 = vmatprep.subr.mxu0 %v173
    %1391 = vmatpush1.msra.mxu0 %v172
    %1392 = vmatprep.subr.mxu0 %v168
    %1393 = vmatpush1.msra.mxu0 %v167
    %1394 = vmatprep.subr.mxu0 %v163
    %1395 = vmatpush1.msra.mxu0 %v162
    %1396 = vmatprep.subr.mxu0 %v158
    %1397 = vmatpush1.msra.mxu0 %v157
    %1398 = vmatprep.subr.mxu0 %v153
    %1399 = vmatpush1.msra.mxu0 %v152
    %1400 = vmatprep.subr.mxu0 %v148
    %1401 = vmatpush1.msra.mxu0 %v147
    %1402 = vmatprep.subr.mxu0 %v143
    %1403 = vmatpush1.msra.mxu0 %v142
    %1404 = vmatprep.subr.mxu0 %v138
    %1405 = vmatpush1.msra.mxu0 %v137
    %1406 = vmatprep.subr.mxu0 %v133
    %1407 = vmatpush1.msra.mxu0 %v132
    %1408 = vmatprep.subr.mxu0 0.0
    %1409 = vmatpush2.msra.mxu0 0.0
    %1410 = vmatprep.subr.mxu0 0.0
    %1411 = vmatpush2.msra.mxu0 0.0
    %1412 = vmatprep.subr.mxu0 0.0
    %1413 = vmatpush2.msra.mxu0 0.0
    %1414 = vmatprep.subr.mxu0 0.0
    %1415 = vmatpush2.msra.mxu0 0.0
    %1416 = vmatprep.subr.mxu0 0.0
    %1417 = vmatpush2.msra.mxu0 0.0
    %1418 = vmatprep.subr.mxu0 0.0
    %1419 = vmatpush2.msra.mxu0 0.0
    %1420 = vmatprep.subr.mxu0 0.0
    %1421 = vmatpush2.msra.mxu0 0.0
    %1422 = vmatprep.subr.mxu0 0.0
    %1423 = vmatpush2.msra.mxu0 0.0
    %1424 = vmatprep.subr.mxu0 0.0
    %1425 = vmatpush2.msra.mxu0 0.0
    %1426 = vmatprep.subr.mxu0 0.0
    %1427 = vmatpush2.msra.mxu0 0.0
    %1428 = vmatprep.subr.mxu0 0.0
    %1429 = vmatpush2.msra.mxu0 0.0
    %1430 = vmatprep.subr.mxu0 0.0
    %1431 = vmatpush2.msra.mxu0 0.0
    %1432 = vmatprep.subr.mxu0 0.0
    %1433 = vmatpush2.msra.mxu0 0.0
    %1434 = vmatprep.subr.mxu0 0.0
    %1435 = vmatpush2.msra.mxu0 0.0
    %1436 = vmatprep.subr.mxu0 0.0
    %1437 = vmatpush2.msra.mxu0 0.0
    %1438 = vmatprep.subr.mxu0 0.0
    %1439 = vmatpush2.msra.mxu0 0.0
    %1440 = vmatprep.mubr.f32.mxu0 0.0
    %1441 = vmatmul.mubr.f32.gmra.mxu0 %v1304
    %v1442 = vpop.f32.mrf.mxu0
    %v1443 = vadd.f32 0.0, %v1442
    %v1444 = vpop.f32.mrf.mxu0
    %v1445 = vadd.f32 0.0, %v1444
    %1446 = vdwg.mxu0
    %1447 = vmatprep.subr.mxu0 0.0
    %1448 = vmatpush1.msra.mxu0 %v209
    %1449 = vmatprep.subr.mxu0 0.0
    %1450 = vmatpush1.msra.mxu0 %v204
    %1451 = vmatprep.subr.mxu0 0.0
    %1452 = vmatpush1.msra.mxu0 %v199
    %1453 = vmatprep.subr.mxu0 0.0
    %1454 = vmatpush1.msra.mxu0 %v194
    %1455 = vmatprep.subr.mxu0 0.0
    %1456 = vmatpush1.msra.mxu0 %v189
    %1457 = vmatprep.subr.mxu0 0.0
    %1458 = vmatpush1.msra.mxu0 %v184
    %1459 = vmatprep.subr.mxu0 0.0
    %1460 = vmatpush1.msra.mxu0 %v179
    %1461 = vmatprep.subr.mxu0 0.0
    %1462 = vmatpush1.msra.mxu0 %v174
    %1463 = vmatprep.subr.mxu0 0.0
    %1464 = vmatpush1.msra.mxu0 %v169
    %1465 = vmatprep.subr.mxu0 0.0
    %1466 = vmatpush1.msra.mxu0 %v164
    %1467 = vmatprep.subr.mxu0 0.0
    %1468 = vmatpush1.msra.mxu0 %v159
    %1469 = vmatprep.subr.mxu0 0.0
    %1470 = vmatpush1.msra.mxu0 %v154
    %1471 = vmatprep.subr.mxu0 0.0
    %1472 = vmatpush1.msra.mxu0 %v149
    %1473 = vmatprep.subr.mxu0 0.0
    %1474 = vmatpush1.msra.mxu0 %v144
    %1475 = vmatprep.subr.mxu0 0.0
    %1476 = vmatpush1.msra.mxu0 %v139
    %1477 = vmatprep.subr.mxu0 0.0
    %1478 = vmatpush1.msra.mxu0 %v134
    %1479 = vmatprep.subr.mxu0 0.0
    %1480 = vmatpush2.msra.mxu0 0.0
    %1481 = vmatprep.subr.mxu0 0.0
    %1482 = vmatpush2.msra.mxu0 0.0
    %1483 = vmatprep.subr.mxu0 0.0
    %1484 = vmatpush2.msra.mxu0 0.0
    %1485 = vmatprep.subr.mxu0 0.0
    %1486 = vmatpush2.msra.mxu0 0.0
    %1487 = vmatprep.subr.mxu0 0.0
    %1488 = vmatpush2.msra.mxu0 0.0
    %1489 = vmatprep.subr.mxu0 0.0
    %1490 = vmatpush2.msra.mxu0 0.0
    %1491 = vmatprep.subr.mxu0 0.0
    %1492 = vmatpush2.msra.mxu0 0.0
    %1493 = vmatprep.subr.mxu0 0.0
    %1494 = vmatpush2.msra.mxu0 0.0
    %1495 = vmatprep.subr.mxu0 0.0
    %1496 = vmatpush2.msra.mxu0 0.0
    %1497 = vmatprep.subr.mxu0 0.0
    %1498 = vmatpush2.msra.mxu0 0.0
    %1499 = vmatprep.subr.mxu0 0.0
    %1500 = vmatpush2.msra.mxu0 0.0
    %1501 = vmatprep.subr.mxu0 0.0
    %1502 = vmatpush2.msra.mxu0 0.0
    %1503 = vmatprep.subr.mxu0 0.0
    %1504 = vmatpush2.msra.mxu0 0.0
    %1505 = vmatprep.subr.mxu0 0.0
    %1506 = vmatpush2.msra.mxu0 0.0
    %1507 = vmatprep.subr.mxu0 0.0
    %1508 = vmatpush2.msra.mxu0 0.0
    %1509 = vmatprep.subr.mxu0 0.0
    %1510 = vmatpush2.msra.mxu0 0.0
    %1511 = vmatprep.mubr.f32.mxu0 0.0
    %1512 = vmatmul.mubr.f32.gmra.mxu0 %v1304
    %v1513 = vpop.f32.mrf.mxu0
    %v1514 = vadd.f32 0.0, %v1513
    %v1515 = vpop.f32.mrf.mxu0
    %1516 = vdwg.mxu0
    %s1517 = scalar_lea.vmem [#allocation3], 24
    %1518 = vst [vmem:[%s1517] sm:$0xff] %v1514
    %s1519 = smul.u32 4, 4
    %s1520 = smul.addr %s1519, 8
    %s1521 = scalar_lea.vmem [#allocation2], %s1520
    %v1522 = vld [vmem:[%s1521] sm:$0xff]
    %v1523 = vld [vmem:[%s1521 + $0x8] sm:$0xff]
    %v1524 = vld [vmem:[%s1521 + $0x10] sm:$0xff]
    %v1525 = vld [vmem:[%s1521 + $0x18] sm:$0xff]
    %v1526 = vadd.f32 %v1522, %v1372
    %v1527 = vadd.f32 %v1523, %v1374
    %v1528 = vadd.f32 %v1524, %v1443
    %v1529 = vadd.f32 %v1525, %v1445
    %v1530 = vxor.u32 %v1526, 2147483648
    %v1531 = vmul.f32 %v1530, 1.442695
    %v1532 = vpow.pop %v1531
    %v1533 = vadd.f32 %v1532, 1.0
    %v1534 = vrcp.pop %v1533
    %v1535 = vmul.f32 1.0, %v1534
    %v1536 = vxor.u32 %v1527, 2147483648
    %v1537 = vmul.f32 %v1536, 1.442695
    %v1538 = vpow.pop %v1537
    %v1539 = vadd.f32 %v1538, 1.0
    %v1540 = vrcp.pop %v1539
    %v1541 = vmul.f32 1.0, %v1540
    %v1542 = vtanh.pop %v1528
    %v1543 = vxor.u32 %v1529, 2147483648
    %v1544 = vmul.f32 %v1543, 1.442695
    %v1545 = vpow.pop %v1544
    %v1546 = vadd.f32 %v1545, 1.0
    %v1547 = vrcp.pop %v1546
    %v1548 = vmul.f32 1.0, %v1547
    %v1549 = vmul.f32 %v1541, %v1302
    %v1550 = vmul.f32 %v1535, %v1542
    %v1551 = vadd.f32 %v1549, %v1550
    %v1552 = vtanh.pop %v1551
    %v1553 = vmul.f32 %v1548, %v1552
    %1554 = vmatprep.subr.mxu0 %v206
    %1555 = vmatpush1.msra.mxu0 %v205
    %1556 = vmatprep.subr.mxu0 %v201
    %1557 = vmatpush1.msra.mxu0 %v200
    %1558 = vmatprep.subr.mxu0 %v196
    %1559 = vmatpush1.msra.mxu0 %v195
    %1560 = vmatprep.subr.mxu0 %v191
    %1561 = vmatpush1.msra.mxu0 %v190
    %1562 = vmatprep.subr.mxu0 %v186
    %1563 = vmatpush1.msra.mxu0 %v185
    %1564 = vmatprep.subr.mxu0 %v181
    %1565 = vmatpush1.msra.mxu0 %v180
    %1566 = vmatprep.subr.mxu0 %v176
    %1567 = vmatpush1.msra.mxu0 %v175
    %1568 = vmatprep.subr.mxu0 %v171
    %1569 = vmatpush1.msra.mxu0 %v170
    %1570 = vmatprep.subr.mxu0 %v166
    %1571 = vmatpush1.msra.mxu0 %v165
    %1572 = vmatprep.subr.mxu0 %v161
    %1573 = vmatpush1.msra.mxu0 %v160
    %1574 = vmatprep.subr.mxu0 %v156
    %1575 = vmatpush1.msra.mxu0 %v155
    %1576 = vmatprep.subr.mxu0 %v151
    %1577 = vmatpush1.msra.mxu0 %v150
    %1578 = vmatprep.subr.mxu0 %v146
    %1579 = vmatpush1.msra.mxu0 %v145
    %1580 = vmatprep.subr.mxu0 %v141
    %1581 = vmatpush1.msra.mxu0 %v140
    %1582 = vmatprep.subr.mxu0 %v136
    %1583 = vmatpush1.msra.mxu0 %v135
    %1584 = vmatprep.subr.mxu0 %v131
    %1585 = vmatpush1.msra.mxu0 %v130
    %1586 = vmatprep.subr.mxu0 0.0
    %1587 = vmatpush2.msra.mxu0 0.0
    %1588 = vmatprep.subr.mxu0 0.0
    %1589 = vmatpush2.msra.mxu0 0.0
    %1590 = vmatprep.subr.mxu0 0.0
    %1591 = vmatpush2.msra.mxu0 0.0
    %1592 = vmatprep.subr.mxu0 0.0
    %1593 = vmatpush2.msra.mxu0 0.0
    %1594 = vmatprep.subr.mxu0 0.0
    %1595 = vmatpush2.msra.mxu0 0.0
    %1596 = vmatprep.subr.mxu0 0.0
    %1597 = vmatpush2.msra.mxu0 0.0
    %1598 = vmatprep.subr.mxu0 0.0
    %1599 = vmatpush2.msra.mxu0 0.0
    %1600 = vmatprep.subr.mxu0 0.0
    %1601 = vmatpush2.msra.mxu0 0.0
    %1602 = vmatprep.subr.mxu0 0.0
    %1603 = vmatpush2.msra.mxu0 0.0
    %1604 = vmatprep.subr.mxu0 0.0
    %1605 = vmatpush2.msra.mxu0 0.0
    %1606 = vmatprep.subr.mxu0 0.0
    %1607 = vmatpush2.msra.mxu0 0.0
    %1608 = vmatprep.subr.mxu0 0.0
    %1609 = vmatpush2.msra.mxu0 0.0
    %1610 = vmatprep.subr.mxu0 0.0
    %1611 = vmatpush2.msra.mxu0 0.0
    %1612 = vmatprep.subr.mxu0 0.0
    %1613 = vmatpush2.msra.mxu0 0.0
    %1614 = vmatprep.subr.mxu0 0.0
    %1615 = vmatpush2.msra.mxu0 0.0
    %1616 = vmatprep.subr.mxu0 0.0
    %1617 = vmatpush2.msra.mxu0 0.0
    %1618 = vmatprep.mubr.f32.mxu0 0.0
    %1619 = vmatmul.mubr.f32.gmra.mxu0 %v1553
    %v1620 = vpop.f32.mrf.mxu0
    %v1621 = vadd.f32 0.0, %v1620
    %v1622 = vpop.f32.mrf.mxu0
    %v1623 = vadd.f32 0.0, %v1622
    %1624 = vdwg.mxu0
    %1625 = vmatprep.subr.mxu0 %v208
    %1626 = vmatpush1.msra.mxu0 %v207
    %1627 = vmatprep.subr.mxu0 %v203
    %1628 = vmatpush1.msra.mxu0 %v202
    %1629 = vmatprep.subr.mxu0 %v198
    %1630 = vmatpush1.msra.mxu0 %v197
    %1631 = vmatprep.subr.mxu0 %v193
    %1632 = vmatpush1.msra.mxu0 %v192
    %1633 = vmatprep.subr.mxu0 %v188
    %1634 = vmatpush1.msra.mxu0 %v187
    %1635 = vmatprep.subr.mxu0 %v183
    %1636 = vmatpush1.msra.mxu0 %v182
    %1637 = vmatprep.subr.mxu0 %v178
    %1638 = vmatpush1.msra.mxu0 %v177
    %1639 = vmatprep.subr.mxu0 %v173
    %1640 = vmatpush1.msra.mxu0 %v172
    %1641 = vmatprep.subr.mxu0 %v168
    %1642 = vmatpush1.msra.mxu0 %v167
    %1643 = vmatprep.subr.mxu0 %v163
    %1644 = vmatpush1.msra.mxu0 %v162
    %1645 = vmatprep.subr.mxu0 %v158
    %1646 = vmatpush1.msra.mxu0 %v157
    %1647 = vmatprep.subr.mxu0 %v153
    %1648 = vmatpush1.msra.mxu0 %v152
    %1649 = vmatprep.subr.mxu0 %v148
    %1650 = vmatpush1.msra.mxu0 %v147
    %1651 = vmatprep.subr.mxu0 %v143
    %1652 = vmatpush1.msra.mxu0 %v142
    %1653 = vmatprep.subr.mxu0 %v138
    %1654 = vmatpush1.msra.mxu0 %v137
    %1655 = vmatprep.subr.mxu0 %v133
    %1656 = vmatpush1.msra.mxu0 %v132
    %1657 = vmatprep.subr.mxu0 0.0
    %1658 = vmatpush2.msra.mxu0 0.0
    %1659 = vmatprep.subr.mxu0 0.0
    %1660 = vmatpush2.msra.mxu0 0.0
    %1661 = vmatprep.subr.mxu0 0.0
    %1662 = vmatpush2.msra.mxu0 0.0
    %1663 = vmatprep.subr.mxu0 0.0
    %1664 = vmatpush2.msra.mxu0 0.0
    %1665 = vmatprep.subr.mxu0 0.0
    %1666 = vmatpush2.msra.mxu0 0.0
    %1667 = vmatprep.subr.mxu0 0.0
    %1668 = vmatpush2.msra.mxu0 0.0
    %1669 = vmatprep.subr.mxu0 0.0
    %1670 = vmatpush2.msra.mxu0 0.0
    %1671 = vmatprep.subr.mxu0 0.0
    %1672 = vmatpush2.msra.mxu0 0.0
    %1673 = vmatprep.subr.mxu0 0.0
    %1674 = vmatpush2.msra.mxu0 0.0
    %1675 = vmatprep.subr.mxu0 0.0
    %1676 = vmatpush2.msra.mxu0 0.0
    %1677 = vmatprep.subr.mxu0 0.0
    %1678 = vmatpush2.msra.mxu0 0.0
    %1679 = vmatprep.subr.mxu0 0.0
    %1680 = vmatpush2.msra.mxu0 0.0
    %1681 = vmatprep.subr.mxu0 0.0
    %1682 = vmatpush2.msra.mxu0 0.0
    %1683 = vmatprep.subr.mxu0 0.0
    %1684 = vmatpush2.msra.mxu0 0.0
    %1685 = vmatprep.subr.mxu0 0.0
    %1686 = vmatpush2.msra.mxu0 0.0
    %1687 = vmatprep.subr.mxu0 0.0
    %1688 = vmatpush2.msra.mxu0 0.0
    %1689 = vmatprep.mubr.f32.mxu0 0.0
    %1690 = vmatmul.mubr.f32.gmra.mxu0 %v1553
    %v1691 = vpop.f32.mrf.mxu0
    %v1692 = vadd.f32 0.0, %v1691
    %v1693 = vpop.f32.mrf.mxu0
    %v1694 = vadd.f32 0.0, %v1693
    %1695 = vdwg.mxu0
    %1696 = vmatprep.subr.mxu0 0.0
    %1697 = vmatpush1.msra.mxu0 %v209
    %1698 = vmatprep.subr.mxu0 0.0
    %1699 = vmatpush1.msra.mxu0 %v204
    %1700 = vmatprep.subr.mxu0 0.0
    %1701 = vmatpush1.msra.mxu0 %v199
    %1702 = vmatprep.subr.mxu0 0.0
    %1703 = vmatpush1.msra.mxu0 %v194
    %1704 = vmatprep.subr.mxu0 0.0
    %1705 = vmatpush1.msra.mxu0 %v189
    %1706 = vmatprep.subr.mxu0 0.0
    %1707 = vmatpush1.msra.mxu0 %v184
    %1708 = vmatprep.subr.mxu0 0.0
    %1709 = vmatpush1.msra.mxu0 %v179
    %1710 = vmatprep.subr.mxu0 0.0
    %1711 = vmatpush1.msra.mxu0 %v174
    %1712 = vmatprep.subr.mxu0 0.0
    %1713 = vmatpush1.msra.mxu0 %v169
    %1714 = vmatprep.subr.mxu0 0.0
    %1715 = vmatpush1.msra.mxu0 %v164
    %1716 = vmatprep.subr.mxu0 0.0
    %1717 = vmatpush1.msra.mxu0 %v159
    %1718 = vmatprep.subr.mxu0 0.0
    %1719 = vmatpush1.msra.mxu0 %v154
    %1720 = vmatprep.subr.mxu0 0.0
    %1721 = vmatpush1.msra.mxu0 %v149
    %1722 = vmatprep.subr.mxu0 0.0
    %1723 = vmatpush1.msra.mxu0 %v144
    %1724 = vmatprep.subr.mxu0 0.0
    %1725 = vmatpush1.msra.mxu0 %v139
    %1726 = vmatprep.subr.mxu0 0.0
    %1727 = vmatpush1.msra.mxu0 %v134
    %1728 = vmatprep.subr.mxu0 0.0
    %1729 = vmatpush2.msra.mxu0 0.0
    %1730 = vmatprep.subr.mxu0 0.0
    %1731 = vmatpush2.msra.mxu0 0.0
    %1732 = vmatprep.subr.mxu0 0.0
    %1733 = vmatpush2.msra.mxu0 0.0
    %1734 = vmatprep.subr.mxu0 0.0
    %1735 = vmatpush2.msra.mxu0 0.0
    %1736 = vmatprep.subr.mxu0 0.0
    %1737 = vmatpush2.msra.mxu0 0.0
    %1738 = vmatprep.subr.mxu0 0.0
    %1739 = vmatpush2.msra.mxu0 0.0
    %1740 = vmatprep.subr.mxu0 0.0
    %1741 = vmatpush2.msra.mxu0 0.0
    %1742 = vmatprep.subr.mxu0 0.0
    %1743 = vmatpush2.msra.mxu0 0.0
    %1744 = vmatprep.subr.mxu0 0.0
    %1745 = vmatpush2.msra.mxu0 0.0
    %1746 = vmatprep.subr.mxu0 0.0
    %1747 = vmatpush2.msra.mxu0 0.0
    %1748 = vmatprep.subr.mxu0 0.0
    %1749 = vmatpush2.msra.mxu0 0.0
    %1750 = vmatprep.subr.mxu0 0.0
    %1751 = vmatpush2.msra.mxu0 0.0
    %1752 = vmatprep.subr.mxu0 0.0
    %1753 = vmatpush2.msra.mxu0 0.0
    %1754 = vmatprep.subr.mxu0 0.0
    %1755 = vmatpush2.msra.mxu0 0.0
    %1756 = vmatprep.subr.mxu0 0.0
    %1757 = vmatpush2.msra.mxu0 0.0
    %1758 = vmatprep.subr.mxu0 0.0
    %1759 = vmatpush2.msra.mxu0 0.0
    %1760 = vmatprep.mubr.f32.mxu0 0.0
    %1761 = vmatmul.mubr.f32.gmra.mxu0 %v1553
    %v1762 = vpop.f32.mrf.mxu0
    %v1763 = vadd.f32 0.0, %v1762
    %v1764 = vpop.f32.mrf.mxu0
    %1765 = vdwg.mxu0
    %s1766 = scalar_lea.vmem [#allocation3], 32
    %1767 = vst [vmem:[%s1766] sm:$0xff] %v1763
    %s1768 = smul.u32 5, 4
    %s1769 = smul.addr %s1768, 8
    %s1770 = scalar_lea.vmem [#allocation2], %s1769
    %v1771 = vld [vmem:[%s1770] sm:$0xff]
    %v1772 = vld [vmem:[%s1770 + $0x8] sm:$0xff]
    %v1773 = vld [vmem:[%s1770 + $0x10] sm:$0xff]
    %v1774 = vld [vmem:[%s1770 + $0x18] sm:$0xff]
    %v1775 = vadd.f32 %v1771, %v1621
    %v1776 = vadd.f32 %v1772, %v1623
    %v1777 = vadd.f32 %v1773, %v1692
    %v1778 = vadd.f32 %v1774, %v1694
    %v1779 = vxor.u32 %v1775, 2147483648
    %v1780 = vmul.f32 %v1779, 1.442695
    %v1781 = vpow.pop %v1780
    %v1782 = vadd.f32 %v1781, 1.0
    %v1783 = vrcp.pop %v1782
    %v1784 = vmul.f32 1.0, %v1783
    %v1785 = vxor.u32 %v1776, 2147483648
    %v1786 = vmul.f32 %v1785, 1.442695
    %v1787 = vpow.pop %v1786
    %v1788 = vadd.f32 %v1787, 1.0
    %v1789 = vrcp.pop %v1788
    %v1790 = vmul.f32 1.0, %v1789
    %v1791 = vtanh.pop %v1777
    %v1792 = vxor.u32 %v1778, 2147483648
    %v1793 = vmul.f32 %v1792, 1.442695
    %v1794 = vpow.pop %v1793
    %v1795 = vadd.f32 %v1794, 1.0
    %v1796 = vrcp.pop %v1795
    %v1797 = vmul.f32 1.0, %v1796
    %v1798 = vmul.f32 %v1790, %v1551
    %v1799 = vmul.f32 %v1784, %v1791
    %v1800 = vadd.f32 %v1798, %v1799
    %v1801 = vtanh.pop %v1800
    %v1802 = vmul.f32 %v1797, %v1801
    %1803 = vmatprep.subr.mxu0 %v206
    %1804 = vmatpush1.msra.mxu0 %v205
    %1805 = vmatprep.subr.mxu0 %v201
    %1806 = vmatpush1.msra.mxu0 %v200
    %1807 = vmatprep.subr.mxu0 %v196
    %1808 = vmatpush1.msra.mxu0 %v195
    %1809 = vmatprep.subr.mxu0 %v191
    %1810 = vmatpush1.msra.mxu0 %v190
    %1811 = vmatprep.subr.mxu0 %v186
    %1812 = vmatpush1.msra.mxu0 %v185
    %1813 = vmatprep.subr.mxu0 %v181
    %1814 = vmatpush1.msra.mxu0 %v180
    %1815 = vmatprep.subr.mxu0 %v176
    %1816 = vmatpush1.msra.mxu0 %v175
    %1817 = vmatprep.subr.mxu0 %v171
    %1818 = vmatpush1.msra.mxu0 %v170
    %1819 = vmatprep.subr.mxu0 %v166
    %1820 = vmatpush1.msra.mxu0 %v165
    %1821 = vmatprep.subr.mxu0 %v161
    %1822 = vmatpush1.msra.mxu0 %v160
    %1823 = vmatprep.subr.mxu0 %v156
    %1824 = vmatpush1.msra.mxu0 %v155
    %1825 = vmatprep.subr.mxu0 %v151
    %1826 = vmatpush1.msra.mxu0 %v150
    %1827 = vmatprep.subr.mxu0 %v146
    %1828 = vmatpush1.msra.mxu0 %v145
    %1829 = vmatprep.subr.mxu0 %v141
    %1830 = vmatpush1.msra.mxu0 %v140
    %1831 = vmatprep.subr.mxu0 %v136
    %1832 = vmatpush1.msra.mxu0 %v135
    %1833 = vmatprep.subr.mxu0 %v131
    %1834 = vmatpush1.msra.mxu0 %v130
    %1835 = vmatprep.subr.mxu0 0.0
    %1836 = vmatpush2.msra.mxu0 0.0
    %1837 = vmatprep.subr.mxu0 0.0
    %1838 = vmatpush2.msra.mxu0 0.0
    %1839 = vmatprep.subr.mxu0 0.0
    %1840 = vmatpush2.msra.mxu0 0.0
    %1841 = vmatprep.subr.mxu0 0.0
    %1842 = vmatpush2.msra.mxu0 0.0
    %1843 = vmatprep.subr.mxu0 0.0
    %1844 = vmatpush2.msra.mxu0 0.0
    %1845 = vmatprep.subr.mxu0 0.0
    %1846 = vmatpush2.msra.mxu0 0.0
    %1847 = vmatprep.subr.mxu0 0.0
    %1848 = vmatpush2.msra.mxu0 0.0
    %1849 = vmatprep.subr.mxu0 0.0
    %1850 = vmatpush2.msra.mxu0 0.0
    %1851 = vmatprep.subr.mxu0 0.0
    %1852 = vmatpush2.msra.mxu0 0.0
    %1853 = vmatprep.subr.mxu0 0.0
    %1854 = vmatpush2.msra.mxu0 0.0
    %1855 = vmatprep.subr.mxu0 0.0
    %1856 = vmatpush2.msra.mxu0 0.0
    %1857 = vmatprep.subr.mxu0 0.0
    %1858 = vmatpush2.msra.mxu0 0.0
    %1859 = vmatprep.subr.mxu0 0.0
    %1860 = vmatpush2.msra.mxu0 0.0
    %1861 = vmatprep.subr.mxu0 0.0
    %1862 = vmatpush2.msra.mxu0 0.0
    %1863 = vmatprep.subr.mxu0 0.0
    %1864 = vmatpush2.msra.mxu0 0.0
    %1865 = vmatprep.subr.mxu0 0.0
    %1866 = vmatpush2.msra.mxu0 0.0
    %1867 = vmatprep.mubr.f32.mxu0 0.0
    %1868 = vmatmul.mubr.f32.gmra.mxu0 %v1802
    %v1869 = vpop.f32.mrf.mxu0
    %v1870 = vadd.f32 0.0, %v1869
    %v1871 = vpop.f32.mrf.mxu0
    %v1872 = vadd.f32 0.0, %v1871
    %1873 = vdwg.mxu0
    %1874 = vmatprep.subr.mxu0 %v208
    %1875 = vmatpush1.msra.mxu0 %v207
    %1876 = vmatprep.subr.mxu0 %v203
    %1877 = vmatpush1.msra.mxu0 %v202
    %1878 = vmatprep.subr.mxu0 %v198
    %1879 = vmatpush1.msra.mxu0 %v197
    %1880 = vmatprep.subr.mxu0 %v193
    %1881 = vmatpush1.msra.mxu0 %v192
    %1882 = vmatprep.subr.mxu0 %v188
    %1883 = vmatpush1.msra.mxu0 %v187
    %1884 = vmatprep.subr.mxu0 %v183
    %1885 = vmatpush1.msra.mxu0 %v182
    %1886 = vmatprep.subr.mxu0 %v178
    %1887 = vmatpush1.msra.mxu0 %v177
    %1888 = vmatprep.subr.mxu0 %v173
    %1889 = vmatpush1.msra.mxu0 %v172
    %1890 = vmatprep.subr.mxu0 %v168
    %1891 = vmatpush1.msra.mxu0 %v167
    %1892 = vmatprep.subr.mxu0 %v163
    %1893 = vmatpush1.msra.mxu0 %v162
    %1894 = vmatprep.subr.mxu0 %v158
    %1895 = vmatpush1.msra.mxu0 %v157
    %1896 = vmatprep.subr.mxu0 %v153
    %1897 = vmatpush1.msra.mxu0 %v152
    %1898 = vmatprep.subr.mxu0 %v148
    %1899 = vmatpush1.msra.mxu0 %v147
    %1900 = vmatprep.subr.mxu0 %v143
    %1901 = vmatpush1.msra.mxu0 %v142
    %1902 = vmatprep.subr.mxu0 %v138
    %1903 = vmatpush1.msra.mxu0 %v137
    %1904 = vmatprep.subr.mxu0 %v133
    %1905 = vmatpush1.msra.mxu0 %v132
    %1906 = vmatprep.subr.mxu0 0.0
    %1907 = vmatpush2.msra.mxu0 0.0
    %1908 = vmatprep.subr.mxu0 0.0
    %1909 = vmatpush2.msra.mxu0 0.0
    %1910 = vmatprep.subr.mxu0 0.0
    %1911 = vmatpush2.msra.mxu0 0.0
    %1912 = vmatprep.subr.mxu0 0.0
    %1913 = vmatpush2.msra.mxu0 0.0
    %1914 = vmatprep.subr.mxu0 0.0
    %1915 = vmatpush2.msra.mxu0 0.0
    %1916 = vmatprep.subr.mxu0 0.0
    %1917 = vmatpush2.msra.mxu0 0.0
    %1918 = vmatprep.subr.mxu0 0.0
    %1919 = vmatpush2.msra.mxu0 0.0
    %1920 = vmatprep.subr.mxu0 0.0
    %1921 = vmatpush2.msra.mxu0 0.0
    %1922 = vmatprep.subr.mxu0 0.0
    %1923 = vmatpush2.msra.mxu0 0.0
    %1924 = vmatprep.subr.mxu0 0.0
    %1925 = vmatpush2.msra.mxu0 0.0
    %1926 = vmatprep.subr.mxu0 0.0
    %1927 = vmatpush2.msra.mxu0 0.0
    %1928 = vmatprep.subr.mxu0 0.0
    %1929 = vmatpush2.msra.mxu0 0.0
    %1930 = vmatprep.subr.mxu0 0.0
    %1931 = vmatpush2.msra.mxu0 0.0
    %1932 = vmatprep.subr.mxu0 0.0
    %1933 = vmatpush2.msra.mxu0 0.0
    %1934 = vmatprep.subr.mxu0 0.0
    %1935 = vmatpush2.msra.mxu0 0.0
    %1936 = vmatprep.subr.mxu0 0.0
    %1937 = vmatpush2.msra.mxu0 0.0
    %1938 = vmatprep.mubr.f32.mxu0 0.0
    %1939 = vmatmul.mubr.f32.gmra.mxu0 %v1802
    %v1940 = vpop.f32.mrf.mxu0
    %v1941 = vadd.f32 0.0, %v1940
    %v1942 = vpop.f32.mrf.mxu0
    %v1943 = vadd.f32 0.0, %v1942
    %1944 = vdwg.mxu0
    %1945 = vmatprep.subr.mxu0 0.0
    %1946 = vmatpush1.msra.mxu0 %v209
    %1947 = vmatprep.subr.mxu0 0.0
    %1948 = vmatpush1.msra.mxu0 %v204
    %1949 = vmatprep.subr.mxu0 0.0
    %1950 = vmatpush1.msra.mxu0 %v199
    %1951 = vmatprep.subr.mxu0 0.0
    %1952 = vmatpush1.msra.mxu0 %v194
    %1953 = vmatprep.subr.mxu0 0.0
    %1954 = vmatpush1.msra.mxu0 %v189
    %1955 = vmatprep.subr.mxu0 0.0
    %1956 = vmatpush1.msra.mxu0 %v184
    %1957 = vmatprep.subr.mxu0 0.0
    %1958 = vmatpush1.msra.mxu0 %v179
    %1959 = vmatprep.subr.mxu0 0.0
    %1960 = vmatpush1.msra.mxu0 %v174
    %1961 = vmatprep.subr.mxu0 0.0
    %1962 = vmatpush1.msra.mxu0 %v169
    %1963 = vmatprep.subr.mxu0 0.0
    %1964 = vmatpush1.msra.mxu0 %v164
    %1965 = vmatprep.subr.mxu0 0.0
    %1966 = vmatpush1.msra.mxu0 %v159
    %1967 = vmatprep.subr.mxu0 0.0
    %1968 = vmatpush1.msra.mxu0 %v154
    %1969 = vmatprep.subr.mxu0 0.0
    %1970 = vmatpush1.msra.mxu0 %v149
    %1971 = vmatprep.subr.mxu0 0.0
    %1972 = vmatpush1.msra.mxu0 %v144
    %1973 = vmatprep.subr.mxu0 0.0
    %1974 = vmatpush1.msra.mxu0 %v139
    %1975 = vmatprep.subr.mxu0 0.0
    %1976 = vmatpush1.msra.mxu0 %v134
    %1977 = vmatprep.subr.mxu0 0.0
    %1978 = vmatpush2.msra.mxu0 0.0
    %1979 = vmatprep.subr.mxu0 0.0
    %1980 = vmatpush2.msra.mxu0 0.0
    %1981 = vmatprep.subr.mxu0 0.0
    %1982 = vmatpush2.msra.mxu0 0.0
    %1983 = vmatprep.subr.mxu0 0.0
    %1984 = vmatpush2.msra.mxu0 0.0
    %1985 = vmatprep.subr.mxu0 0.0
    %1986 = vmatpush2.msra.mxu0 0.0
    %1987 = vmatprep.subr.mxu0 0.0
    %1988 = vmatpush2.msra.mxu0 0.0
    %1989 = vmatprep.subr.mxu0 0.0
    %1990 = vmatpush2.msra.mxu0 0.0
    %1991 = vmatprep.subr.mxu0 0.0
    %1992 = vmatpush2.msra.mxu0 0.0
    %1993 = vmatprep.subr.mxu0 0.0
    %1994 = vmatpush2.msra.mxu0 0.0
    %1995 = vmatprep.subr.mxu0 0.0
    %1996 = vmatpush2.msra.mxu0 0.0
    %1997 = vmatprep.subr.mxu0 0.0
    %1998 = vmatpush2.msra.mxu0 0.0
    %1999 = vmatprep.subr.mxu0 0.0
    %2000 = vmatpush2.msra.mxu0 0.0
    %2001 = vmatprep.subr.mxu0 0.0
    %2002 = vmatpush2.msra.mxu0 0.0
    %2003 = vmatprep.subr.mxu0 0.0
    %2004 = vmatpush2.msra.mxu0 0.0
    %2005 = vmatprep.subr.mxu0 0.0
    %2006 = vmatpush2.msra.mxu0 0.0
    %2007 = vmatprep.subr.mxu0 0.0
    %2008 = vmatpush2.msra.mxu0 0.0
    %2009 = vmatprep.mubr.f32.mxu0 0.0
    %2010 = vmatmul.mubr.f32.gmra.mxu0 %v1802
    %v2011 = vpop.f32.mrf.mxu0
    %v2012 = vadd.f32 0.0, %v2011
    %v2013 = vpop.f32.mrf.mxu0
    %2014 = vdwg.mxu0
    %s2015 = scalar_lea.vmem [#allocation3], 40
    %2016 = vst [vmem:[%s2015] sm:$0xff] %v2012
    %s2017 = smul.u32 6, 4
    %s2018 = smul.addr %s2017, 8
    %s2019 = scalar_lea.vmem [#allocation2], %s2018
    %v2020 = vld [vmem:[%s2019] sm:$0xff]
    %v2021 = vld [vmem:[%s2019 + $0x8] sm:$0xff]
    %v2022 = vld [vmem:[%s2019 + $0x10] sm:$0xff]
    %v2023 = vld [vmem:[%s2019 + $0x18] sm:$0xff]
    %v2024 = vadd.f32 %v2020, %v1870
    %v2025 = vadd.f32 %v2021, %v1872
    %v2026 = vadd.f32 %v2022, %v1941
    %v2027 = vadd.f32 %v2023, %v1943
    %v2028 = vxor.u32 %v2024, 2147483648
    %v2029 = vmul.f32 %v2028, 1.442695
    %v2030 = vpow.pop %v2029
    %v2031 = vadd.f32 %v2030, 1.0
    %v2032 = vrcp.pop %v2031
    %v2033 = vmul.f32 1.0, %v2032
    %v2034 = vxor.u32 %v2025, 2147483648
    %v2035 = vmul.f32 %v2034, 1.442695
    %v2036 = vpow.pop %v2035
    %v2037 = vadd.f32 %v2036, 1.0
    %v2038 = vrcp.pop %v2037
    %v2039 = vmul.f32 1.0, %v2038
    %v2040 = vtanh.pop %v2026
    %v2041 = vxor.u32 %v2027, 2147483648
    %v2042 = vmul.f32 %v2041, 1.442695
    %v2043 = vpow.pop %v2042
    %v2044 = vadd.f32 %v2043, 1.0
    %v2045 = vrcp.pop %v2044
    %v2046 = vmul.f32 1.0, %v2045
    %v2047 = vmul.f32 %v2039, %v1800
    %v2048 = vmul.f32 %v2033, %v2040
    %v2049 = vadd.f32 %v2047, %v2048
    %v2050 = vtanh.pop %v2049
    %v2051 = vmul.f32 %v2046, %v2050
    %2052 = vmatprep.subr.mxu0 %v206
    %2053 = vmatpush1.msra.mxu0 %v205
    %2054 = vmatprep.subr.mxu0 %v201
    %2055 = vmatpush1.msra.mxu0 %v200
    %2056 = vmatprep.subr.mxu0 %v196
    %2057 = vmatpush1.msra.mxu0 %v195
    %2058 = vmatprep.subr.mxu0 %v191
    %2059 = vmatpush1.msra.mxu0 %v190
    %2060 = vmatprep.subr.mxu0 %v186
    %2061 = vmatpush1.msra.mxu0 %v185
    %2062 = vmatprep.subr.mxu0 %v181
    %2063 = vmatpush1.msra.mxu0 %v180
    %2064 = vmatprep.subr.mxu0 %v176
    %2065 = vmatpush1.msra.mxu0 %v175
    %2066 = vmatprep.subr.mxu0 %v171
    %2067 = vmatpush1.msra.mxu0 %v170
    %2068 = vmatprep.subr.mxu0 %v166
    %2069 = vmatpush1.msra.mxu0 %v165
    %2070 = vmatprep.subr.mxu0 %v161
    %2071 = vmatpush1.msra.mxu0 %v160
    %2072 = vmatprep.subr.mxu0 %v156
    %2073 = vmatpush1.msra.mxu0 %v155
    %2074 = vmatprep.subr.mxu0 %v151
    %2075 = vmatpush1.msra.mxu0 %v150
    %2076 = vmatprep.subr.mxu0 %v146
    %2077 = vmatpush1.msra.mxu0 %v145
    %2078 = vmatprep.subr.mxu0 %v141
    %2079 = vmatpush1.msra.mxu0 %v140
    %2080 = vmatprep.subr.mxu0 %v136
    %2081 = vmatpush1.msra.mxu0 %v135
    %2082 = vmatprep.subr.mxu0 %v131
    %2083 = vmatpush1.msra.mxu0 %v130
    %2084 = vmatprep.subr.mxu0 0.0
    %2085 = vmatpush2.msra.mxu0 0.0
    %2086 = vmatprep.subr.mxu0 0.0
    %2087 = vmatpush2.msra.mxu0 0.0
    %2088 = vmatprep.subr.mxu0 0.0
    %2089 = vmatpush2.msra.mxu0 0.0
    %2090 = vmatprep.subr.mxu0 0.0
    %2091 = vmatpush2.msra.mxu0 0.0
    %2092 = vmatprep.subr.mxu0 0.0
    %2093 = vmatpush2.msra.mxu0 0.0
    %2094 = vmatprep.subr.mxu0 0.0
    %2095 = vmatpush2.msra.mxu0 0.0
    %2096 = vmatprep.subr.mxu0 0.0
    %2097 = vmatpush2.msra.mxu0 0.0
    %2098 = vmatprep.subr.mxu0 0.0
    %2099 = vmatpush2.msra.mxu0 0.0
    %2100 = vmatprep.subr.mxu0 0.0
    %2101 = vmatpush2.msra.mxu0 0.0
    %2102 = vmatprep.subr.mxu0 0.0
    %2103 = vmatpush2.msra.mxu0 0.0
    %2104 = vmatprep.subr.mxu0 0.0
    %2105 = vmatpush2.msra.mxu0 0.0
    %2106 = vmatprep.subr.mxu0 0.0
    %2107 = vmatpush2.msra.mxu0 0.0
    %2108 = vmatprep.subr.mxu0 0.0
    %2109 = vmatpush2.msra.mxu0 0.0
    %2110 = vmatprep.subr.mxu0 0.0
    %2111 = vmatpush2.msra.mxu0 0.0
    %2112 = vmatprep.subr.mxu0 0.0
    %2113 = vmatpush2.msra.mxu0 0.0
    %2114 = vmatprep.subr.mxu0 0.0
    %2115 = vmatpush2.msra.mxu0 0.0
    %2116 = vmatprep.mubr.f32.mxu0 0.0
    %2117 = vmatmul.mubr.f32.gmra.mxu0 %v2051
    %v2118 = vpop.f32.mrf.mxu0
    %v2119 = vadd.f32 0.0, %v2118
    %v2120 = vpop.f32.mrf.mxu0
    %v2121 = vadd.f32 0.0, %v2120
    %2122 = vdwg.mxu0
    %2123 = vmatprep.subr.mxu0 %v208
    %2124 = vmatpush1.msra.mxu0 %v207
    %2125 = vmatprep.subr.mxu0 %v203
    %2126 = vmatpush1.msra.mxu0 %v202
    %2127 = vmatprep.subr.mxu0 %v198
    %2128 = vmatpush1.msra.mxu0 %v197
    %2129 = vmatprep.subr.mxu0 %v193
    %2130 = vmatpush1.msra.mxu0 %v192
    %2131 = vmatprep.subr.mxu0 %v188
    %2132 = vmatpush1.msra.mxu0 %v187
    %2133 = vmatprep.subr.mxu0 %v183
    %2134 = vmatpush1.msra.mxu0 %v182
    %2135 = vmatprep.subr.mxu0 %v178
    %2136 = vmatpush1.msra.mxu0 %v177
    %2137 = vmatprep.subr.mxu0 %v173
    %2138 = vmatpush1.msra.mxu0 %v172
    %2139 = vmatprep.subr.mxu0 %v168
    %2140 = vmatpush1.msra.mxu0 %v167
    %2141 = vmatprep.subr.mxu0 %v163
    %2142 = vmatpush1.msra.mxu0 %v162
    %2143 = vmatprep.subr.mxu0 %v158
    %2144 = vmatpush1.msra.mxu0 %v157
    %2145 = vmatprep.subr.mxu0 %v153
    %2146 = vmatpush1.msra.mxu0 %v152
    %2147 = vmatprep.subr.mxu0 %v148
    %2148 = vmatpush1.msra.mxu0 %v147
    %2149 = vmatprep.subr.mxu0 %v143
    %2150 = vmatpush1.msra.mxu0 %v142
    %2151 = vmatprep.subr.mxu0 %v138
    %2152 = vmatpush1.msra.mxu0 %v137
    %2153 = vmatprep.subr.mxu0 %v133
    %2154 = vmatpush1.msra.mxu0 %v132
    %2155 = vmatprep.subr.mxu0 0.0
    %2156 = vmatpush2.msra.mxu0 0.0
    %2157 = vmatprep.subr.mxu0 0.0
    %2158 = vmatpush2.msra.mxu0 0.0
    %2159 = vmatprep.subr.mxu0 0.0
    %2160 = vmatpush2.msra.mxu0 0.0
    %2161 = vmatprep.subr.mxu0 0.0
    %2162 = vmatpush2.msra.mxu0 0.0
    %2163 = vmatprep.subr.mxu0 0.0
    %2164 = vmatpush2.msra.mxu0 0.0
    %2165 = vmatprep.subr.mxu0 0.0
    %2166 = vmatpush2.msra.mxu0 0.0
    %2167 = vmatprep.subr.mxu0 0.0
    %2168 = vmatpush2.msra.mxu0 0.0
    %2169 = vmatprep.subr.mxu0 0.0
    %2170 = vmatpush2.msra.mxu0 0.0
    %2171 = vmatprep.subr.mxu0 0.0
    %2172 = vmatpush2.msra.mxu0 0.0
    %2173 = vmatprep.subr.mxu0 0.0
    %2174 = vmatpush2.msra.mxu0 0.0
    %2175 = vmatprep.subr.mxu0 0.0
    %2176 = vmatpush2.msra.mxu0 0.0
    %2177 = vmatprep.subr.mxu0 0.0
    %2178 = vmatpush2.msra.mxu0 0.0
    %2179 = vmatprep.subr.mxu0 0.0
    %2180 = vmatpush2.msra.mxu0 0.0
    %2181 = vmatprep.subr.mxu0 0.0
    %2182 = vmatpush2.msra.mxu0 0.0
    %2183 = vmatprep.subr.mxu0 0.0
    %2184 = vmatpush2.msra.mxu0 0.0
    %2185 = vmatprep.subr.mxu0 0.0
    %2186 = vmatpush2.msra.mxu0 0.0
    %2187 = vmatprep.mubr.f32.mxu0 0.0
    %2188 = vmatmul.mubr.f32.gmra.mxu0 %v2051
    %v2189 = vpop.f32.mrf.mxu0
    %v2190 = vadd.f32 0.0, %v2189
    %v2191 = vpop.f32.mrf.mxu0
    %v2192 = vadd.f32 0.0, %v2191
    %2193 = vdwg.mxu0
    %2194 = vmatprep.subr.mxu0 0.0
    %2195 = vmatpush1.msra.mxu0 %v209
    %2196 = vmatprep.subr.mxu0 0.0
    %2197 = vmatpush1.msra.mxu0 %v204
    %2198 = vmatprep.subr.mxu0 0.0
    %2199 = vmatpush1.msra.mxu0 %v199
    %2200 = vmatprep.subr.mxu0 0.0
    %2201 = vmatpush1.msra.mxu0 %v194
    %2202 = vmatprep.subr.mxu0 0.0
    %2203 = vmatpush1.msra.mxu0 %v189
    %2204 = vmatprep.subr.mxu0 0.0
    %2205 = vmatpush1.msra.mxu0 %v184
    %2206 = vmatprep.subr.mxu0 0.0
    %2207 = vmatpush1.msra.mxu0 %v179
    %2208 = vmatprep.subr.mxu0 0.0
    %2209 = vmatpush1.msra.mxu0 %v174
    %2210 = vmatprep.subr.mxu0 0.0
    %2211 = vmatpush1.msra.mxu0 %v169
    %2212 = vmatprep.subr.mxu0 0.0
    %2213 = vmatpush1.msra.mxu0 %v164
    %2214 = vmatprep.subr.mxu0 0.0
    %2215 = vmatpush1.msra.mxu0 %v159
    %2216 = vmatprep.subr.mxu0 0.0
    %2217 = vmatpush1.msra.mxu0 %v154
    %2218 = vmatprep.subr.mxu0 0.0
    %2219 = vmatpush1.msra.mxu0 %v149
    %2220 = vmatprep.subr.mxu0 0.0
    %2221 = vmatpush1.msra.mxu0 %v144
    %2222 = vmatprep.subr.mxu0 0.0
    %2223 = vmatpush1.msra.mxu0 %v139
    %2224 = vmatprep.subr.mxu0 0.0
    %2225 = vmatpush1.msra.mxu0 %v134
    %2226 = vmatprep.subr.mxu0 0.0
    %2227 = vmatpush2.msra.mxu0 0.0
    %2228 = vmatprep.subr.mxu0 0.0
    %2229 = vmatpush2.msra.mxu0 0.0
    %2230 = vmatprep.subr.mxu0 0.0
    %2231 = vmatpush2.msra.mxu0 0.0
    %2232 = vmatprep.subr.mxu0 0.0
    %2233 = vmatpush2.msra.mxu0 0.0
    %2234 = vmatprep.subr.mxu0 0.0
    %2235 = vmatpush2.msra.mxu0 0.0
    %2236 = vmatprep.subr.mxu0 0.0
    %2237 = vmatpush2.msra.mxu0 0.0
    %2238 = vmatprep.subr.mxu0 0.0
    %2239 = vmatpush2.msra.mxu0 0.0
    %2240 = vmatprep.subr.mxu0 0.0
    %2241 = vmatpush2.msra.mxu0 0.0
    %2242 = vmatprep.subr.mxu0 0.0
    %2243 = vmatpush2.msra.mxu0 0.0
    %2244 = vmatprep.subr.mxu0 0.0
    %2245 = vmatpush2.msra.mxu0 0.0
    %2246 = vmatprep.subr.mxu0 0.0
    %2247 = vmatpush2.msra.mxu0 0.0
    %2248 = vmatprep.subr.mxu0 0.0
    %2249 = vmatpush2.msra.mxu0 0.0
    %2250 = vmatprep.subr.mxu0 0.0
    %2251 = vmatpush2.msra.mxu0 0.0
    %2252 = vmatprep.subr.mxu0 0.0
    %2253 = vmatpush2.msra.mxu0 0.0
    %2254 = vmatprep.subr.mxu0 0.0
    %2255 = vmatpush2.msra.mxu0 0.0
    %2256 = vmatprep.subr.mxu0 0.0
    %2257 = vmatpush2.msra.mxu0 0.0
    %2258 = vmatprep.mubr.f32.mxu0 0.0
    %2259 = vmatmul.mubr.f32.gmra.mxu0 %v2051
    %v2260 = vpop.f32.mrf.mxu0
    %v2261 = vadd.f32 0.0, %v2260
    %v2262 = vpop.f32.mrf.mxu0
    %2263 = vdwg.mxu0
    %s2264 = scalar_lea.vmem [#allocation3], 48
    %2265 = vst [vmem:[%s2264] sm:$0xff] %v2261
    %s2266 = smul.u32 7, 4
    %s2267 = smul.addr %s2266, 8
    %s2268 = scalar_lea.vmem [#allocation2], %s2267
    %v2269 = vld [vmem:[%s2268] sm:$0xff]
    %v2270 = vld [vmem:[%s2268 + $0x8] sm:$0xff]
    %v2271 = vld [vmem:[%s2268 + $0x10] sm:$0xff]
    %v2272 = vld [vmem:[%s2268 + $0x18] sm:$0xff]
    %v2273 = vadd.f32 %v2269, %v2119
    %v2274 = vadd.f32 %v2270, %v2121
    %v2275 = vadd.f32 %v2271, %v2190
    %v2276 = vadd.f32 %v2272, %v2192
    %v2277 = vxor.u32 %v2273, 2147483648
    %v2278 = vmul.f32 %v2277, 1.442695
    %v2279 = vpow.pop %v2278
    %v2280 = vadd.f32 %v2279, 1.0
    %v2281 = vrcp.pop %v2280
    %v2282 = vmul.f32 1.0, %v2281
    %v2283 = vxor.u32 %v2274, 2147483648
    %v2284 = vmul.f32 %v2283, 1.442695
    %v2285 = vpow.pop %v2284
    %v2286 = vadd.f32 %v2285, 1.0
    %v2287 = vrcp.pop %v2286
    %v2288 = vmul.f32 1.0, %v2287
    %v2289 = vtanh.pop %v2275
    %v2290 = vxor.u32 %v2276, 2147483648
    %v2291 = vmul.f32 %v2290, 1.442695
    %v2292 = vpow.pop %v2291
    %v2293 = vadd.f32 %v2292, 1.0
    %v2294 = vrcp.pop %v2293
    %v2295 = vmul.f32 1.0, %v2294
    %v2296 = vmul.f32 %v2288, %v2049
    %v2297 = vmul.f32 %v2282, %v2289
    %v2298 = vadd.f32 %v2296, %v2297
    %v2299 = vtanh.pop %v2298
    %v2300 = vmul.f32 %v2295, %v2299
    %2301 = vmatprep.subr.mxu0 0.0
    %2302 = vmatpush1.msra.mxu0 %v209
    %2303 = vmatprep.subr.mxu0 0.0
    %2304 = vmatpush1.msra.mxu0 %v204
    %2305 = vmatprep.subr.mxu0 0.0
    %2306 = vmatpush1.msra.mxu0 %v199
    %2307 = vmatprep.subr.mxu0 0.0
    %2308 = vmatpush1.msra.mxu0 %v194
    %2309 = vmatprep.subr.mxu0 0.0
    %2310 = vmatpush1.msra.mxu0 %v189
    %2311 = vmatprep.subr.mxu0 0.0
    %2312 = vmatpush1.msra.mxu0 %v184
    %2313 = vmatprep.subr.mxu0 0.0
    %2314 = vmatpush1.msra.mxu0 %v179
    %2315 = vmatprep.subr.mxu0 0.0
    %2316 = vmatpush1.msra.mxu0 %v174
    %2317 = vmatprep.subr.mxu0 0.0
    %2318 = vmatpush1.msra.mxu0 %v169
    %2319 = vmatprep.subr.mxu0 0.0
    %2320 = vmatpush1.msra.mxu0 %v164
    %2321 = vmatprep.subr.mxu0 0.0
    %2322 = vmatpush1.msra.mxu0 %v159
    %2323 = vmatprep.subr.mxu0 0.0
    %2324 = vmatpush1.msra.mxu0 %v154
    %2325 = vmatprep.subr.mxu0 0.0
    %2326 = vmatpush1.msra.mxu0 %v149
    %2327 = vmatprep.subr.mxu0 0.0
    %2328 = vmatpush1.msra.mxu0 %v144
    %2329 = vmatprep.subr.mxu0 0.0
    %2330 = vmatpush1.msra.mxu0 %v139
    %2331 = vmatprep.subr.mxu0 0.0
    %2332 = vmatpush1.msra.mxu0 %v134
    %2333 = vmatprep.subr.mxu0 0.0
    %2334 = vmatpush2.msra.mxu0 0.0
    %2335 = vmatprep.subr.mxu0 0.0
    %2336 = vmatpush2.msra.mxu0 0.0
    %2337 = vmatprep.subr.mxu0 0.0
    %2338 = vmatpush2.msra.mxu0 0.0
    %2339 = vmatprep.subr.mxu0 0.0
    %2340 = vmatpush2.msra.mxu0 0.0
    %2341 = vmatprep.subr.mxu0 0.0
    %2342 = vmatpush2.msra.mxu0 0.0
    %2343 = vmatprep.subr.mxu0 0.0
    %2344 = vmatpush2.msra.mxu0 0.0
    %2345 = vmatprep.subr.mxu0 0.0
    %2346 = vmatpush2.msra.mxu0 0.0
    %2347 = vmatprep.subr.mxu0 0.0
    %2348 = vmatpush2.msra.mxu0 0.0
    %2349 = vmatprep.subr.mxu0 0.0
    %2350 = vmatpush2.msra.mxu0 0.0
    %2351 = vmatprep.subr.mxu0 0.0
    %2352 = vmatpush2.msra.mxu0 0.0
    %2353 = vmatprep.subr.mxu0 0.0
    %2354 = vmatpush2.msra.mxu0 0.0
    %2355 = vmatprep.subr.mxu0 0.0
    %2356 = vmatpush2.msra.mxu0 0.0
    %2357 = vmatprep.subr.mxu0 0.0
    %2358 = vmatpush2.msra.mxu0 0.0
    %2359 = vmatprep.subr.mxu0 0.0
    %2360 = vmatpush2.msra.mxu0 0.0
    %2361 = vmatprep.subr.mxu0 0.0
    %2362 = vmatpush2.msra.mxu0 0.0
    %2363 = vmatprep.subr.mxu0 0.0
    %2364 = vmatpush2.msra.mxu0 0.0
    %2365 = vmatprep.mubr.f32.mxu0 0.0
    %2366 = vmatmul.mubr.f32.gmra.mxu0 %v2300
    %v2367 = vpop.f32.mrf.mxu0
    %v2368 = vadd.f32 0.0, %v2367
    %v2369 = vpop.f32.mrf.mxu0
    %2370 = vdwg.mxu0
    %s2371 = scalar_lea.vmem [#allocation3], 56
    %2372 = vst [vmem:[%s2371] sm:$0xff] %v2368
    %v2373 = vld [vmem:[#allocation13] sm:$0xff]
    %v2374 = vld [vmem:[#allocation13 + $0x8] sm:$0xff]
    %v2375 = vld [vmem:[#allocation13 + $0x10] sm:$0xff]
    %v2376 = vld [vmem:[#allocation13 + $0x18] sm:$0xff]
    %v2377 = vld [vmem:[#allocation13 + $0x20] sm:$0xff]
    %v2378 = vld [vmem:[#allocation13 + $0x28] sm:$0xff]
    %v2379 = vld [vmem:[#allocation13 + $0x30] sm:$0xff]
    %v2380 = vld [vmem:[#allocation13 + $0x38] sm:$0xff]
    %v2381 = vld [vmem:[#allocation13 + $0x40] sm:$0xff]
    %v2382 = vld [vmem:[#allocation13 + $0x48] sm:$0xff]
    %v2383 = vld [vmem:[#allocation13 + $0x50] sm:$0xff]
    %v2384 = vld [vmem:[#allocation13 + $0x58] sm:$0xff]
    %v2385 = vld [vmem:[#allocation13 + $0x60] sm:$0xff]
    %v2386 = vld [vmem:[#allocation13 + $0x68] sm:$0xff]
    %v2387 = vld [vmem:[#allocation13 + $0x70] sm:$0xff]
    %v2388 = vld [vmem:[#allocation13 + $0x78] sm:$0xff]
    %v2389 = vld [vmem:[#allocation13 + $0x80] sm:$0xff]
    %v2390 = vld [vmem:[#allocation13 + $0x88] sm:$0xff]
    %v2391 = vld [vmem:[#allocation13 + $0x90] sm:$0xff]
    %v2392 = vld [vmem:[#allocation13 + $0x98] sm:$0xff]
    %v2393 = vld [vmem:[#allocation13 + $0xa0] sm:$0xff]
    %v2394 = vld [vmem:[#allocation13 + $0xa8] sm:$0xff]
    %v2395 = vld [vmem:[#allocation13 + $0xb0] sm:$0xff]
    %v2396 = vld [vmem:[#allocation13 + $0xb8] sm:$0xff]
    %v2397 = vld [vmem:[#allocation13 + $0xc0] sm:$0xff]
    %v2398 = vld [vmem:[#allocation13 + $0xc8] sm:$0xff]
    %v2399 = vld [vmem:[#allocation13 + $0xd0] sm:$0xff]
    %v2400 = vld [vmem:[#allocation13 + $0xd8] sm:$0xff]
    %v2401 = vld [vmem:[#allocation13 + $0xe0] sm:$0xff]
    %v2402 = vld [vmem:[#allocation13 + $0xe8] sm:$0xff]
    %v2403 = vld [vmem:[#allocation13 + $0xf0] sm:$0xff]
    %v2404 = vld [vmem:[#allocation13 + $0xf8] sm:$0xff]
    %v2405 = vld [vmem:[#allocation13 + $0x100] sm:$0xff]
    %v2406 = vld [vmem:[#allocation13 + $0x108] sm:$0xff]
    %v2407 = vld [vmem:[#allocation13 + $0x110] sm:$0xff]
    %v2408 = vld [vmem:[#allocation13 + $0x118] sm:$0xff]
    %v2409 = vld [vmem:[#allocation13 + $0x120] sm:$0xff]
    %v2410 = vld [vmem:[#allocation13 + $0x128] sm:$0xff]
    %v2411 = vld [vmem:[#allocation13 + $0x130] sm:$0xff]
    %v2412 = vld [vmem:[#allocation13 + $0x138] sm:$0xff]
    %v2413 = vld [vmem:[#allocation13 + $0x140] sm:$0xff]
    %v2414 = vld [vmem:[#allocation13 + $0x148] sm:$0xff]
    %v2415 = vld [vmem:[#allocation13 + $0x150] sm:$0xff]
    %v2416 = vld [vmem:[#allocation13 + $0x158] sm:$0xff]
    %v2417 = vld [vmem:[#allocation13 + $0x160] sm:$0xff]
    %v2418 = vld [vmem:[#allocation13 + $0x168] sm:$0xff]
    %v2419 = vld [vmem:[#allocation13 + $0x170] sm:$0xff]
    %v2420 = vld [vmem:[#allocation13 + $0x178] sm:$0xff]
    %v2421 = vld [vmem:[#allocation13 + $0x180] sm:$0xff]
    %v2422 = vld [vmem:[#allocation13 + $0x188] sm:$0xff]
    %v2423 = vld [vmem:[#allocation13 + $0x190] sm:$0xff]
    %v2424 = vld [vmem:[#allocation13 + $0x198] sm:$0xff]
    %v2425 = vld [vmem:[#allocation13 + $0x1a0] sm:$0xff]
    %v2426 = vld [vmem:[#allocation13 + $0x1a8] sm:$0xff]
    %v2427 = vld [vmem:[#allocation13 + $0x1b0] sm:$0xff]
    %v2428 = vld [vmem:[#allocation13 + $0x1b8] sm:$0xff]
    %v2429 = vld [vmem:[#allocation13 + $0x1c0] sm:$0xff]
    %v2430 = vld [vmem:[#allocation13 + $0x1c8] sm:$0xff]
    %v2431 = vld [vmem:[#allocation13 + $0x1d0] sm:$0xff]
    %v2432 = vld [vmem:[#allocation13 + $0x1d8] sm:$0xff]
    %v2433 = vld [vmem:[#allocation13 + $0x1e0] sm:$0xff]
    %v2434 = vld [vmem:[#allocation13 + $0x1e8] sm:$0xff]
    %v2435 = vld [vmem:[#allocation13 + $0x1f0] sm:$0xff]
    %v2436 = vld [vmem:[#allocation13 + $0x1f8] sm:$0xff]
    %v2437 = vld [vmem:[#allocation13 + $0x200] sm:$0xff]
    %v2438 = vld [vmem:[#allocation13 + $0x208] sm:$0xff]
    %v2439 = vld [vmem:[#allocation13 + $0x210] sm:$0xff]
    %v2440 = vld [vmem:[#allocation13 + $0x218] sm:$0xff]
    %v2441 = vld [vmem:[#allocation13 + $0x220] sm:$0xff]
    %v2442 = vld [vmem:[#allocation13 + $0x228] sm:$0xff]
    %v2443 = vld [vmem:[#allocation13 + $0x230] sm:$0xff]
    %v2444 = vld [vmem:[#allocation13 + $0x238] sm:$0xff]
    %v2445 = vld [vmem:[#allocation13 + $0x240] sm:$0xff]
    %v2446 = vld [vmem:[#allocation13 + $0x248] sm:$0xff]
    %v2447 = vld [vmem:[#allocation13 + $0x250] sm:$0xff]
    %v2448 = vld [vmem:[#allocation13 + $0x258] sm:$0xff]
    %v2449 = vld [vmem:[#allocation13 + $0x260] sm:$0xff]
    %v2450 = vld [vmem:[#allocation13 + $0x268] sm:$0xff]
    %v2451 = vld [vmem:[#allocation13 + $0x270] sm:$0xff]
    %v2452 = vld [vmem:[#allocation13 + $0x278] sm:$0xff]
    %v2453 = vld [vmem:[%s8] sm:$0x1]
    %v2454 = vld [vmem:[#allocation7] sm:$0xff]
    %v2455 = vld [vmem:[#allocation12] sm:$0xff]
    %v2456 = vld [vmem:[#allocation12 + $0x8] sm:$0xff]
    %v2457 = vld [vmem:[#allocation12 + $0x10] sm:$0xff]
    %v2458 = vld [vmem:[#allocation12 + $0x18] sm:$0xff]
    %v2459 = vld [vmem:[#allocation12 + $0x20] sm:$0xff]
    %v2460 = vld [vmem:[#allocation12 + $0x28] sm:$0xff]
    %v2461 = vld [vmem:[#allocation12 + $0x30] sm:$0xff]
    %v2462 = vld [vmem:[#allocation12 + $0x38] sm:$0xff]
    %v2463 = vld [vmem:[#allocation12 + $0x40] sm:$0xff]
    %v2464 = vld [vmem:[#allocation12 + $0x48] sm:$0xff]
    %v2465 = vld [vmem:[#allocation12 + $0x50] sm:$0xff]
    %v2466 = vld [vmem:[#allocation12 + $0x58] sm:$0xff]
    %v2467 = vld [vmem:[#allocation12 + $0x60] sm:$0xff]
    %v2468 = vld [vmem:[#allocation12 + $0x68] sm:$0xff]
    %v2469 = vld [vmem:[#allocation12 + $0x70] sm:$0xff]
    %v2470 = vld [vmem:[#allocation12 + $0x78] sm:$0xff]
    %v2471 = vld [vmem:[%s6] sm:$0xf]
    %v2473 = vlaneseq
    %v2474 = vshrl.u32 %v2473, 7
    %v2475 = vsub.s32 0, %v2474
    %v2476 = vrot.slane %v2471, %v2475
    %v2477 = vlaneseq
    %v2478 = vshrl.u32 %v2477, 7
    %v2479 = vsub.s32 1, %v2478
    %v2480 = vrot.slane %v2471, %v2479
    %v2481 = vlaneseq
    %v2482 = vshrl.u32 %v2481, 7
    %v2483 = vsub.s32 2, %v2482
    %v2484 = vrot.slane %v2471, %v2483
    %v2485 = vlaneseq
    %v2486 = vshrl.u32 %v2485, 7
    %v2487 = vsub.s32 3, %v2486
    %v2488 = vrot.slane %v2471, %v2487
    %v2494 = vsel %vm241, %v2454, 0
    %2496 = vmatprep.subr.mxu0 0.0
    %2497 = vmatpush1.msra.mxu0 0.0
    %2498 = vmatprep.subr.mxu0 0.0
    %2499 = vmatpush1.msra.mxu0 0.0
    %2500 = vmatprep.subr.mxu0 0.0
    %2501 = vmatpush1.msra.mxu0 0.0
    %2502 = vmatprep.subr.mxu0 0.0
    %2503 = vmatpush1.msra.mxu0 0.0
    %2504 = vmatprep.subr.mxu0 0.0
    %2505 = vmatpush1.msra.mxu0 0.0
    %2506 = vmatprep.subr.mxu0 0.0
    %2507 = vmatpush1.msra.mxu0 0.0
    %2508 = vmatprep.subr.mxu0 0.0
    %2509 = vmatpush1.msra.mxu0 0.0
    %2510 = vmatprep.subr.mxu0 0.0
    %2511 = vmatpush1.msra.mxu0 0.0
    %2512 = vmatprep.subr.mxu0 0.0
    %2513 = vmatpush1.msra.mxu0 0.0
    %2514 = vmatprep.subr.mxu0 0.0
    %2515 = vmatpush1.msra.mxu0 0.0
    %2516 = vmatprep.subr.mxu0 0.0
    %2517 = vmatpush1.msra.mxu0 0.0
    %2518 = vmatprep.subr.mxu0 0.0
    %2519 = vmatpush1.msra.mxu0 0.0
    %2520 = vmatprep.subr.mxu0 %v2468
    %2521 = vmatpush1.msra.mxu0 %v2467
    %2522 = vmatprep.subr.mxu0 %v2464
    %2523 = vmatpush1.msra.mxu0 %v2463
    %2524 = vmatprep.subr.mxu0 %v2460
    %2525 = vmatpush1.msra.mxu0 %v2459
    %2526 = vmatprep.subr.mxu0 %v2456
    %2527 = vmatpush1.msra.mxu0 %v2455
    %2528 = vmatprep.subr.mxu0 0.0
    %2529 = vmatpush2.msra.mxu0 0.0
    %2530 = vmatprep.subr.mxu0 0.0
    %2531 = vmatpush2.msra.mxu0 0.0
    %2532 = vmatprep.subr.mxu0 0.0
    %2533 = vmatpush2.msra.mxu0 0.0
    %2534 = vmatprep.subr.mxu0 0.0
    %2535 = vmatpush2.msra.mxu0 0.0
    %2536 = vmatprep.subr.mxu0 0.0
    %2537 = vmatpush2.msra.mxu0 0.0
    %2538 = vmatprep.subr.mxu0 0.0
    %2539 = vmatpush2.msra.mxu0 0.0
    %2540 = vmatprep.subr.mxu0 0.0
    %2541 = vmatpush2.msra.mxu0 0.0
    %2542 = vmatprep.subr.mxu0 0.0
    %2543 = vmatpush2.msra.mxu0 0.0
    %2544 = vmatprep.subr.mxu0 0.0
    %2545 = vmatpush2.msra.mxu0 0.0
    %2546 = vmatprep.subr.mxu0 0.0
    %2547 = vmatpush2.msra.mxu0 0.0
    %2548 = vmatprep.subr.mxu0 0.0
    %2549 = vmatpush2.msra.mxu0 0.0
    %2550 = vmatprep.subr.mxu0 0.0
    %2551 = vmatpush2.msra.mxu0 0.0
    %2552 = vmatprep.subr.mxu0 0.0
    %2553 = vmatpush2.msra.mxu0 0.0
    %2554 = vmatprep.subr.mxu0 0.0
    %2555 = vmatpush2.msra.mxu0 0.0
    %2556 = vmatprep.subr.mxu0 0.0
    %2557 = vmatpush2.msra.mxu0 0.0
    %2558 = vmatprep.subr.mxu0 0.0
    %2559 = vmatpush2.msra.mxu0 0.0
    %2560 = vmatprep.mubr.f32.mxu0 0.0
    %2561 = vmatmul.mubr.f32.gmra.mxu0 %v2494
    %v2562 = vpop.f32.mrf.mxu0
    %v2563 = vadd.f32 %v2476, %v2562
    %v2564 = vpop.f32.mrf.mxu0
    %v2565 = vadd.f32 %v2480, %v2564
    %2566 = vdwg.mxu0
    %2567 = vmatprep.subr.mxu0 0.0
    %2568 = vmatpush1.msra.mxu0 0.0
    %2569 = vmatprep.subr.mxu0 0.0
    %2570 = vmatpush1.msra.mxu0 0.0
    %2571 = vmatprep.subr.mxu0 0.0
    %2572 = vmatpush1.msra.mxu0 0.0
    %2573 = vmatprep.subr.mxu0 0.0
    %2574 = vmatpush1.msra.mxu0 0.0
    %2575 = vmatprep.subr.mxu0 0.0
    %2576 = vmatpush1.msra.mxu0 0.0
    %2577 = vmatprep.subr.mxu0 0.0
    %2578 = vmatpush1.msra.mxu0 0.0
    %2579 = vmatprep.subr.mxu0 0.0
    %2580 = vmatpush1.msra.mxu0 0.0
    %2581 = vmatprep.subr.mxu0 0.0
    %2582 = vmatpush1.msra.mxu0 0.0
    %2583 = vmatprep.subr.mxu0 0.0
    %2584 = vmatpush1.msra.mxu0 0.0
    %2585 = vmatprep.subr.mxu0 0.0
    %2586 = vmatpush1.msra.mxu0 0.0
    %2587 = vmatprep.subr.mxu0 0.0
    %2588 = vmatpush1.msra.mxu0 0.0
    %2589 = vmatprep.subr.mxu0 0.0
    %2590 = vmatpush1.msra.mxu0 0.0
    %2591 = vmatprep.subr.mxu0 %v2470
    %2592 = vmatpush1.msra.mxu0 %v2469
    %2593 = vmatprep.subr.mxu0 %v2466
    %2594 = vmatpush1.msra.mxu0 %v2465
    %2595 = vmatprep.subr.mxu0 %v2462
    %2596 = vmatpush1.msra.mxu0 %v2461
    %2597 = vmatprep.subr.mxu0 %v2458
    %2598 = vmatpush1.msra.mxu0 %v2457
    %2599 = vmatprep.subr.mxu0 0.0
    %2600 = vmatpush2.msra.mxu0 0.0
    %2601 = vmatprep.subr.mxu0 0.0
    %2602 = vmatpush2.msra.mxu0 0.0
    %2603 = vmatprep.subr.mxu0 0.0
    %2604 = vmatpush2.msra.mxu0 0.0
    %2605 = vmatprep.subr.mxu0 0.0
    %2606 = vmatpush2.msra.mxu0 0.0
    %2607 = vmatprep.subr.mxu0 0.0
    %2608 = vmatpush2.msra.mxu0 0.0
    %2609 = vmatprep.subr.mxu0 0.0
    %2610 = vmatpush2.msra.mxu0 0.0
    %2611 = vmatprep.subr.mxu0 0.0
    %2612 = vmatpush2.msra.mxu0 0.0
    %2613 = vmatprep.subr.mxu0 0.0
    %2614 = vmatpush2.msra.mxu0 0.0
    %2615 = vmatprep.subr.mxu0 0.0
    %2616 = vmatpush2.msra.mxu0 0.0
    %2617 = vmatprep.subr.mxu0 0.0
    %2618 = vmatpush2.msra.mxu0 0.0
    %2619 = vmatprep.subr.mxu0 0.0
    %2620 = vmatpush2.msra.mxu0 0.0
    %2621 = vmatprep.subr.mxu0 0.0
    %2622 = vmatpush2.msra.mxu0 0.0
    %2623 = vmatprep.subr.mxu0 0.0
    %2624 = vmatpush2.msra.mxu0 0.0
    %2625 = vmatprep.subr.mxu0 0.0
    %2626 = vmatpush2.msra.mxu0 0.0
    %2627 = vmatprep.subr.mxu0 0.0
    %2628 = vmatpush2.msra.mxu0 0.0
    %2629 = vmatprep.subr.mxu0 0.0
    %2630 = vmatpush2.msra.mxu0 0.0
    %2631 = vmatprep.mubr.f32.mxu0 0.0
    %2632 = vmatmul.mubr.f32.gmra.mxu0 %v2494
    %v2633 = vpop.f32.mrf.mxu0
    %v2634 = vadd.f32 %v2484, %v2633
    %v2635 = vpop.f32.mrf.mxu0
    %v2636 = vadd.f32 %v2488, %v2635
    %2637 = vdwg.mxu0
    %v2638 = vadd.f32 %v2563, 0.0
    %v2639 = vadd.f32 %v2565, 0.0
    %v2640 = vadd.f32 %v2634, 0.0
    %v2641 = vadd.f32 %v2636, 0.0
    %v2642 = vxor.u32 %v2638, 2147483648
    %v2643 = vmul.f32 %v2642, 1.442695
    %v2644 = vpow.pop %v2643
    %v2645 = vadd.f32 %v2644, 1.0
    %v2646 = vrcp.pop %v2645
    %v2647 = vmul.f32 1.0, %v2646
    %v2648 = vxor.u32 %v2639, 2147483648
    %v2649 = vmul.f32 %v2648, 1.442695
    %v2650 = vpow.pop %v2649
    %v2651 = vadd.f32 %v2650, 1.0
    %v2652 = vrcp.pop %v2651
    %v2653 = vmul.f32 1.0, %v2652
    %v2654 = vtanh.pop %v2640
    %v2655 = vxor.u32 %v2641, 2147483648
    %v2656 = vmul.f32 %v2655, 1.442695
    %v2657 = vpow.pop %v2656
    %v2658 = vadd.f32 %v2657, 1.0
    %v2659 = vrcp.pop %v2658
    %v2660 = vmul.f32 1.0, %v2659
    %v2661 = vmul.f32 %v2653, %v2300
    %v2662 = vmul.f32 %v2647, %v2654
    %v2663 = vadd.f32 %v2661, %v2662
    %v2664 = vtanh.pop %v2663
    %v2665 = vmul.f32 %v2660, %v2664
    %2666 = vmatprep.subr.mxu0 %v2449
    %2667 = vmatpush1.msra.mxu0 %v2448
    %2668 = vmatprep.subr.mxu0 %v2444
    %2669 = vmatpush1.msra.mxu0 %v2443
    %2670 = vmatprep.subr.mxu0 %v2439
    %2671 = vmatpush1.msra.mxu0 %v2438
    %2672 = vmatprep.subr.mxu0 %v2434
    %2673 = vmatpush1.msra.mxu0 %v2433
    %2674 = vmatprep.subr.mxu0 %v2429
    %2675 = vmatpush1.msra.mxu0 %v2428
    %2676 = vmatprep.subr.mxu0 %v2424
    %2677 = vmatpush1.msra.mxu0 %v2423
    %2678 = vmatprep.subr.mxu0 %v2419
    %2679 = vmatpush1.msra.mxu0 %v2418
    %2680 = vmatprep.subr.mxu0 %v2414
    %2681 = vmatpush1.msra.mxu0 %v2413
    %2682 = vmatprep.subr.mxu0 %v2409
    %2683 = vmatpush1.msra.mxu0 %v2408
    %2684 = vmatprep.subr.mxu0 %v2404
    %2685 = vmatpush1.msra.mxu0 %v2403
    %2686 = vmatprep.subr.mxu0 %v2399
    %2687 = vmatpush1.msra.mxu0 %v2398
    %2688 = vmatprep.subr.mxu0 %v2394
    %2689 = vmatpush1.msra.mxu0 %v2393
    %2690 = vmatprep.subr.mxu0 %v2389
    %2691 = vmatpush1.msra.mxu0 %v2388
    %2692 = vmatprep.subr.mxu0 %v2384
    %2693 = vmatpush1.msra.mxu0 %v2383
    %2694 = vmatprep.subr.mxu0 %v2379
    %2695 = vmatpush1.msra.mxu0 %v2378
    %2696 = vmatprep.subr.mxu0 %v2374
    %2697 = vmatpush1.msra.mxu0 %v2373
    %2698 = vmatprep.subr.mxu0 0.0
    %2699 = vmatpush2.msra.mxu0 0.0
    %2700 = vmatprep.subr.mxu0 0.0
    %2701 = vmatpush2.msra.mxu0 0.0
    %2702 = vmatprep.subr.mxu0 0.0
    %2703 = vmatpush2.msra.mxu0 0.0
    %2704 = vmatprep.subr.mxu0 0.0
    %2705 = vmatpush2.msra.mxu0 0.0
    %2706 = vmatprep.subr.mxu0 0.0
    %2707 = vmatpush2.msra.mxu0 0.0
    %2708 = vmatprep.subr.mxu0 0.0
    %2709 = vmatpush2.msra.mxu0 0.0
    %2710 = vmatprep.subr.mxu0 0.0
    %2711 = vmatpush2.msra.mxu0 0.0
    %2712 = vmatprep.subr.mxu0 0.0
    %2713 = vmatpush2.msra.mxu0 0.0
    %2714 = vmatprep.subr.mxu0 0.0
    %2715 = vmatpush2.msra.mxu0 0.0
    %2716 = vmatprep.subr.mxu0 0.0
    %2717 = vmatpush2.msra.mxu0 0.0
    %2718 = vmatprep.subr.mxu0 0.0
    %2719 = vmatpush2.msra.mxu0 0.0
    %2720 = vmatprep.subr.mxu0 0.0
    %2721 = vmatpush2.msra.mxu0 0.0
    %2722 = vmatprep.subr.mxu0 0.0
    %2723 = vmatpush2.msra.mxu0 0.0
    %2724 = vmatprep.subr.mxu0 0.0
    %2725 = vmatpush2.msra.mxu0 0.0
    %2726 = vmatprep.subr.mxu0 0.0
    %2727 = vmatpush2.msra.mxu0 0.0
    %2728 = vmatprep.subr.mxu0 0.0
    %2729 = vmatpush2.msra.mxu0 0.0
    %2730 = vmatprep.mubr.f32.mxu0 0.0
    %2731 = vmatmul.mubr.f32.gmra.mxu0 %v2665
    %v2732 = vpop.f32.mrf.mxu0
    %v2733 = vadd.f32 0.0, %v2732
    %v2734 = vpop.f32.mrf.mxu0
    %v2735 = vadd.f32 0.0, %v2734
    %2736 = vdwg.mxu0
    %2737 = vmatprep.subr.mxu0 %v2451
    %2738 = vmatpush1.msra.mxu0 %v2450
    %2739 = vmatprep.subr.mxu0 %v2446
    %2740 = vmatpush1.msra.mxu0 %v2445
    %2741 = vmatprep.subr.mxu0 %v2441
    %2742 = vmatpush1.msra.mxu0 %v2440
    %2743 = vmatprep.subr.mxu0 %v2436
    %2744 = vmatpush1.msra.mxu0 %v2435
    %2745 = vmatprep.subr.mxu0 %v2431
    %2746 = vmatpush1.msra.mxu0 %v2430
    %2747 = vmatprep.subr.mxu0 %v2426
    %2748 = vmatpush1.msra.mxu0 %v2425
    %2749 = vmatprep.subr.mxu0 %v2421
    %2750 = vmatpush1.msra.mxu0 %v2420
    %2751 = vmatprep.subr.mxu0 %v2416
    %2752 = vmatpush1.msra.mxu0 %v2415
    %2753 = vmatprep.subr.mxu0 %v2411
    %2754 = vmatpush1.msra.mxu0 %v2410
    %2755 = vmatprep.subr.mxu0 %v2406
    %2756 = vmatpush1.msra.mxu0 %v2405
    %2757 = vmatprep.subr.mxu0 %v2401
    %2758 = vmatpush1.msra.mxu0 %v2400
    %2759 = vmatprep.subr.mxu0 %v2396
    %2760 = vmatpush1.msra.mxu0 %v2395
    %2761 = vmatprep.subr.mxu0 %v2391
    %2762 = vmatpush1.msra.mxu0 %v2390
    %2763 = vmatprep.subr.mxu0 %v2386
    %2764 = vmatpush1.msra.mxu0 %v2385
    %2765 = vmatprep.subr.mxu0 %v2381
    %2766 = vmatpush1.msra.mxu0 %v2380
    %2767 = vmatprep.subr.mxu0 %v2376
    %2768 = vmatpush1.msra.mxu0 %v2375
    %2769 = vmatprep.subr.mxu0 0.0
    %2770 = vmatpush2.msra.mxu0 0.0
    %2771 = vmatprep.subr.mxu0 0.0
    %2772 = vmatpush2.msra.mxu0 0.0
    %2773 = vmatprep.subr.mxu0 0.0
    %2774 = vmatpush2.msra.mxu0 0.0
    %2775 = vmatprep.subr.mxu0 0.0
    %2776 = vmatpush2.msra.mxu0 0.0
    %2777 = vmatprep.subr.mxu0 0.0
    %2778 = vmatpush2.msra.mxu0 0.0
    %2779 = vmatprep.subr.mxu0 0.0
    %2780 = vmatpush2.msra.mxu0 0.0
    %2781 = vmatprep.subr.mxu0 0.0
    %2782 = vmatpush2.msra.mxu0 0.0
    %2783 = vmatprep.subr.mxu0 0.0
    %2784 = vmatpush2.msra.mxu0 0.0
    %2785 = vmatprep.subr.mxu0 0.0
    %2786 = vmatpush2.msra.mxu0 0.0
    %2787 = vmatprep.subr.mxu0 0.0
    %2788 = vmatpush2.msra.mxu0 0.0
    %2789 = vmatprep.subr.mxu0 0.0
    %2790 = vmatpush2.msra.mxu0 0.0
    %2791 = vmatprep.subr.mxu0 0.0
    %2792 = vmatpush2.msra.mxu0 0.0
    %2793 = vmatprep.subr.mxu0 0.0
    %2794 = vmatpush2.msra.mxu0 0.0
    %2795 = vmatprep.subr.mxu0 0.0
    %2796 = vmatpush2.msra.mxu0 0.0
    %2797 = vmatprep.subr.mxu0 0.0
    %2798 = vmatpush2.msra.mxu0 0.0
    %2799 = vmatprep.subr.mxu0 0.0
    %2800 = vmatpush2.msra.mxu0 0.0
    %2801 = vmatprep.mubr.f32.mxu0 0.0
    %2802 = vmatmul.mubr.f32.gmra.mxu0 %v2665
    %v2803 = vpop.f32.mrf.mxu0
    %v2804 = vadd.f32 0.0, %v2803
    %v2805 = vpop.f32.mrf.mxu0
    %v2806 = vadd.f32 0.0, %v2805
    %2807 = vdwg.mxu0
    %2808 = vmatprep.subr.mxu0 0.0
    %2809 = vmatpush1.msra.mxu0 %v2452
    %2810 = vmatprep.subr.mxu0 0.0
    %2811 = vmatpush1.msra.mxu0 %v2447
    %2812 = vmatprep.subr.mxu0 0.0
    %2813 = vmatpush1.msra.mxu0 %v2442
    %2814 = vmatprep.subr.mxu0 0.0
    %2815 = vmatpush1.msra.mxu0 %v2437
    %2816 = vmatprep.subr.mxu0 0.0
    %2817 = vmatpush1.msra.mxu0 %v2432
    %2818 = vmatprep.subr.mxu0 0.0
    %2819 = vmatpush1.msra.mxu0 %v2427
    %2820 = vmatprep.subr.mxu0 0.0
    %2821 = vmatpush1.msra.mxu0 %v2422
    %2822 = vmatprep.subr.mxu0 0.0
    %2823 = vmatpush1.msra.mxu0 %v2417
    %2824 = vmatprep.subr.mxu0 0.0
    %2825 = vmatpush1.msra.mxu0 %v2412
    %2826 = vmatprep.subr.mxu0 0.0
    %2827 = vmatpush1.msra.mxu0 %v2407
    %2828 = vmatprep.subr.mxu0 0.0
    %2829 = vmatpush1.msra.mxu0 %v2402
    %2830 = vmatprep.subr.mxu0 0.0
    %2831 = vmatpush1.msra.mxu0 %v2397
    %2832 = vmatprep.subr.mxu0 0.0
    %2833 = vmatpush1.msra.mxu0 %v2392
    %2834 = vmatprep.subr.mxu0 0.0
    %2835 = vmatpush1.msra.mxu0 %v2387
    %2836 = vmatprep.subr.mxu0 0.0
    %2837 = vmatpush1.msra.mxu0 %v2382
    %2838 = vmatprep.subr.mxu0 0.0
    %2839 = vmatpush1.msra.mxu0 %v2377
    %2840 = vmatprep.subr.mxu0 0.0
    %2841 = vmatpush2.msra.mxu0 0.0
    %2842 = vmatprep.subr.mxu0 0.0
    %2843 = vmatpush2.msra.mxu0 0.0
    %2844 = vmatprep.subr.mxu0 0.0
    %2845 = vmatpush2.msra.mxu0 0.0
    %2846 = vmatprep.subr.mxu0 0.0
    %2847 = vmatpush2.msra.mxu0 0.0
    %2848 = vmatprep.subr.mxu0 0.0
    %2849 = vmatpush2.msra.mxu0 0.0
    %2850 = vmatprep.subr.mxu0 0.0
    %2851 = vmatpush2.msra.mxu0 0.0
    %2852 = vmatprep.subr.mxu0 0.0
    %2853 = vmatpush2.msra.mxu0 0.0
    %2854 = vmatprep.subr.mxu0 0.0
    %2855 = vmatpush2.msra.mxu0 0.0
    %2856 = vmatprep.subr.mxu0 0.0
    %2857 = vmatpush2.msra.mxu0 0.0
    %2858 = vmatprep.subr.mxu0 0.0
    %2859 = vmatpush2.msra.mxu0 0.0
    %2860 = vmatprep.subr.mxu0 0.0
    %2861 = vmatpush2.msra.mxu0 0.0
    %2862 = vmatprep.subr.mxu0 0.0
    %2863 = vmatpush2.msra.mxu0 0.0
    %2864 = vmatprep.subr.mxu0 0.0
    %2865 = vmatpush2.msra.mxu0 0.0
    %2866 = vmatprep.subr.mxu0 0.0
    %2867 = vmatpush2.msra.mxu0 0.0
    %2868 = vmatprep.subr.mxu0 0.0
    %2869 = vmatpush2.msra.mxu0 0.0
    %2870 = vmatprep.subr.mxu0 0.0
    %2871 = vmatpush2.msra.mxu0 0.0
    %2872 = vmatprep.mubr.f32.mxu0 0.0
    %2873 = vmatmul.mubr.f32.gmra.mxu0 %v2665
    %v2874 = vpop.f32.mrf.mxu0
    %v2875 = vadd.f32 0.0, %v2874
    %v2876 = vpop.f32.mrf.mxu0
    %2877 = vdwg.mxu0
    %v2878 = vld [vmem:[#allocation3] sm:$0xff]
    %v2879 = vld [vmem:[#allocation3 + $0x8] sm:$0xff]
    %v2880 = vld [vmem:[#allocation3 + $0x10] sm:$0xff]
    %v2881 = vld [vmem:[#allocation3 + $0x18] sm:$0xff]
    %v2882 = vld [vmem:[#allocation3 + $0x20] sm:$0xff]
    %v2883 = vld [vmem:[#allocation3 + $0x28] sm:$0xff]
    %v2884 = vld [vmem:[#allocation3 + $0x30] sm:$0xff]
    %v2885 = vld [vmem:[#allocation3 + $0x38] sm:$0xff]
    %v2886 = vadd.f32 %v2878, %v2875
    %v2887 = vadd.f32 %v2879, %v2875
    %v2888 = vadd.f32 %v2880, %v2875
    %v2889 = vadd.f32 %v2881, %v2875
    %v2890 = vadd.f32 %v2882, %v2875
    %v2891 = vadd.f32 %v2883, %v2875
    %v2892 = vadd.f32 %v2884, %v2875
    %v2893 = vadd.f32 %v2885, %v2875
    %v2894 = vtanh.pop %v2886
    %v2895 = vtanh.pop %v2887
    %v2896 = vtanh.pop %v2888
    %v2897 = vtanh.pop %v2889
    %v2898 = vtanh.pop %v2890
    %v2899 = vtanh.pop %v2891
    %v2900 = vtanh.pop %v2892
    %v2901 = vtanh.pop %v2893
    %v2903 = vlaneseq
    %v2904 = vshrl.u32 %v2903, 7
    %v2905 = vsub.s32 0, %v2904
    %v2906 = vrot.slane %v2453, %v2905
    %v2908 = vmul.f32 %v2894, %v2906
    %v2909 = vmul.f32 %v2895, %v2906
    %v2910 = vmul.f32 %v2896, %v2906
    %v2911 = vmul.f32 %v2897, %v2906
    %v2912 = vmul.f32 %v2898, %v2906
    %v2913 = vmul.f32 %v2899, %v2906
    %v2914 = vmul.f32 %v2900, %v2906
    %v2915 = vmul.f32 %v2901, %v2906
    %2916 = vadd.xlane.f32.xlu0 %v2908
    %v2917 = vpop.xlane.xlu0 %2916
    %2918 = vadd.xlane.f32.xlu0 %v2909
    %v2919 = vpop.xlane.xlu0 %2918
    %2920 = vadd.xlane.f32.xlu0 %v2910
    %v2921 = vpop.xlane.xlu0 %2920
    %2922 = vadd.xlane.f32.xlu0 %v2911
    %v2923 = vpop.xlane.xlu0 %2922
    %2924 = vadd.xlane.f32.xlu0 %v2912
    %v2925 = vpop.xlane.xlu0 %2924
    %2926 = vadd.xlane.f32.xlu0 %v2913
    %v2927 = vpop.xlane.xlu0 %2926
    %2928 = vadd.xlane.f32.xlu0 %v2914
    %v2929 = vpop.xlane.xlu0 %2928
    %2930 = vadd.xlane.f32.xlu0 %v2915
    %v2931 = vpop.xlane.xlu0 %2930
    %v2940 = vlaneseq
    %v2941 = vand.u32 %v2940, 127
    %v2942 = vlaneseq
    %v2943 = vshrl.u32 %v2942, 7
    %v2944 = vsub.s32 %v2941, %v2943
    %v2945 = vrot.slane %v2917, %v2944
    %v2946 = vlaneseq
    %v2947 = vshrl.u32 %v2946, 7
    %v2948 = vsub.s32 %v2941, %v2947
    %v2949 = vrot.slane %v2919, %v2948
    %v2950 = vlaneseq
    %v2951 = vshrl.u32 %v2950, 7
    %v2952 = vsub.s32 %v2941, %v2951
    %v2953 = vrot.slane %v2921, %v2952
    %v2954 = vlaneseq
    %v2955 = vshrl.u32 %v2954, 7
    %v2956 = vsub.s32 %v2941, %v2955
    %v2957 = vrot.slane %v2923, %v2956
    %v2958 = vlaneseq
    %v2959 = vshrl.u32 %v2958, 7
    %v2960 = vsub.s32 %v2941, %v2959
    %v2961 = vrot.slane %v2925, %v2960
    %v2962 = vlaneseq
    %v2963 = vshrl.u32 %v2962, 7
    %v2964 = vsub.s32 %v2941, %v2963
    %v2965 = vrot.slane %v2927, %v2964
    %v2966 = vlaneseq
    %v2967 = vshrl.u32 %v2966, 7
    %v2968 = vsub.s32 %v2941, %v2967
    %v2969 = vrot.slane %v2929, %v2968
    %v2970 = vlaneseq
    %v2971 = vshrl.u32 %v2970, 7
    %v2972 = vsub.s32 %v2941, %v2971
    %v2973 = vrot.slane %v2931, %v2972
    %vm2974 = vcmask 1041409
    %v2975 = vsel %vm2974, %v2949, %v2945
    %vm2976 = vcmask 1042434
    %v2977 = vsel %vm2976, %v2953, %v2975
    %vm2978 = vcmask 1043459
    %v2979 = vsel %vm2978, %v2957, %v2977
    %vm2980 = vcmask 1044484
    %v2981 = vsel %vm2980, %v2961, %v2979
    %vm2982 = vcmask 1045509
    %v2983 = vsel %vm2982, %v2965, %v2981
    %vm2984 = vcmask 1046534
    %v2985 = vsel %vm2984, %v2969, %v2983
    %vm2986 = vcmask 1047559
    %v2987 = vsel %vm2986, %v2973, %v2985
    %2989 = vxpose.xlu0.b32.start [1/16] %v2987, 128
    %2990 = vxpose.xlu0.b32.cont [2/16] 0.0, 128
    %2991 = vxpose.xlu0.b32.cont [3/16] 0.0, 128
    %2992 = vxpose.xlu0.b32.cont [4/16] 0.0, 128
    %2993 = vxpose.xlu0.b32.cont [5/16] 0.0, 128
    %2994 = vxpose.xlu0.b32.cont [6/16] 0.0, 128
    %2995 = vxpose.xlu0.b32.cont [7/16] 0.0, 128
    %2996 = vxpose.xlu0.b32.cont [8/16] 0.0, 128
    %2997 = vxpose.xlu0.b32.cont [9/16] 0.0, 128
    %2998 = vxpose.xlu0.b32.cont [10/16] 0.0, 128
    %2999 = vxpose.xlu0.b32.cont [11/16] 0.0, 128
    %3000 = vxpose.xlu0.b32.cont [12/16] 0.0, 128
    %3001 = vxpose.xlu0.b32.cont [13/16] 0.0, 128
    %3002 = vxpose.xlu0.b32.cont [14/16] 0.0, 128
    %3003 = vxpose.xlu0.b32.cont [15/16] 0.0, 128
    %3004 = vxpose.xlu0.b32.end [16/16] 0.0, 128
    %v3005 = vpop.trf.xlu0
    %v3006 = vpop.trf.xlu0
    %v3007 = vpop.trf.xlu0
    %v3008 = vpop.trf.xlu0
    %v3009 = vpop.trf.xlu0
    %v3010 = vpop.trf.xlu0
    %v3011 = vpop.trf.xlu0
    %v3012 = vpop.trf.xlu0
    %v3013 = vpop.trf.xlu0
    %v3014 = vpop.trf.xlu0
    %v3015 = vpop.trf.xlu0
    %v3016 = vpop.trf.xlu0
    %v3017 = vpop.trf.xlu0
    %v3018 = vpop.trf.xlu0
    %v3019 = vpop.trf.xlu0
    %v3020 = vpop.trf.xlu0
    %vm3021 = vcmask 64512
    %v3022 = vsel %vm3021, %v3005, -inf
    %3023 = vmax.xlane.f32.xlu0 %v3022
    %v3024 = vpop.xlane.xlu0 %3023
    %v3025 = vsub.f32 %v3005, %v3024
    %v3026 = vmul.f32 %v3025, 1.442695
    %v3027 = vpow.pop %v3026
    %v3028 = vsel %vm3021, %v3027, 0.0
    %3029 = vadd.xlane.f32.xlu0 %v3028
    %v3030 = vpop.xlane.xlu0 %3029
    %v3031 = vlog2.pop %v3030
    %v3032 = vmul.f32 %v3031, 0.6931472
    %v3033 = vadd.f32 %v3024, %v3032
    %v3034 = vsub.f32 %v3005, %v3033
    %v3035 = vsub.f32 0.0, %v3034
    %v3036 = vsel %vm3021, %v3035, 0.0
    %3037 = vst [vmem:[#allocation15] sm:$0xff] %v3036
    %v3038 = vadd.f32 %v2563, %v2733
    %v3039 = vadd.f32 %v2565, %v2735
    %v3040 = vadd.f32 %v2634, %v2804
    %v3041 = vadd.f32 %v2636, %v2806
    %v3042 = vxor.u32 %v3038, 2147483648
    %v3043 = vmul.f32 %v3042, 1.442695
    %v3044 = vpow.pop %v3043
    %v3045 = vadd.f32 %v3044, 1.0
    %v3046 = vrcp.pop %v3045
    %v3047 = vmul.f32 1.0, %v3046
    %v3048 = vxor.u32 %v3039, 2147483648
    %v3049 = vmul.f32 %v3048, 1.442695
    %v3050 = vpow.pop %v3049
    %v3051 = vadd.f32 %v3050, 1.0
    %v3052 = vrcp.pop %v3051
    %v3053 = vmul.f32 1.0, %v3052
    %v3054 = vtanh.pop %v3040
    %v3055 = vxor.u32 %v3041, 2147483648
    %v3056 = vmul.f32 %v3055, 1.442695
    %v3057 = vpow.pop %v3056
    %v3058 = vadd.f32 %v3057, 1.0
    %v3059 = vrcp.pop %v3058
    %v3060 = vmul.f32 1.0, %v3059
    %v3061 = vmul.f32 %v3053, %v2663
    %v3062 = vmul.f32 %v3047, %v3054
    %v3063 = vadd.f32 %v3061, %v3062
    %v3064 = vtanh.pop %v3063
    %v3065 = vmul.f32 %v3060, %v3064
    %3066 = vmatprep.subr.mxu0 %v2449
    %3067 = vmatpush1.msra.mxu0 %v2448
    %3068 = vmatprep.subr.mxu0 %v2444
    %3069 = vmatpush1.msra.mxu0 %v2443
    %3070 = vmatprep.subr.mxu0 %v2439
    %3071 = vmatpush1.msra.mxu0 %v2438
    %3072 = vmatprep.subr.mxu0 %v2434
    %3073 = vmatpush1.msra.mxu0 %v2433
    %3074 = vmatprep.subr.mxu0 %v2429
    %3075 = vmatpush1.msra.mxu0 %v2428
    %3076 = vmatprep.subr.mxu0 %v2424
    %3077 = vmatpush1.msra.mxu0 %v2423
    %3078 = vmatprep.subr.mxu0 %v2419
    %3079 = vmatpush1.msra.mxu0 %v2418
    %3080 = vmatprep.subr.mxu0 %v2414
    %3081 = vmatpush1.msra.mxu0 %v2413
    %3082 = vmatprep.subr.mxu0 %v2409
    %3083 = vmatpush1.msra.mxu0 %v2408
    %3084 = vmatprep.subr.mxu0 %v2404
    %3085 = vmatpush1.msra.mxu0 %v2403
    %3086 = vmatprep.subr.mxu0 %v2399
    %3087 = vmatpush1.msra.mxu0 %v2398
    %3088 = vmatprep.subr.mxu0 %v2394
    %3089 = vmatpush1.msra.mxu0 %v2393
    %3090 = vmatprep.subr.mxu0 %v2389
    %3091 = vmatpush1.msra.mxu0 %v2388
    %3092 = vmatprep.subr.mxu0 %v2384
    %3093 = vmatpush1.msra.mxu0 %v2383
    %3094 = vmatprep.subr.mxu0 %v2379
    %3095 = vmatpush1.msra.mxu0 %v2378
    %3096 = vmatprep.subr.mxu0 %v2374
    %3097 = vmatpush1.msra.mxu0 %v2373
    %3098 = vmatprep.subr.mxu0 0.0
    %3099 = vmatpush2.msra.mxu0 0.0
    %3100 = vmatprep.subr.mxu0 0.0
    %3101 = vmatpush2.msra.mxu0 0.0
    %3102 = vmatprep.subr.mxu0 0.0
    %3103 = vmatpush2.msra.mxu0 0.0
    %3104 = vmatprep.subr.mxu0 0.0
    %3105 = vmatpush2.msra.mxu0 0.0
    %3106 = vmatprep.subr.mxu0 0.0
    %3107 = vmatpush2.msra.mxu0 0.0
    %3108 = vmatprep.subr.mxu0 0.0
    %3109 = vmatpush2.msra.mxu0 0.0
    %3110 = vmatprep.subr.mxu0 0.0
    %3111 = vmatpush2.msra.mxu0 0.0
    %3112 = vmatprep.subr.mxu0 0.0
    %3113 = vmatpush2.msra.mxu0 0.0
    %3114 = vmatprep.subr.mxu0 0.0
    %3115 = vmatpush2.msra.mxu0 0.0
    %3116 = vmatprep.subr.mxu0 0.0
    %3117 = vmatpush2.msra.mxu0 0.0
    %3118 = vmatprep.subr.mxu0 0.0
    %3119 = vmatpush2.msra.mxu0 0.0
    %3120 = vmatprep.subr.mxu0 0.0
    %3121 = vmatpush2.msra.mxu0 0.0
    %3122 = vmatprep.subr.mxu0 0.0
    %3123 = vmatpush2.msra.mxu0 0.0
    %3124 = vmatprep.subr.mxu0 0.0
    %3125 = vmatpush2.msra.mxu0 0.0
    %3126 = vmatprep.subr.mxu0 0.0
    %3127 = vmatpush2.msra.mxu0 0.0
    %3128 = vmatprep.subr.mxu0 0.0
    %3129 = vmatpush2.msra.mxu0 0.0
    %3130 = vmatprep.mubr.f32.mxu0 0.0
    %3131 = vmatmul.mubr.f32.gmra.mxu0 %v3065
    %v3132 = vpop.f32.mrf.mxu0
    %v3133 = vadd.f32 0.0, %v3132
    %v3134 = vpop.f32.mrf.mxu0
    %v3135 = vadd.f32 0.0, %v3134
    %3136 = vdwg.mxu0
    %3137 = vmatprep.subr.mxu0 %v2451
    %3138 = vmatpush1.msra.mxu0 %v2450
    %3139 = vmatprep.subr.mxu0 %v2446
    %3140 = vmatpush1.msra.mxu0 %v2445
    %3141 = vmatprep.subr.mxu0 %v2441
    %3142 = vmatpush1.msra.mxu0 %v2440
    %3143 = vmatprep.subr.mxu0 %v2436
    %3144 = vmatpush1.msra.mxu0 %v2435
    %3145 = vmatprep.subr.mxu0 %v2431
    %3146 = vmatpush1.msra.mxu0 %v2430
    %3147 = vmatprep.subr.mxu0 %v2426
    %3148 = vmatpush1.msra.mxu0 %v2425
    %3149 = vmatprep.subr.mxu0 %v2421
    %3150 = vmatpush1.msra.mxu0 %v2420
    %3151 = vmatprep.subr.mxu0 %v2416
    %3152 = vmatpush1.msra.mxu0 %v2415
    %3153 = vmatprep.subr.mxu0 %v2411
    %3154 = vmatpush1.msra.mxu0 %v2410
    %3155 = vmatprep.subr.mxu0 %v2406
    %3156 = vmatpush1.msra.mxu0 %v2405
    %3157 = vmatprep.subr.mxu0 %v2401
    %3158 = vmatpush1.msra.mxu0 %v2400
    %3159 = vmatprep.subr.mxu0 %v2396
    %3160 = vmatpush1.msra.mxu0 %v2395
    %3161 = vmatprep.subr.mxu0 %v2391
    %3162 = vmatpush1.msra.mxu0 %v2390
    %3163 = vmatprep.subr.mxu0 %v2386
    %3164 = vmatpush1.msra.mxu0 %v2385
    %3165 = vmatprep.subr.mxu0 %v2381
    %3166 = vmatpush1.msra.mxu0 %v2380
    %3167 = vmatprep.subr.mxu0 %v2376
    %3168 = vmatpush1.msra.mxu0 %v2375
    %3169 = vmatprep.subr.mxu0 0.0
    %3170 = vmatpush2.msra.mxu0 0.0
    %3171 = vmatprep.subr.mxu0 0.0
    %3172 = vmatpush2.msra.mxu0 0.0
    %3173 = vmatprep.subr.mxu0 0.0
    %3174 = vmatpush2.msra.mxu0 0.0
    %3175 = vmatprep.subr.mxu0 0.0
    %3176 = vmatpush2.msra.mxu0 0.0
    %3177 = vmatprep.subr.mxu0 0.0
    %3178 = vmatpush2.msra.mxu0 0.0
    %3179 = vmatprep.subr.mxu0 0.0
    %3180 = vmatpush2.msra.mxu0 0.0
    %3181 = vmatprep.subr.mxu0 0.0
    %3182 = vmatpush2.msra.mxu0 0.0
    %3183 = vmatprep.subr.mxu0 0.0
    %3184 = vmatpush2.msra.mxu0 0.0
    %3185 = vmatprep.subr.mxu0 0.0
    %3186 = vmatpush2.msra.mxu0 0.0
    %3187 = vmatprep.subr.mxu0 0.0
    %3188 = vmatpush2.msra.mxu0 0.0
    %3189 = vmatprep.subr.mxu0 0.0
    %3190 = vmatpush2.msra.mxu0 0.0
    %3191 = vmatprep.subr.mxu0 0.0
    %3192 = vmatpush2.msra.mxu0 0.0
    %3193 = vmatprep.subr.mxu0 0.0
    %3194 = vmatpush2.msra.mxu0 0.0
    %3195 = vmatprep.subr.mxu0 0.0
    %3196 = vmatpush2.msra.mxu0 0.0
    %3197 = vmatprep.subr.mxu0 0.0
    %3198 = vmatpush2.msra.mxu0 0.0
    %3199 = vmatprep.subr.mxu0 0.0
    %3200 = vmatpush2.msra.mxu0 0.0
    %3201 = vmatprep.mubr.f32.mxu0 0.0
    %3202 = vmatmul.mubr.f32.gmra.mxu0 %v3065
    %v3203 = vpop.f32.mrf.mxu0
    %v3204 = vadd.f32 0.0, %v3203
    %v3205 = vpop.f32.mrf.mxu0
    %v3206 = vadd.f32 0.0, %v3205
    %3207 = vdwg.mxu0
    %3208 = vmatprep.subr.mxu0 0.0
    %3209 = vmatpush1.msra.mxu0 %v2452
    %3210 = vmatprep.subr.mxu0 0.0
    %3211 = vmatpush1.msra.mxu0 %v2447
    %3212 = vmatprep.subr.mxu0 0.0
    %3213 = vmatpush1.msra.mxu0 %v2442
    %3214 = vmatprep.subr.mxu0 0.0
    %3215 = vmatpush1.msra.mxu0 %v2437
    %3216 = vmatprep.subr.mxu0 0.0
    %3217 = vmatpush1.msra.mxu0 %v2432
    %3218 = vmatprep.subr.mxu0 0.0
    %3219 = vmatpush1.msra.mxu0 %v2427
    %3220 = vmatprep.subr.mxu0 0.0
    %3221 = vmatpush1.msra.mxu0 %v2422
    %3222 = vmatprep.subr.mxu0 0.0
    %3223 = vmatpush1.msra.mxu0 %v2417
    %3224 = vmatprep.subr.mxu0 0.0
    %3225 = vmatpush1.msra.mxu0 %v2412
    %3226 = vmatprep.subr.mxu0 0.0
    %3227 = vmatpush1.msra.mxu0 %v2407
    %3228 = vmatprep.subr.mxu0 0.0
    %3229 = vmatpush1.msra.mxu0 %v2402
    %3230 = vmatprep.subr.mxu0 0.0
    %3231 = vmatpush1.msra.mxu0 %v2397
    %3232 = vmatprep.subr.mxu0 0.0
    %3233 = vmatpush1.msra.mxu0 %v2392
    %3234 = vmatprep.subr.mxu0 0.0
    %3235 = vmatpush1.msra.mxu0 %v2387
    %3236 = vmatprep.subr.mxu0 0.0
    %3237 = vmatpush1.msra.mxu0 %v2382
    %3238 = vmatprep.subr.mxu0 0.0
    %3239 = vmatpush1.msra.mxu0 %v2377
    %3240 = vmatprep.subr.mxu0 0.0
    %3241 = vmatpush2.msra.mxu0 0.0
    %3242 = vmatprep.subr.mxu0 0.0
    %3243 = vmatpush2.msra.mxu0 0.0
    %3244 = vmatprep.subr.mxu0 0.0
    %3245 = vmatpush2.msra.mxu0 0.0
    %3246 = vmatprep.subr.mxu0 0.0
    %3247 = vmatpush2.msra.mxu0 0.0
    %3248 = vmatprep.subr.mxu0 0.0
    %3249 = vmatpush2.msra.mxu0 0.0
    %3250 = vmatprep.subr.mxu0 0.0
    %3251 = vmatpush2.msra.mxu0 0.0
    %3252 = vmatprep.subr.mxu0 0.0
    %3253 = vmatpush2.msra.mxu0 0.0
    %3254 = vmatprep.subr.mxu0 0.0
    %3255 = vmatpush2.msra.mxu0 0.0
    %3256 = vmatprep.subr.mxu0 0.0
    %3257 = vmatpush2.msra.mxu0 0.0
    %3258 = vmatprep.subr.mxu0 0.0
    %3259 = vmatpush2.msra.mxu0 0.0
    %3260 = vmatprep.subr.mxu0 0.0
    %3261 = vmatpush2.msra.mxu0 0.0
    %3262 = vmatprep.subr.mxu0 0.0
    %3263 = vmatpush2.msra.mxu0 0.0
    %3264 = vmatprep.subr.mxu0 0.0
    %3265 = vmatpush2.msra.mxu0 0.0
    %3266 = vmatprep.subr.mxu0 0.0
    %3267 = vmatpush2.msra.mxu0 0.0
    %3268 = vmatprep.subr.mxu0 0.0
    %3269 = vmatpush2.msra.mxu0 0.0
    %3270 = vmatprep.subr.mxu0 0.0
    %3271 = vmatpush2.msra.mxu0 0.0
    %3272 = vmatprep.mubr.f32.mxu0 0.0
    %3273 = vmatmul.mubr.f32.gmra.mxu0 %v3065
    %v3274 = vpop.f32.mrf.mxu0
    %v3275 = vadd.f32 0.0, %v3274
    %v3276 = vpop.f32.mrf.mxu0
    %3277 = vdwg.mxu0
    %v3278 = vld [vmem:[#allocation3] sm:$0xff]
    %v3279 = vld [vmem:[#allocation3 + $0x8] sm:$0xff]
    %v3280 = vld [vmem:[#allocation3 + $0x10] sm:$0xff]
    %v3281 = vld [vmem:[#allocation3 + $0x18] sm:$0xff]
    %v3282 = vld [vmem:[#allocation3 + $0x20] sm:$0xff]
    %v3283 = vld [vmem:[#allocation3 + $0x28] sm:$0xff]
    %v3284 = vld [vmem:[#allocation3 + $0x30] sm:$0xff]
    %v3285 = vld [vmem:[#allocation3 + $0x38] sm:$0xff]
    %v3286 = vadd.f32 %v3278, %v3275
    %v3287 = vadd.f32 %v3279, %v3275
    %v3288 = vadd.f32 %v3280, %v3275
    %v3289 = vadd.f32 %v3281, %v3275
    %v3290 = vadd.f32 %v3282, %v3275
    %v3291 = vadd.f32 %v3283, %v3275
    %v3292 = vadd.f32 %v3284, %v3275
    %v3293 = vadd.f32 %v3285, %v3275
    %v3294 = vtanh.pop %v3286
    %v3295 = vtanh.pop %v3287
    %v3296 = vtanh.pop %v3288
    %v3297 = vtanh.pop %v3289
    %v3298 = vtanh.pop %v3290
    %v3299 = vtanh.pop %v3291
    %v3300 = vtanh.pop %v3292
    %v3301 = vtanh.pop %v3293
    %v3302 = vmul.f32 %v3294, %v2906
    %v3303 = vmul.f32 %v3295, %v2906
    %v3304 = vmul.f32 %v3296, %v2906
    %v3305 = vmul.f32 %v3297, %v2906
    %v3306 = vmul.f32 %v3298, %v2906
    %v3307 = vmul.f32 %v3299, %v2906
    %v3308 = vmul.f32 %v3300, %v2906
    %v3309 = vmul.f32 %v3301, %v2906
    %3310 = vadd.xlane.f32.xlu0 %v3302
    %v3311 = vpop.xlane.xlu0 %3310
    %3312 = vadd.xlane.f32.xlu0 %v3303
    %v3313 = vpop.xlane.xlu0 %3312
    %3314 = vadd.xlane.f32.xlu0 %v3304
    %v3315 = vpop.xlane.xlu0 %3314
    %3316 = vadd.xlane.f32.xlu0 %v3305
    %v3317 = vpop.xlane.xlu0 %3316
    %3318 = vadd.xlane.f32.xlu0 %v3306
    %v3319 = vpop.xlane.xlu0 %3318
    %3320 = vadd.xlane.f32.xlu0 %v3307
    %v3321 = vpop.xlane.xlu0 %3320
    %3322 = vadd.xlane.f32.xlu0 %v3308
    %v3323 = vpop.xlane.xlu0 %3322
    %3324 = vadd.xlane.f32.xlu0 %v3309
    %v3325 = vpop.xlane.xlu0 %3324
    %v3334 = vlaneseq
    %v3335 = vshrl.u32 %v3334, 7
    %v3336 = vsub.s32 %v2941, %v3335
    %v3337 = vrot.slane %v3311, %v3336
    %v3338 = vlaneseq
    %v3339 = vshrl.u32 %v3338, 7
    %v3340 = vsub.s32 %v2941, %v3339
    %v3341 = vrot.slane %v3313, %v3340
    %v3342 = vlaneseq
    %v3343 = vshrl.u32 %v3342, 7
    %v3344 = vsub.s32 %v2941, %v3343
    %v3345 = vrot.slane %v3315, %v3344
    %v3346 = vlaneseq
    %v3347 = vshrl.u32 %v3346, 7
    %v3348 = vsub.s32 %v2941, %v3347
    %v3349 = vrot.slane %v3317, %v3348
    %v3350 = vlaneseq
    %v3351 = vshrl.u32 %v3350, 7
    %v3352 = vsub.s32 %v2941, %v3351
    %v3353 = vrot.slane %v3319, %v3352
    %v3354 = vlaneseq
    %v3355 = vshrl.u32 %v3354, 7
    %v3356 = vsub.s32 %v2941, %v3355
    %v3357 = vrot.slane %v3321, %v3356
    %v3358 = vlaneseq
    %v3359 = vshrl.u32 %v3358, 7
    %v3360 = vsub.s32 %v2941, %v3359
    %v3361 = vrot.slane %v3323, %v3360
    %v3362 = vlaneseq
    %v3363 = vshrl.u32 %v3362, 7
    %v3364 = vsub.s32 %v2941, %v3363
    %v3365 = vrot.slane %v3325, %v3364
    %v3366 = vsel %vm2974, %v3341, %v3337
    %v3367 = vsel %vm2976, %v3345, %v3366
    %v3368 = vsel %vm2978, %v3349, %v3367
    %v3369 = vsel %vm2980, %v3353, %v3368
    %v3370 = vsel %vm2982, %v3357, %v3369
    %v3371 = vsel %vm2984, %v3361, %v3370
    %v3372 = vsel %vm2986, %v3365, %v3371
    %3374 = vxpose.xlu0.b32.start [1/16] %v3372, 128
    %3375 = vxpose.xlu0.b32.cont [2/16] 0.0, 128
    %3376 = vxpose.xlu0.b32.cont [3/16] 0.0, 128
    %3377 = vxpose.xlu0.b32.cont [4/16] 0.0, 128
    %3378 = vxpose.xlu0.b32.cont [5/16] 0.0, 128
    %3379 = vxpose.xlu0.b32.cont [6/16] 0.0, 128
    %3380 = vxpose.xlu0.b32.cont [7/16] 0.0, 128
    %3381 = vxpose.xlu0.b32.cont [8/16] 0.0, 128
    %3382 = vxpose.xlu0.b32.cont [9/16] 0.0, 128
    %3383 = vxpose.xlu0.b32.cont [10/16] 0.0, 128
    %3384 = vxpose.xlu0.b32.cont [11/16] 0.0, 128
    %3385 = vxpose.xlu0.b32.cont [12/16] 0.0, 128
    %3386 = vxpose.xlu0.b32.cont [13/16] 0.0, 128
    %3387 = vxpose.xlu0.b32.cont [14/16] 0.0, 128
    %3388 = vxpose.xlu0.b32.cont [15/16] 0.0, 128
    %3389 = vxpose.xlu0.b32.end [16/16] 0.0, 128
    %v3390 = vpop.trf.xlu0
    %v3391 = vpop.trf.xlu0
    %v3392 = vpop.trf.xlu0
    %v3393 = vpop.trf.xlu0
    %v3394 = vpop.trf.xlu0
    %v3395 = vpop.trf.xlu0
    %v3396 = vpop.trf.xlu0
    %v3397 = vpop.trf.xlu0
    %v3398 = vpop.trf.xlu0
    %v3399 = vpop.trf.xlu0
    %v3400 = vpop.trf.xlu0
    %v3401 = vpop.trf.xlu0
    %v3402 = vpop.trf.xlu0
    %v3403 = vpop.trf.xlu0
    %v3404 = vpop.trf.xlu0
    %v3405 = vpop.trf.xlu0
    %v3406 = vsel %vm3021, %v3390, -inf
    %3407 = vmax.xlane.f32.xlu0 %v3406
    %v3408 = vpop.xlane.xlu0 %3407
    %v3409 = vsub.f32 %v3390, %v3408
    %v3410 = vmul.f32 %v3409, 1.442695
    %v3411 = vpow.pop %v3410
    %v3412 = vsel %vm3021, %v3411, 0.0
    %3413 = vadd.xlane.f32.xlu0 %v3412
    %v3414 = vpop.xlane.xlu0 %3413
    %v3415 = vlog2.pop %v3414
    %v3416 = vmul.f32 %v3415, 0.6931472
    %v3417 = vadd.f32 %v3408, %v3416
    %v3418 = vsub.f32 %v3390, %v3417
    %v3419 = vsub.f32 0.0, %v3418
    %v3420 = vsel %vm3021, %v3419, 0.0
    %s3421 = scalar_lea.vmem [#allocation15], 8
    %3422 = vst [vmem:[%s3421] sm:$0xff] %v3420
    %v3423 = vadd.f32 %v2563, %v3133
    %v3424 = vadd.f32 %v2565, %v3135
    %v3425 = vadd.f32 %v2634, %v3204
    %v3426 = vadd.f32 %v2636, %v3206
    %v3427 = vxor.u32 %v3423, 2147483648
    %v3428 = vmul.f32 %v3427, 1.442695
    %v3429 = vpow.pop %v3428
    %v3430 = vadd.f32 %v3429, 1.0
    %v3431 = vrcp.pop %v3430
    %v3432 = vmul.f32 1.0, %v3431
    %v3433 = vxor.u32 %v3424, 2147483648
    %v3434 = vmul.f32 %v3433, 1.442695
    %v3435 = vpow.pop %v3434
    %v3436 = vadd.f32 %v3435, 1.0
    %v3437 = vrcp.pop %v3436
    %v3438 = vmul.f32 1.0, %v3437
    %v3439 = vtanh.pop %v3425
    %v3440 = vxor.u32 %v3426, 2147483648
    %v3441 = vmul.f32 %v3440, 1.442695
    %v3442 = vpow.pop %v3441
    %v3443 = vadd.f32 %v3442, 1.0
    %v3444 = vrcp.pop %v3443
    %v3445 = vmul.f32 1.0, %v3444
    %v3446 = vmul.f32 %v3438, %v3063
    %v3447 = vmul.f32 %v3432, %v3439
    %v3448 = vadd.f32 %v3446, %v3447
    %v3449 = vtanh.pop %v3448
    %v3450 = vmul.f32 %v3445, %v3449
    %3451 = vmatprep.subr.mxu0 %v2449
    %3452 = vmatpush1.msra.mxu0 %v2448
    %3453 = vmatprep.subr.mxu0 %v2444
    %3454 = vmatpush1.msra.mxu0 %v2443
    %3455 = vmatprep.subr.mxu0 %v2439
    %3456 = vmatpush1.msra.mxu0 %v2438
    %3457 = vmatprep.subr.mxu0 %v2434
    %3458 = vmatpush1.msra.mxu0 %v2433
    %3459 = vmatprep.subr.mxu0 %v2429
    %3460 = vmatpush1.msra.mxu0 %v2428
    %3461 = vmatprep.subr.mxu0 %v2424
    %3462 = vmatpush1.msra.mxu0 %v2423
    %3463 = vmatprep.subr.mxu0 %v2419
    %3464 = vmatpush1.msra.mxu0 %v2418
    %3465 = vmatprep.subr.mxu0 %v2414
    %3466 = vmatpush1.msra.mxu0 %v2413
    %3467 = vmatprep.subr.mxu0 %v2409
    %3468 = vmatpush1.msra.mxu0 %v2408
    %3469 = vmatprep.subr.mxu0 %v2404
    %3470 = vmatpush1.msra.mxu0 %v2403
    %3471 = vmatprep.subr.mxu0 %v2399
    %3472 = vmatpush1.msra.mxu0 %v2398
    %3473 = vmatprep.subr.mxu0 %v2394
    %3474 = vmatpush1.msra.mxu0 %v2393
    %3475 = vmatprep.subr.mxu0 %v2389
    %3476 = vmatpush1.msra.mxu0 %v2388
    %3477 = vmatprep.subr.mxu0 %v2384
    %3478 = vmatpush1.msra.mxu0 %v2383
    %3479 = vmatprep.subr.mxu0 %v2379
    %3480 = vmatpush1.msra.mxu0 %v2378
    %3481 = vmatprep.subr.mxu0 %v2374
    %3482 = vmatpush1.msra.mxu0 %v2373
    %3483 = vmatprep.subr.mxu0 0.0
    %3484 = vmatpush2.msra.mxu0 0.0
    %3485 = vmatprep.subr.mxu0 0.0
    %3486 = vmatpush2.msra.mxu0 0.0
    %3487 = vmatprep.subr.mxu0 0.0
    %3488 = vmatpush2.msra.mxu0 0.0
    %3489 = vmatprep.subr.mxu0 0.0
    %3490 = vmatpush2.msra.mxu0 0.0
    %3491 = vmatprep.subr.mxu0 0.0
    %3492 = vmatpush2.msra.mxu0 0.0
    %3493 = vmatprep.subr.mxu0 0.0
    %3494 = vmatpush2.msra.mxu0 0.0
    %3495 = vmatprep.subr.mxu0 0.0
    %3496 = vmatpush2.msra.mxu0 0.0
    %3497 = vmatprep.subr.mxu0 0.0
    %3498 = vmatpush2.msra.mxu0 0.0
    %3499 = vmatprep.subr.mxu0 0.0
    %3500 = vmatpush2.msra.mxu0 0.0
    %3501 = vmatprep.subr.mxu0 0.0
    %3502 = vmatpush2.msra.mxu0 0.0
    %3503 = vmatprep.subr.mxu0 0.0
    %3504 = vmatpush2.msra.mxu0 0.0
    %3505 = vmatprep.subr.mxu0 0.0
    %3506 = vmatpush2.msra.mxu0 0.0
    %3507 = vmatprep.subr.mxu0 0.0
    %3508 = vmatpush2.msra.mxu0 0.0
    %3509 = vmatprep.subr.mxu0 0.0
    %3510 = vmatpush2.msra.mxu0 0.0
    %3511 = vmatprep.subr.mxu0 0.0
    %3512 = vmatpush2.msra.mxu0 0.0
    %3513 = vmatprep.subr.mxu0 0.0
    %3514 = vmatpush2.msra.mxu0 0.0
    %3515 = vmatprep.mubr.f32.mxu0 0.0
    %3516 = vmatmul.mubr.f32.gmra.mxu0 %v3450
    %v3517 = vpop.f32.mrf.mxu0
    %v3518 = vadd.f32 0.0, %v3517
    %v3519 = vpop.f32.mrf.mxu0
    %v3520 = vadd.f32 0.0, %v3519
    %3521 = vdwg.mxu0
    %3522 = vmatprep.subr.mxu0 %v2451
    %3523 = vmatpush1.msra.mxu0 %v2450
    %3524 = vmatprep.subr.mxu0 %v2446
    %3525 = vmatpush1.msra.mxu0 %v2445
    %3526 = vmatprep.subr.mxu0 %v2441
    %3527 = vmatpush1.msra.mxu0 %v2440
    %3528 = vmatprep.subr.mxu0 %v2436
    %3529 = vmatpush1.msra.mxu0 %v2435
    %3530 = vmatprep.subr.mxu0 %v2431
    %3531 = vmatpush1.msra.mxu0 %v2430
    %3532 = vmatprep.subr.mxu0 %v2426
    %3533 = vmatpush1.msra.mxu0 %v2425
    %3534 = vmatprep.subr.mxu0 %v2421
    %3535 = vmatpush1.msra.mxu0 %v2420
    %3536 = vmatprep.subr.mxu0 %v2416
    %3537 = vmatpush1.msra.mxu0 %v2415
    %3538 = vmatprep.subr.mxu0 %v2411
    %3539 = vmatpush1.msra.mxu0 %v2410
    %3540 = vmatprep.subr.mxu0 %v2406
    %3541 = vmatpush1.msra.mxu0 %v2405
    %3542 = vmatprep.subr.mxu0 %v2401
    %3543 = vmatpush1.msra.mxu0 %v2400
    %3544 = vmatprep.subr.mxu0 %v2396
    %3545 = vmatpush1.msra.mxu0 %v2395
    %3546 = vmatprep.subr.mxu0 %v2391
    %3547 = vmatpush1.msra.mxu0 %v2390
    %3548 = vmatprep.subr.mxu0 %v2386
    %3549 = vmatpush1.msra.mxu0 %v2385
    %3550 = vmatprep.subr.mxu0 %v2381
    %3551 = vmatpush1.msra.mxu0 %v2380
    %3552 = vmatprep.subr.mxu0 %v2376
    %3553 = vmatpush1.msra.mxu0 %v2375
    %3554 = vmatprep.subr.mxu0 0.0
    %3555 = vmatpush2.msra.mxu0 0.0
    %3556 = vmatprep.subr.mxu0 0.0
    %3557 = vmatpush2.msra.mxu0 0.0
    %3558 = vmatprep.subr.mxu0 0.0
    %3559 = vmatpush2.msra.mxu0 0.0
    %3560 = vmatprep.subr.mxu0 0.0
    %3561 = vmatpush2.msra.mxu0 0.0
    %3562 = vmatprep.subr.mxu0 0.0
    %3563 = vmatpush2.msra.mxu0 0.0
    %3564 = vmatprep.subr.mxu0 0.0
    %3565 = vmatpush2.msra.mxu0 0.0
    %3566 = vmatprep.subr.mxu0 0.0
    %3567 = vmatpush2.msra.mxu0 0.0
    %3568 = vmatprep.subr.mxu0 0.0
    %3569 = vmatpush2.msra.mxu0 0.0
    %3570 = vmatprep.subr.mxu0 0.0
    %3571 = vmatpush2.msra.mxu0 0.0
    %3572 = vmatprep.subr.mxu0 0.0
    %3573 = vmatpush2.msra.mxu0 0.0
    %3574 = vmatprep.subr.mxu0 0.0
    %3575 = vmatpush2.msra.mxu0 0.0
    %3576 = vmatprep.subr.mxu0 0.0
    %3577 = vmatpush2.msra.mxu0 0.0
    %3578 = vmatprep.subr.mxu0 0.0
    %3579 = vmatpush2.msra.mxu0 0.0
    %3580 = vmatprep.subr.mxu0 0.0
    %3581 = vmatpush2.msra.mxu0 0.0
    %3582 = vmatprep.subr.mxu0 0.0
    %3583 = vmatpush2.msra.mxu0 0.0
    %3584 = vmatprep.subr.mxu0 0.0
    %3585 = vmatpush2.msra.mxu0 0.0
    %3586 = vmatprep.mubr.f32.mxu0 0.0
    %3587 = vmatmul.mubr.f32.gmra.mxu0 %v3450
    %v3588 = vpop.f32.mrf.mxu0
    %v3589 = vadd.f32 0.0, %v3588
    %v3590 = vpop.f32.mrf.mxu0
    %v3591 = vadd.f32 0.0, %v3590
    %3592 = vdwg.mxu0
    %3593 = vmatprep.subr.mxu0 0.0
    %3594 = vmatpush1.msra.mxu0 %v2452
    %3595 = vmatprep.subr.mxu0 0.0
    %3596 = vmatpush1.msra.mxu0 %v2447
    %3597 = vmatprep.subr.mxu0 0.0
    %3598 = vmatpush1.msra.mxu0 %v2442
    %3599 = vmatprep.subr.mxu0 0.0
    %3600 = vmatpush1.msra.mxu0 %v2437
    %3601 = vmatprep.subr.mxu0 0.0
    %3602 = vmatpush1.msra.mxu0 %v2432
    %3603 = vmatprep.subr.mxu0 0.0
    %3604 = vmatpush1.msra.mxu0 %v2427
    %3605 = vmatprep.subr.mxu0 0.0
    %3606 = vmatpush1.msra.mxu0 %v2422
    %3607 = vmatprep.subr.mxu0 0.0
    %3608 = vmatpush1.msra.mxu0 %v2417
    %3609 = vmatprep.subr.mxu0 0.0
    %3610 = vmatpush1.msra.mxu0 %v2412
    %3611 = vmatprep.subr.mxu0 0.0
    %3612 = vmatpush1.msra.mxu0 %v2407
    %3613 = vmatprep.subr.mxu0 0.0
    %3614 = vmatpush1.msra.mxu0 %v2402
    %3615 = vmatprep.subr.mxu0 0.0
    %3616 = vmatpush1.msra.mxu0 %v2397
    %3617 = vmatprep.subr.mxu0 0.0
    %3618 = vmatpush1.msra.mxu0 %v2392
    %3619 = vmatprep.subr.mxu0 0.0
    %3620 = vmatpush1.msra.mxu0 %v2387
    %3621 = vmatprep.subr.mxu0 0.0
    %3622 = vmatpush1.msra.mxu0 %v2382
    %3623 = vmatprep.subr.mxu0 0.0
    %3624 = vmatpush1.msra.mxu0 %v2377
    %3625 = vmatprep.subr.mxu0 0.0
    %3626 = vmatpush2.msra.mxu0 0.0
    %3627 = vmatprep.subr.mxu0 0.0
    %3628 = vmatpush2.msra.mxu0 0.0
    %3629 = vmatprep.subr.mxu0 0.0
    %3630 = vmatpush2.msra.mxu0 0.0
    %3631 = vmatprep.subr.mxu0 0.0
    %3632 = vmatpush2.msra.mxu0 0.0
    %3633 = vmatprep.subr.mxu0 0.0
    %3634 = vmatpush2.msra.mxu0 0.0
    %3635 = vmatprep.subr.mxu0 0.0
    %3636 = vmatpush2.msra.mxu0 0.0
    %3637 = vmatprep.subr.mxu0 0.0
    %3638 = vmatpush2.msra.mxu0 0.0
    %3639 = vmatprep.subr.mxu0 0.0
    %3640 = vmatpush2.msra.mxu0 0.0
    %3641 = vmatprep.subr.mxu0 0.0
    %3642 = vmatpush2.msra.mxu0 0.0
    %3643 = vmatprep.subr.mxu0 0.0
    %3644 = vmatpush2.msra.mxu0 0.0
    %3645 = vmatprep.subr.mxu0 0.0
    %3646 = vmatpush2.msra.mxu0 0.0
    %3647 = vmatprep.subr.mxu0 0.0
    %3648 = vmatpush2.msra.mxu0 0.0
    %3649 = vmatprep.subr.mxu0 0.0
    %3650 = vmatpush2.msra.mxu0 0.0
    %3651 = vmatprep.subr.mxu0 0.0
    %3652 = vmatpush2.msra.mxu0 0.0
    %3653 = vmatprep.subr.mxu0 0.0
    %3654 = vmatpush2.msra.mxu0 0.0
    %3655 = vmatprep.subr.mxu0 0.0
    %3656 = vmatpush2.msra.mxu0 0.0
    %3657 = vmatprep.mubr.f32.mxu0 0.0
    %3658 = vmatmul.mubr.f32.gmra.mxu0 %v3450
    %v3659 = vpop.f32.mrf.mxu0
    %v3660 = vadd.f32 0.0, %v3659
    %v3661 = vpop.f32.mrf.mxu0
    %3662 = vdwg.mxu0
    %v3663 = vld [vmem:[#allocation3] sm:$0xff]
    %v3664 = vld [vmem:[#allocation3 + $0x8] sm:$0xff]
    %v3665 = vld [vmem:[#allocation3 + $0x10] sm:$0xff]
    %v3666 = vld [vmem:[#allocation3 + $0x18] sm:$0xff]
    %v3667 = vld [vmem:[#allocation3 + $0x20] sm:$0xff]
    %v3668 = vld [vmem:[#allocation3 + $0x28] sm:$0xff]
    %v3669 = vld [vmem:[#allocation3 + $0x30] sm:$0xff]
    %v3670 = vld [vmem:[#allocation3 + $0x38] sm:$0xff]
    %v3671 = vadd.f32 %v3663, %v3660
    %v3672 = vadd.f32 %v3664, %v3660
    %v3673 = vadd.f32 %v3665, %v3660
    %v3674 = vadd.f32 %v3666, %v3660
    %v3675 = vadd.f32 %v3667, %v3660
    %v3676 = vadd.f32 %v3668, %v3660
    %v3677 = vadd.f32 %v3669, %v3660
    %v3678 = vadd.f32 %v3670, %v3660
    %v3679 = vtanh.pop %v3671
    %v3680 = vtanh.pop %v3672
    %v3681 = vtanh.pop %v3673
    %v3682 = vtanh.pop %v3674
    %v3683 = vtanh.pop %v3675
    %v3684 = vtanh.pop %v3676
    %v3685 = vtanh.pop %v3677
    %v3686 = vtanh.pop %v3678
    %v3687 = vmul.f32 %v3679, %v2906
    %v3688 = vmul.f32 %v3680, %v2906
    %v3689 = vmul.f32 %v3681, %v2906
    %v3690 = vmul.f32 %v3682, %v2906
    %v3691 = vmul.f32 %v3683, %v2906
    %v3692 = vmul.f32 %v3684, %v2906
    %v3693 = vmul.f32 %v3685, %v2906
    %v3694 = vmul.f32 %v3686, %v2906
    %3695 = vadd.xlane.f32.xlu0 %v3687
    %v3696 = vpop.xlane.xlu0 %3695
    %3697 = vadd.xlane.f32.xlu0 %v3688
    %v3698 = vpop.xlane.xlu0 %3697
    %3699 = vadd.xlane.f32.xlu0 %v3689
    %v3700 = vpop.xlane.xlu0 %3699
    %3701 = vadd.xlane.f32.xlu0 %v3690
    %v3702 = vpop.xlane.xlu0 %3701
    %3703 = vadd.xlane.f32.xlu0 %v3691
    %v3704 = vpop.xlane.xlu0 %3703
    %3705 = vadd.xlane.f32.xlu0 %v3692
    %v3706 = vpop.xlane.xlu0 %3705
    %3707 = vadd.xlane.f32.xlu0 %v3693
    %v3708 = vpop.xlane.xlu0 %3707
    %3709 = vadd.xlane.f32.xlu0 %v3694
    %v3710 = vpop.xlane.xlu0 %3709
    %v3719 = vlaneseq
    %v3720 = vshrl.u32 %v3719, 7
    %v3721 = vsub.s32 %v2941, %v3720
    %v3722 = vrot.slane %v3696, %v3721
    %v3723 = vlaneseq
    %v3724 = vshrl.u32 %v3723, 7
    %v3725 = vsub.s32 %v2941, %v3724
    %v3726 = vrot.slane %v3698, %v3725
    %v3727 = vlaneseq
    %v3728 = vshrl.u32 %v3727, 7
    %v3729 = vsub.s32 %v2941, %v3728
    %v3730 = vrot.slane %v3700, %v3729
    %v3731 = vlaneseq
    %v3732 = vshrl.u32 %v3731, 7
    %v3733 = vsub.s32 %v2941, %v3732
    %v3734 = vrot.slane %v3702, %v3733
    %v3735 = vlaneseq
    %v3736 = vshrl.u32 %v3735, 7
    %v3737 = vsub.s32 %v2941, %v3736
    %v3738 = vrot.slane %v3704, %v3737
    %v3739 = vlaneseq
    %v3740 = vshrl.u32 %v3739, 7
    %v3741 = vsub.s32 %v2941, %v3740
    %v3742 = vrot.slane %v3706, %v3741
    %v3743 = vlaneseq
    %v3744 = vshrl.u32 %v3743, 7
    %v3745 = vsub.s32 %v2941, %v3744
    %v3746 = vrot.slane %v3708, %v3745
    %v3747 = vlaneseq
    %v3748 = vshrl.u32 %v3747, 7
    %v3749 = vsub.s32 %v2941, %v3748
    %v3750 = vrot.slane %v3710, %v3749
    %v3751 = vsel %vm2974, %v3726, %v3722
    %v3752 = vsel %vm2976, %v3730, %v3751
    %v3753 = vsel %vm2978, %v3734, %v3752
    %v3754 = vsel %vm2980, %v3738, %v3753
    %v3755 = vsel %vm2982, %v3742, %v3754
    %v3756 = vsel %vm2984, %v3746, %v3755
    %v3757 = vsel %vm2986, %v3750, %v3756
    %3759 = vxpose.xlu0.b32.start [1/16] %v3757, 128
    %3760 = vxpose.xlu0.b32.cont [2/16] 0.0, 128
    %3761 = vxpose.xlu0.b32.cont [3/16] 0.0, 128
    %3762 = vxpose.xlu0.b32.cont [4/16] 0.0, 128
    %3763 = vxpose.xlu0.b32.cont [5/16] 0.0, 128
    %3764 = vxpose.xlu0.b32.cont [6/16] 0.0, 128
    %3765 = vxpose.xlu0.b32.cont [7/16] 0.0, 128
    %3766 = vxpose.xlu0.b32.cont [8/16] 0.0, 128
    %3767 = vxpose.xlu0.b32.cont [9/16] 0.0, 128
    %3768 = vxpose.xlu0.b32.cont [10/16] 0.0, 128
    %3769 = vxpose.xlu0.b32.cont [11/16] 0.0, 128
    %3770 = vxpose.xlu0.b32.cont [12/16] 0.0, 128
    %3771 = vxpose.xlu0.b32.cont [13/16] 0.0, 128
    %3772 = vxpose.xlu0.b32.cont [14/16] 0.0, 128
    %3773 = vxpose.xlu0.b32.cont [15/16] 0.0, 128
    %3774 = vxpose.xlu0.b32.end [16/16] 0.0, 128
    %v3775 = vpop.trf.xlu0
    %v3776 = vpop.trf.xlu0
    %v3777 = vpop.trf.xlu0
    %v3778 = vpop.trf.xlu0
    %v3779 = vpop.trf.xlu0
    %v3780 = vpop.trf.xlu0
    %v3781 = vpop.trf.xlu0
    %v3782 = vpop.trf.xlu0
    %v3783 = vpop.trf.xlu0
    %v3784 = vpop.trf.xlu0
    %v3785 = vpop.trf.xlu0
    %v3786 = vpop.trf.xlu0
    %v3787 = vpop.trf.xlu0
    %v3788 = vpop.trf.xlu0
    %v3789 = vpop.trf.xlu0
    %v3790 = vpop.trf.xlu0
    %v3791 = vsel %vm3021, %v3775, -inf
    %3792 = vmax.xlane.f32.xlu0 %v3791
    %v3793 = vpop.xlane.xlu0 %3792
    %v3794 = vsub.f32 %v3775, %v3793
    %v3795 = vmul.f32 %v3794, 1.442695
    %v3796 = vpow.pop %v3795
    %v3797 = vsel %vm3021, %v3796, 0.0
    %3798 = vadd.xlane.f32.xlu0 %v3797
    %v3799 = vpop.xlane.xlu0 %3798
    %v3800 = vlog2.pop %v3799
    %v3801 = vmul.f32 %v3800, 0.6931472
    %v3802 = vadd.f32 %v3793, %v3801
    %v3803 = vsub.f32 %v3775, %v3802
    %v3804 = vsub.f32 0.0, %v3803
    %v3805 = vsel %vm3021, %v3804, 0.0
    %s3806 = scalar_lea.vmem [#allocation15], 16
    %3807 = vst [vmem:[%s3806] sm:$0xff] %v3805
    %v3808 = vadd.f32 %v2563, %v3518
    %v3809 = vadd.f32 %v2565, %v3520
    %v3810 = vadd.f32 %v2634, %v3589
    %v3811 = vadd.f32 %v2636, %v3591
    %v3812 = vxor.u32 %v3808, 2147483648
    %v3813 = vmul.f32 %v3812, 1.442695
    %v3814 = vpow.pop %v3813
    %v3815 = vadd.f32 %v3814, 1.0
    %v3816 = vrcp.pop %v3815
    %v3817 = vmul.f32 1.0, %v3816
    %v3818 = vxor.u32 %v3809, 2147483648
    %v3819 = vmul.f32 %v3818, 1.442695
    %v3820 = vpow.pop %v3819
    %v3821 = vadd.f32 %v3820, 1.0
    %v3822 = vrcp.pop %v3821
    %v3823 = vmul.f32 1.0, %v3822
    %v3824 = vtanh.pop %v3810
    %v3825 = vxor.u32 %v3811, 2147483648
    %v3826 = vmul.f32 %v3825, 1.442695
    %v3827 = vpow.pop %v3826
    %v3828 = vadd.f32 %v3827, 1.0
    %v3829 = vrcp.pop %v3828
    %v3830 = vmul.f32 1.0, %v3829
    %v3831 = vmul.f32 %v3823, %v3448
    %v3832 = vmul.f32 %v3817, %v3824
    %v3833 = vadd.f32 %v3831, %v3832
    %v3834 = vtanh.pop %v3833
    %v3835 = vmul.f32 %v3830, %v3834
    %3836 = vmatprep.subr.mxu0 0.0
    %3837 = vmatpush1.msra.mxu0 %v2452
    %3838 = vmatprep.subr.mxu0 0.0
    %3839 = vmatpush1.msra.mxu0 %v2447
    %3840 = vmatprep.subr.mxu0 0.0
    %3841 = vmatpush1.msra.mxu0 %v2442
    %3842 = vmatprep.subr.mxu0 0.0
    %3843 = vmatpush1.msra.mxu0 %v2437
    %3844 = vmatprep.subr.mxu0 0.0
    %3845 = vmatpush1.msra.mxu0 %v2432
    %3846 = vmatprep.subr.mxu0 0.0
    %3847 = vmatpush1.msra.mxu0 %v2427
    %3848 = vmatprep.subr.mxu0 0.0
    %3849 = vmatpush1.msra.mxu0 %v2422
    %3850 = vmatprep.subr.mxu0 0.0
    %3851 = vmatpush1.msra.mxu0 %v2417
    %3852 = vmatprep.subr.mxu0 0.0
    %3853 = vmatpush1.msra.mxu0 %v2412
    %3854 = vmatprep.subr.mxu0 0.0
    %3855 = vmatpush1.msra.mxu0 %v2407
    %3856 = vmatprep.subr.mxu0 0.0
    %3857 = vmatpush1.msra.mxu0 %v2402
    %3858 = vmatprep.subr.mxu0 0.0
    %3859 = vmatpush1.msra.mxu0 %v2397
    %3860 = vmatprep.subr.mxu0 0.0
    %3861 = vmatpush1.msra.mxu0 %v2392
    %3862 = vmatprep.subr.mxu0 0.0
    %3863 = vmatpush1.msra.mxu0 %v2387
    %3864 = vmatprep.subr.mxu0 0.0
    %3865 = vmatpush1.msra.mxu0 %v2382
    %3866 = vmatprep.subr.mxu0 0.0
    %3867 = vmatpush1.msra.mxu0 %v2377
    %3868 = vmatprep.subr.mxu0 0.0
    %3869 = vmatpush2.msra.mxu0 0.0
    %3870 = vmatprep.subr.mxu0 0.0
    %3871 = vmatpush2.msra.mxu0 0.0
    %3872 = vmatprep.subr.mxu0 0.0
    %3873 = vmatpush2.msra.mxu0 0.0
    %3874 = vmatprep.subr.mxu0 0.0
    %3875 = vmatpush2.msra.mxu0 0.0
    %3876 = vmatprep.subr.mxu0 0.0
    %3877 = vmatpush2.msra.mxu0 0.0
    %3878 = vmatprep.subr.mxu0 0.0
    %3879 = vmatpush2.msra.mxu0 0.0
    %3880 = vmatprep.subr.mxu0 0.0
    %3881 = vmatpush2.msra.mxu0 0.0
    %3882 = vmatprep.subr.mxu0 0.0
    %3883 = vmatpush2.msra.mxu0 0.0
    %3884 = vmatprep.subr.mxu0 0.0
    %3885 = vmatpush2.msra.mxu0 0.0
    %3886 = vmatprep.subr.mxu0 0.0
    %3887 = vmatpush2.msra.mxu0 0.0
    %3888 = vmatprep.subr.mxu0 0.0
    %3889 = vmatpush2.msra.mxu0 0.0
    %3890 = vmatprep.subr.mxu0 0.0
    %3891 = vmatpush2.msra.mxu0 0.0
    %3892 = vmatprep.subr.mxu0 0.0
    %3893 = vmatpush2.msra.mxu0 0.0
    %3894 = vmatprep.subr.mxu0 0.0
    %3895 = vmatpush2.msra.mxu0 0.0
    %3896 = vmatprep.subr.mxu0 0.0
    %3897 = vmatpush2.msra.mxu0 0.0
    %3898 = vmatprep.subr.mxu0 0.0
    %3899 = vmatpush2.msra.mxu0 0.0
    %3900 = vmatprep.mubr.f32.mxu0 0.0
    %3901 = vmatmul.mubr.f32.gmra.mxu0 %v3835
    %v3902 = vpop.f32.mrf.mxu0
    %v3903 = vadd.f32 0.0, %v3902
    %v3904 = vpop.f32.mrf.mxu0
    %3905 = vdwg.mxu0
    %v3906 = vld [vmem:[#allocation3] sm:$0xff]
    %v3907 = vld [vmem:[#allocation3 + $0x8] sm:$0xff]
    %v3908 = vld [vmem:[#allocation3 + $0x10] sm:$0xff]
    %v3909 = vld [vmem:[#allocation3 + $0x18] sm:$0xff]
    %v3910 = vld [vmem:[#allocation3 + $0x20] sm:$0xff]
    %v3911 = vld [vmem:[#allocation3 + $0x28] sm:$0xff]
    %v3912 = vld [vmem:[#allocation3 + $0x30] sm:$0xff]
    %v3913 = vld [vmem:[#allocation3 + $0x38] sm:$0xff]
    %v3914 = vadd.f32 %v3906, %v3903
    %v3915 = vadd.f32 %v3907, %v3903
    %v3916 = vadd.f32 %v3908, %v3903
    %v3917 = vadd.f32 %v3909, %v3903
    %v3918 = vadd.f32 %v3910, %v3903
    %v3919 = vadd.f32 %v3911, %v3903
    %v3920 = vadd.f32 %v3912, %v3903
    %v3921 = vadd.f32 %v3913, %v3903
    %v3922 = vtanh.pop %v3914
    %v3923 = vtanh.pop %v3915
    %v3924 = vtanh.pop %v3916
    %v3925 = vtanh.pop %v3917
    %v3926 = vtanh.pop %v3918
    %v3927 = vtanh.pop %v3919
    %v3928 = vtanh.pop %v3920
    %v3929 = vtanh.pop %v3921
    %v3930 = vmul.f32 %v3922, %v2906
    %v3931 = vmul.f32 %v3923, %v2906
    %v3932 = vmul.f32 %v3924, %v2906
    %v3933 = vmul.f32 %v3925, %v2906
    %v3934 = vmul.f32 %v3926, %v2906
    %v3935 = vmul.f32 %v3927, %v2906
    %v3936 = vmul.f32 %v3928, %v2906
    %v3937 = vmul.f32 %v3929, %v2906
    %3938 = vadd.xlane.f32.xlu0 %v3930
    %v3939 = vpop.xlane.xlu0 %3938
    %3940 = vadd.xlane.f32.xlu0 %v3931
    %v3941 = vpop.xlane.xlu0 %3940
    %3942 = vadd.xlane.f32.xlu0 %v3932
    %v3943 = vpop.xlane.xlu0 %3942
    %3944 = vadd.xlane.f32.xlu0 %v3933
    %v3945 = vpop.xlane.xlu0 %3944
    %3946 = vadd.xlane.f32.xlu0 %v3934
    %v3947 = vpop.xlane.xlu0 %3946
    %3948 = vadd.xlane.f32.xlu0 %v3935
    %v3949 = vpop.xlane.xlu0 %3948
    %3950 = vadd.xlane.f32.xlu0 %v3936
    %v3951 = vpop.xlane.xlu0 %3950
    %3952 = vadd.xlane.f32.xlu0 %v3937
    %v3953 = vpop.xlane.xlu0 %3952
    %v3962 = vlaneseq
    %v3963 = vshrl.u32 %v3962, 7
    %v3964 = vsub.s32 %v2941, %v3963
    %v3965 = vrot.slane %v3939, %v3964
    %v3966 = vlaneseq
    %v3967 = vshrl.u32 %v3966, 7
    %v3968 = vsub.s32 %v2941, %v3967
    %v3969 = vrot.slane %v3941, %v3968
    %v3970 = vlaneseq
    %v3971 = vshrl.u32 %v3970, 7
    %v3972 = vsub.s32 %v2941, %v3971
    %v3973 = vrot.slane %v3943, %v3972
    %v3974 = vlaneseq
    %v3975 = vshrl.u32 %v3974, 7
    %v3976 = vsub.s32 %v2941, %v3975
    %v3977 = vrot.slane %v3945, %v3976
    %v3978 = vlaneseq
    %v3979 = vshrl.u32 %v3978, 7
    %v3980 = vsub.s32 %v2941, %v3979
    %v3981 = vrot.slane %v3947, %v3980
    %v3982 = vlaneseq
    %v3983 = vshrl.u32 %v3982, 7
    %v3984 = vsub.s32 %v2941, %v3983
    %v3985 = vrot.slane %v3949, %v3984
    %v3986 = vlaneseq
    %v3987 = vshrl.u32 %v3986, 7
    %v3988 = vsub.s32 %v2941, %v3987
    %v3989 = vrot.slane %v3951, %v3988
    %v3990 = vlaneseq
    %v3991 = vshrl.u32 %v3990, 7
    %v3992 = vsub.s32 %v2941, %v3991
    %v3993 = vrot.slane %v3953, %v3992
    %v3994 = vsel %vm2974, %v3969, %v3965
    %v3995 = vsel %vm2976, %v3973, %v3994
    %v3996 = vsel %vm2978, %v3977, %v3995
    %v3997 = vsel %vm2980, %v3981, %v3996
    %v3998 = vsel %vm2982, %v3985, %v3997
    %v3999 = vsel %vm2984, %v3989, %v3998
    %v4000 = vsel %vm2986, %v3993, %v3999
    %4002 = vxpose.xlu0.b32.start [1/16] %v4000, 128
    %4003 = vxpose.xlu0.b32.cont [2/16] 0.0, 128
    %4004 = vxpose.xlu0.b32.cont [3/16] 0.0, 128
    %4005 = vxpose.xlu0.b32.cont [4/16] 0.0, 128
    %4006 = vxpose.xlu0.b32.cont [5/16] 0.0, 128
    %4007 = vxpose.xlu0.b32.cont [6/16] 0.0, 128
    %4008 = vxpose.xlu0.b32.cont [7/16] 0.0, 128
    %4009 = vxpose.xlu0.b32.cont [8/16] 0.0, 128
    %4010 = vxpose.xlu0.b32.cont [9/16] 0.0, 128
    %4011 = vxpose.xlu0.b32.cont [10/16] 0.0, 128
    %4012 = vxpose.xlu0.b32.cont [11/16] 0.0, 128
    %4013 = vxpose.xlu0.b32.cont [12/16] 0.0, 128
    %4014 = vxpose.xlu0.b32.cont [13/16] 0.0, 128
    %4015 = vxpose.xlu0.b32.cont [14/16] 0.0, 128
    %4016 = vxpose.xlu0.b32.cont [15/16] 0.0, 128
    %4017 = vxpose.xlu0.b32.end [16/16] 0.0, 128
    %v4018 = vpop.trf.xlu0
    %v4019 = vpop.trf.xlu0
    %v4020 = vpop.trf.xlu0
    %v4021 = vpop.trf.xlu0
    %v4022 = vpop.trf.xlu0
    %v4023 = vpop.trf.xlu0
    %v4024 = vpop.trf.xlu0
    %v4025 = vpop.trf.xlu0
    %v4026 = vpop.trf.xlu0
    %v4027 = vpop.trf.xlu0
    %v4028 = vpop.trf.xlu0
    %v4029 = vpop.trf.xlu0
    %v4030 = vpop.trf.xlu0
    %v4031 = vpop.trf.xlu0
    %v4032 = vpop.trf.xlu0
    %v4033 = vpop.trf.xlu0
    %v4034 = vsel %vm3021, %v4018, -inf
    %4035 = vmax.xlane.f32.xlu0 %v4034
    %v4036 = vpop.xlane.xlu0 %4035
    %v4037 = vsub.f32 %v4018, %v4036
    %v4038 = vmul.f32 %v4037, 1.442695
    %v4039 = vpow.pop %v4038
    %v4040 = vsel %vm3021, %v4039, 0.0
    %4041 = vadd.xlane.f32.xlu0 %v4040
    %v4042 = vpop.xlane.xlu0 %4041
    %v4043 = vlog2.pop %v4042
    %v4044 = vmul.f32 %v4043, 0.6931472
    %v4045 = vadd.f32 %v4036, %v4044
    %v4046 = vsub.f32 %v4018, %v4045
    %v4047 = vsub.f32 0.0, %v4046
    %v4048 = vsel %vm3021, %v4047, 0.0
    %s4049 = scalar_lea.vmem [#allocation15], 24
    %4050 = vst [vmem:[%s4049] sm:$0xff] %v4048
    // Predicated region
    $region62: #{tpu_custom_call.1} parent=1 // pred_check
      _
    $region63: #{tpu_custom_call.1} parent=1 // pred_check_branch
      %4052 = sbr.rel (0) target = $region65
    $region64: #{tpu_custom_call.1} parent=1 // pred_region
      %s4054 = ssub.s32 512, 512
      %4055 = vsyncadd [#allocation6], %s4054
      %s4056 = sshll.u32 [#allocation15], 4
      %s4057 = int_to_ptr.vmem [resolvable:$true] %s4056
      %4062 = dma.vmem_to_hbm [thread:$0]  %s4057, 512, %s9, [#allocation6], 128, 128, 8
    $region65: #{tpu_custom_call.1} parent=1 // pred_fallthru
      _
    // Predicated region
    $region66: #{tpu_custom_call.1} parent=1 // pred_check
      _
    $region67: #{tpu_custom_call.1} parent=1 // pred_check_branch
      %4064 = sbr.rel (0) target = $region69
    $region68: #{tpu_custom_call.1} parent=1 // pred_region
      %4065 = dma.done [#allocation6], 512
    $region69: #{tpu_custom_call.1} parent=1 // pred_fallthru
      _
    %4066 = vsyncpa [#allocation5], 1
    %4067 = vsyncpa [#allocation8], 1
    %4068 = vsyncpa [#allocation11], 1
    %4069 = vsyncpa [#allocation14], 1
    %4070 = vsyncpa [#allocation6], 1

</llo_original>
